<compile_context>
chip_gen: v6e
topology: v6e:2x2x1
jax: 0.10.0
libtpu: 0.0.40
codegen_flags: <defaults>
</compile_context>

<pallas_src>
import jax
import jax.numpy as jnp
from jax.experimental import pallas as pl
from jax.experimental.pallas import tpu as pltpu

# ----------------------------- config (small, consistent with ViT.__init__) ---
IMAGE_SIZE = 16
PATCH_SIZE = 8
CHANNELS = 3
DIM = 64
DEPTH = 2
HEADS = 4
DIM_HEAD = 16                     # dim_head = dim / heads
INNER = HEADS * DIM_HEAD          # 64
MLP_DIM = 128
NUM_CLASSES = 10
POOL = "cls"
BATCH = 2

NUM_PATCHES = (IMAGE_SIZE // PATCH_SIZE) * (IMAGE_SIZE // PATCH_SIZE)   # 4
PATCH_DIM = CHANNELS * PATCH_SIZE * PATCH_SIZE                          # 192
SEQ = NUM_PATCHES + 1                                                   # 5
SEQ_PAD = 8                                                             # pad to sublane tile
M_ROWS = BATCH * SEQ_PAD                                                # 16
NCLS_PAD = 128                                                          # lane-dense head output
EPS = 1e-5
SCALE = DIM_HEAD ** -0.5
NEG_INF = -1e30


# ----------------------------- in-kernel helpers ------------------------------
def _layernorm(x, g, b):
    # PyTorch nn.LayerNorm: biased variance, eps inside rsqrt, affine.
    mu = jnp.mean(x, axis=-1, keepdims=True)
    var = jnp.mean(jnp.square(x - mu), axis=-1, keepdims=True)
    return (x - mu) * jax.lax.rsqrt(var + EPS) * g + b


def _gelu(x):
    # TODO(synk): torch nn.GELU() uses exact erf; tanh approximation keeps the
    # transcendental on the EUP slot (Mosaic has no guaranteed erf lowering).
    c = 0.7978845608028654  # sqrt(2/pi)
    return 0.5 * x * (1.0 + jnp.tanh(c * (x + 0.044715 * x * x * x)))


def _softmax_last(s):
    s = s - jnp.max(s, axis=-1, keepdims=True)
    p = jnp.exp(s)
    return p * pl.reciprocal(jnp.sum(p, axis=-1, keepdims=True), approx=True)


# ----------------------------- fused kernel -----------------------------------
def vit_fused_kernel(patch_ref, valid_ref, clspos_ref,
                     pe_g1_ref, pe_b1_ref, pe_w_ref, pe_bw_ref, pe_g2_ref, pe_b2_ref,
                     ln1g_ref, ln1b_ref, wqkv_ref, bqkv_ref, wo_ref, bo_ref,
                     ln2g_ref, ln2b_ref, w1_ref, b1_ref, w2_ref, b2_ref,
                     hg_ref, hb_ref, hw_ref, hbw_ref,
                     out_ref):
    f32 = jnp.float32

    # ---- patch embedding: LN -> Linear -> LN on the whole (M_ROWS, PATCH_DIM) slab ----
    p = _layernorm(patch_ref[...], pe_g1_ref[...], pe_b1_ref[...])
    p = jnp.dot(p, pe_w_ref[...], preferred_element_type=f32) + pe_bw_ref[...]
    p = _layernorm(p, pe_g2_ref[...], pe_b2_ref[...])                  # (M_ROWS, DIM)

    # residual stream: cls token + positional embedding; padded rows stay inert
    x = clspos_ref[...] + valid_ref[...] * p                           # (M_ROWS, DIM)

    # key mask (hoisted): padded key positions (>= SEQ) get a large negative score
    kid = jax.lax.broadcasted_iota(jnp.int32, (1, SEQ_PAD, SEQ_PAD), 2)
    key_mask = jnp.where(kid < SEQ, 0.0, NEG_INF).astype(f32)

    for d in range(DEPTH):                                             # static unroll
        # --- PreNorm + multi-head self-attention (fused QKV) + residual ---
        xn = _layernorm(x, ln1g_ref[d], ln1b_ref[d])
        qkv = jnp.dot(xn, wqkv_ref[d], preferred_element_type=f32) + bqkv_ref[d]   # (M, 3*INNER)
        qkv3 = qkv.reshape(BATCH, SEQ_PAD, 3 * INNER)                  # tile-aligned split
        wo_d = wo_ref[d]                                               # (INNER, DIM)

        attn = jnp.zeros((M_ROWS, DIM), f32)
        for h in range(HEADS):
            q_h = qkv3[:, :, h * DIM_HEAD:(h + 1) * DIM_HEAD]
            k_h = qkv3[:, :, INNER + h * DIM_HEAD: INNER + (h + 1) * DIM_HEAD]
            v_h = qkv3[:, :, 2 * INNER + h * DIM_HEAD: 2 * INNER + (h + 1) * DIM_HEAD]
            s = jnp.einsum('bqd,bkd->bqk', q_h, k_h,
                           preferred_element_type=f32) * SCALE          # (B, S_PAD, S_PAD)
            pr = _softmax_last(s + key_mask)
            o_h = jnp.einsum('bqk,bkd->bqd', pr, v_h,
                             preferred_element_type=f32)                # (B, S_PAD, DH)
            o_h = o_h.reshape(M_ROWS, DIM_HEAD)                         # tile-aligned merge
            # accumulate directly into the output projection -> no head concat
            attn = attn + jnp.dot(o_h, wo_d[h * DIM_HEAD:(h + 1) * DIM_HEAD, :],
                                  preferred_element_type=f32)
        x = x + attn + bo_ref[d]

        # --- PreNorm + FeedForward (Linear -> GELU -> Linear) + residual ---
        xn2 = _layernorm(x, ln2g_ref[d], ln2b_ref[d])
        h1 = jnp.dot(xn2, w1_ref[d], preferred_element_type=f32) + b1_ref[d]
        h1 = _gelu(h1)
        x = x + jnp.dot(h1, w2_ref[d], preferred_element_type=f32) + b2_ref[d]

    # --- pool + classifier head (lane-padded output, sliced in the wrapper) ---
    if POOL == "mean":
        pooled = jnp.concatenate(
            [jnp.mean(x[b * SEQ_PAD:b * SEQ_PAD + SEQ, :], axis=0, keepdims=True)
             for b in range(BATCH)], axis=0)
    else:  # 'cls'
        pooled = jnp.concatenate(
            [x[b * SEQ_PAD:b * SEQ_PAD + 1, :] for b in range(BATCH)], axis=0)  # (B, DIM)
    hx = _layernorm(pooled, hg_ref[...], hb_ref[...])
    out_ref[...] = jnp.dot(hx, hw_ref[...], preferred_element_type=f32) + hbw_ref[...]


# ----------------------------- pallas_call wrapper -----------------------------
def _full_spec(shape):
    nd = len(shape)
    return pl.BlockSpec(shape, lambda i, _nd=nd: (0,) * _nd)


def vit_forward(img, params):
    # img: NCHW (B, C, H, W)
    b, c, hh, ww = img.shape
    ph = pw = PATCH_SIZE
    # Rearrange 'b c (h p1) (w p2) -> b (h w) (p1 p2 c)'
    x = img.reshape(b, c, hh // ph, ph, ww // pw, pw)
    x = jnp.transpose(x, (0, 2, 4, 3, 5, 1))                  # b h w p1 p2 c
    patches = x.reshape(b, NUM_PATCHES, PATCH_DIM)

    # scatter patches into a padded (B*SEQ_PAD, PATCH_DIM) slab: rows 1..NUM_PATCHES
    slab = jnp.zeros((b, SEQ_PAD, PATCH_DIM), jnp.float32)
    slab = slab.at[:, 1:1 + NUM_PATCHES, :].set(patches).reshape(b * SEQ_PAD, PATCH_DIM)
    valid = jnp.zeros((b, SEQ_PAD, 1), jnp.float32)
    valid = valid.at[:, 1:1 + NUM_PATCHES, :].set(1.0).reshape(b * SEQ_PAD, 1)

    # cls token + positional embedding, padded to SEQ_PAD and tiled over batch
    cls_pos = jnp.zeros((SEQ_PAD, DIM), jnp.float32)
    cls_pos = cls_pos.at[:SEQ, :].set(params["pos_emb"][0])
    cls_pos = cls_pos.at[0, :].add(params["cls"][0, 0])
    cls_pos = jnp.tile(cls_pos, (b, 1))                        # (B*SEQ_PAD, DIM)

    # stacked per-layer weights, with QKV fused into one lane-dense matmul weight
    L = params["layers"]
    stk = lambda key: jnp.stack([lp[key] for lp in L], axis=0)
    wqkv = jnp.stack([jnp.concatenate([lp["wq"], lp["wk"], lp["wv"]], axis=1) for lp in L], 0)
    bqkv = jnp.stack([jnp.concatenate([lp["bq"], lp["bk"], lp["bv"]], axis=1) for lp in L], 0)

    # lane-pad the classifier head to 128 output lanes (sliced back after the call)
    head_w = jnp.zeros((DIM, NCLS_PAD), jnp.float32).at[:, :NUM_CLASSES].set(params["head_w"])
    head_b = jnp.zeros((1, NCLS_PAD), jnp.float32).at[:, :NUM_CLASSES].set(params["head_b"])

    args = (slab, valid, cls_pos,
            params["patch_ln1_g"], params["patch_ln1_b"],
            params["patch_w"], params["patch_b"],
            params["patch_ln2_g"], params["patch_ln2_b"],
            stk("ln1_g"), stk("ln1_b"), wqkv, bqkv, stk("wo"), stk("bo"),
            stk("ln2_g"), stk("ln2_b"), stk("w1"), stk("b1"), stk("w2"), stk("b2"),
            params["head_ln_g"], params["head_ln_b"], head_w, head_b)

    out = pl.pallas_call(
        vit_fused_kernel,
        out_shape=jax.ShapeDtypeStruct((b, NCLS_PAD), jnp.float32),
        grid=(1,),
        in_specs=[_full_spec(a.shape) for a in args],
        out_specs=pl.BlockSpec((b, NCLS_PAD), lambda i: (0, 0)),
        compiler_params=pltpu.CompilerParams(dimension_semantics=("arbitrary",)),
    )(*args)
    return out[:, :NUM_CLASSES]


# ----------------------------- parameter init (deterministic) ------------------
def init_params(key):
    def nrm(k, shape, scale=0.02):
        return scale * jax.random.normal(k, shape, dtype=jnp.float32)

    keys = iter(jax.random.split(key, 64))
    params = {
        # patch embedding: LayerNorm(patch_dim) -> Linear(patch_dim, dim) -> LayerNorm(dim)
        "patch_ln1_g": jnp.ones((1, PATCH_DIM), jnp.float32),
        "patch_ln1_b": jnp.zeros((1, PATCH_DIM), jnp.float32),
        "patch_w": nrm(next(keys), (PATCH_DIM, DIM)),
        "patch_b": nrm(next(keys), (1, DIM)),
        "patch_ln2_g": jnp.ones((1, DIM), jnp.float32),
        "patch_ln2_b": jnp.zeros((1, DIM), jnp.float32),
        "pos_emb": jax.random.normal(next(keys), (1, SEQ, DIM), jnp.float32),
        "cls": jax.random.normal(next(keys), (1, 1, DIM), jnp.float32),
        "head_ln_g": jnp.ones((1, DIM), jnp.float32),
        "head_ln_b": jnp.zeros((1, DIM), jnp.float32),
        "head_w": nrm(next(keys), (DIM, NUM_CLASSES)),
        "head_b": nrm(next(keys), (1, NUM_CLASSES)),
        "layers": [],
    }
    for _ in range(DEPTH):
        lk = iter(jax.random.split(next(keys), 16))
        params["layers"].append({
            "ln1_g": jnp.ones((1, DIM), jnp.float32),
            "ln1_b": jnp.zeros((1, DIM), jnp.float32),
            "wq": nrm(next(lk), (DIM, INNER)), "bq": nrm(next(lk), (1, INNER)),
            "wk": nrm(next(lk), (DIM, INNER)), "bk": nrm(next(lk), (1, INNER)),
            "wv": nrm(next(lk), (DIM, INNER)), "bv": nrm(next(lk), (1, INNER)),
            "wo": nrm(next(lk), (INNER, DIM)), "bo": nrm(next(lk), (1, DIM)),
            "ln2_g": jnp.ones((1, DIM), jnp.float32),
            "ln2_b": jnp.zeros((1, DIM), jnp.float32),
            "w1": nrm(next(lk), (DIM, MLP_DIM)), "b1": nrm(next(lk), (1, MLP_DIM)),
            "w2": nrm(next(lk), (MLP_DIM, DIM)), "b2": nrm(next(lk), (1, DIM)),
        })
    return params


# ----------------------------- main ---------------------------------------------
if __name__ == "__main__":
    key = jax.random.PRNGKey(0)
    k_img, k_par = jax.random.split(key)
    img = jax.random.normal(k_img, (BATCH, CHANNELS, IMAGE_SIZE, IMAGE_SIZE), jnp.float32)
    params = init_params(k_par)

    logits = jax.jit(vit_forward)(img, params)
    logits = jax.block_until_ready(logits)
    assert logits.shape == (BATCH, NUM_CLASSES)
    assert bool(jnp.all(jnp.isfinite(logits)))
    print("KERNEL_OK")
</pallas_src>

<mosaic_0001>
module attributes {stable_mosaic.version = 11 : i64} {
  func.func @vit_fused_kernel(%arg0: i32, %arg1: memref<16x192xf32, #tpu.memory_space<vmem>>, %arg2: memref<16x1xf32, #tpu.memory_space<vmem>>, %arg3: memref<16x64xf32, #tpu.memory_space<vmem>>, %arg4: memref<1x192xf32, #tpu.memory_space<vmem>>, %arg5: memref<1x192xf32, #tpu.memory_space<vmem>>, %arg6: memref<192x64xf32, #tpu.memory_space<vmem>>, %arg7: memref<1x64xf32, #tpu.memory_space<vmem>>, %arg8: memref<1x64xf32, #tpu.memory_space<vmem>>, %arg9: memref<1x64xf32, #tpu.memory_space<vmem>>, %arg10: memref<2x1x64xf32, #tpu.memory_space<vmem>>, %arg11: memref<2x1x64xf32, #tpu.memory_space<vmem>>, %arg12: memref<2x64x192xf32, #tpu.memory_space<vmem>>, %arg13: memref<2x1x192xf32, #tpu.memory_space<vmem>>, %arg14: memref<2x64x64xf32, #tpu.memory_space<vmem>>, %arg15: memref<2x1x64xf32, #tpu.memory_space<vmem>>, %arg16: memref<2x1x64xf32, #tpu.memory_space<vmem>>, %arg17: memref<2x1x64xf32, #tpu.memory_space<vmem>>, %arg18: memref<2x64x128xf32, #tpu.memory_space<vmem>>, %arg19: memref<2x1x128xf32, #tpu.memory_space<vmem>>, %arg20: memref<2x128x64xf32, #tpu.memory_space<vmem>>, %arg21: memref<2x1x64xf32, #tpu.memory_space<vmem>>, %arg22: memref<1x64xf32, #tpu.memory_space<vmem>>, %arg23: memref<1x64xf32, #tpu.memory_space<vmem>>, %arg24: memref<64x128xf32, #tpu.memory_space<vmem>>, %arg25: memref<1x128xf32, #tpu.memory_space<vmem>>, %arg26: memref<2x128xf32, #tpu.memory_space<vmem>>) attributes {dimension_semantics = [#tpu.dimension_semantics<arbitrary>], iteration_bounds = array<i64: 1>, scalar_prefetch = 0 : i64, scratch_operands = 0 : i64, tpu.core_type = #tpu.core_type<tc>, window_params = [{pipeline_mode = #tpu.pipeline_mode<synchronous>, transform_indices = @transform_0, window_bounds = array<i64: 16, 192>}, {pipeline_mode = #tpu.pipeline_mode<synchronous>, transform_indices = @transform_1, window_bounds = array<i64: 16, 1>}, {pipeline_mode = #tpu.pipeline_mode<synchronous>, transform_indices = @transform_2, window_bounds = array<i64: 16, 64>}, {pipeline_mode = #tpu.pipeline_mode<synchronous>, transform_indices = @transform_3, window_bounds = array<i64: 1, 192>}, {pipeline_mode = #tpu.pipeline_mode<synchronous>, transform_indices = @transform_4, window_bounds = array<i64: 1, 192>}, {pipeline_mode = #tpu.pipeline_mode<synchronous>, transform_indices = @transform_5, window_bounds = array<i64: 192, 64>}, {pipeline_mode = #tpu.pipeline_mode<synchronous>, transform_indices = @transform_6, window_bounds = array<i64: 1, 64>}, {pipeline_mode = #tpu.pipeline_mode<synchronous>, transform_indices = @transform_7, window_bounds = array<i64: 1, 64>}, {pipeline_mode = #tpu.pipeline_mode<synchronous>, transform_indices = @transform_8, window_bounds = array<i64: 1, 64>}, {pipeline_mode = #tpu.pipeline_mode<synchronous>, transform_indices = @transform_9, window_bounds = array<i64: 2, 1, 64>}, {pipeline_mode = #tpu.pipeline_mode<synchronous>, transform_indices = @transform_10, window_bounds = array<i64: 2, 1, 64>}, {pipeline_mode = #tpu.pipeline_mode<synchronous>, transform_indices = @transform_11, window_bounds = array<i64: 2, 64, 192>}, {pipeline_mode = #tpu.pipeline_mode<synchronous>, transform_indices = @transform_12, window_bounds = array<i64: 2, 1, 192>}, {pipeline_mode = #tpu.pipeline_mode<synchronous>, transform_indices = @transform_13, window_bounds = array<i64: 2, 64, 64>}, {pipeline_mode = #tpu.pipeline_mode<synchronous>, transform_indices = @transform_14, window_bounds = array<i64: 2, 1, 64>}, {pipeline_mode = #tpu.pipeline_mode<synchronous>, transform_indices = @transform_15, window_bounds = array<i64: 2, 1, 64>}, {pipeline_mode = #tpu.pipeline_mode<synchronous>, transform_indices = @transform_16, window_bounds = array<i64: 2, 1, 64>}, {pipeline_mode = #tpu.pipeline_mode<synchronous>, transform_indices = @transform_17, window_bounds = array<i64: 2, 64, 128>}, {pipeline_mode = #tpu.pipeline_mode<synchronous>, transform_indices = @transform_18, window_bounds = array<i64: 2, 1, 128>}, {pipeline_mode = #tpu.pipeline_mode<synchronous>, transform_indices = @transform_19, window_bounds = array<i64: 2, 128, 64>}, {pipeline_mode = #tpu.pipeline_mode<synchronous>, transform_indices = @transform_20, window_bounds = array<i64: 2, 1, 64>}, {pipeline_mode = #tpu.pipeline_mode<synchronous>, transform_indices = @transform_21, window_bounds = array<i64: 1, 64>}, {pipeline_mode = #tpu.pipeline_mode<synchronous>, transform_indices = @transform_22, window_bounds = array<i64: 1, 64>}, {pipeline_mode = #tpu.pipeline_mode<synchronous>, transform_indices = @transform_23, window_bounds = array<i64: 64, 128>}, {pipeline_mode = #tpu.pipeline_mode<synchronous>, transform_indices = @transform_24, window_bounds = array<i64: 1, 128>}, {pipeline_mode = #tpu.pipeline_mode<synchronous>, transform_indices = @transform_25, window_bounds = array<i64: 2, 128>}]} {
    %c0 = arith.constant 0 : index
    %c0_0 = arith.constant 0 : index
    %0 = vector.load %arg1[%c0, %c0_0] : memref<16x192xf32, #tpu.memory_space<vmem>>, vector<16x192xf32>
    %c0_1 = arith.constant 0 : index
    %c0_2 = arith.constant 0 : index
    %1 = vector.load %arg4[%c0_1, %c0_2] : memref<1x192xf32, #tpu.memory_space<vmem>>, vector<1x192xf32>
    %c0_3 = arith.constant 0 : index
    %c0_4 = arith.constant 0 : index
    %2 = vector.load %arg5[%c0_3, %c0_4] : memref<1x192xf32, #tpu.memory_space<vmem>>, vector<1x192xf32>
    %cst = arith.constant dense<0.000000e+00> : vector<16xf32>
    %3 = vector.multi_reduction <add>, %0, %cst [1] : vector<16x192xf32> to vector<16xf32>
    %4 = vector.shape_cast %3 : vector<16xf32> to vector<16x1xf32>
    %cst_5 = arith.constant 1.920000e+02 : f32
    %5 = vector.broadcast %cst_5 : f32 to vector<16x1xf32>
    %6 = arith.divf %4, %5 : vector<16x1xf32>
    %7 = vector.broadcast %6 : vector<16x1xf32> to vector<16x192xf32>
    %8 = arith.subf %0, %7 : vector<16x192xf32>
    %9 = arith.mulf %8, %8 : vector<16x192xf32>
    %cst_6 = arith.constant dense<0.000000e+00> : vector<16xf32>
    %10 = vector.multi_reduction <add>, %9, %cst_6 [1] : vector<16x192xf32> to vector<16xf32>
    %11 = vector.shape_cast %10 : vector<16xf32> to vector<16x1xf32>
    %cst_7 = arith.constant 1.920000e+02 : f32
    %12 = vector.broadcast %cst_7 : f32 to vector<16x1xf32>
    %13 = arith.divf %11, %12 : vector<16x1xf32>
    %14 = vector.broadcast %6 : vector<16x1xf32> to vector<16x192xf32>
    %15 = arith.subf %0, %14 : vector<16x192xf32>
    %cst_8 = arith.constant 9.99999974E-6 : f32
    %16 = vector.broadcast %cst_8 : f32 to vector<16x1xf32>
    %17 = arith.addf %13, %16 : vector<16x1xf32>
    %18 = math.rsqrt %17 : vector<16x1xf32>
    %19 = vector.broadcast %18 : vector<16x1xf32> to vector<16x192xf32>
    %20 = arith.mulf %15, %19 : vector<16x192xf32>
    %21 = vector.broadcast %1 : vector<1x192xf32> to vector<16x192xf32>
    %22 = arith.mulf %20, %21 : vector<16x192xf32>
    %23 = vector.broadcast %2 : vector<1x192xf32> to vector<16x192xf32>
    %24 = arith.addf %22, %23 : vector<16x192xf32>
    %c0_9 = arith.constant 0 : index
    %c0_10 = arith.constant 0 : index
    %25 = vector.load %arg6[%c0_9, %c0_10] : memref<192x64xf32, #tpu.memory_space<vmem>>, vector<192x64xf32>
    %cst_11 = arith.constant dense<0.000000e+00> : vector<16x64xf32>
    %26 = tpu.matmul %24, %25, %cst_11 {dimension_numbers = #tpu.dot_dimension_numbers<[1], [0], [0], [1], [0, 0, 1, 1], [], []>} : vector<16x192xf32>, vector<192x64xf32>, vector<16x64xf32> -> vector<16x64xf32>
    %c0_12 = arith.constant 0 : index
    %c0_13 = arith.constant 0 : index
    %27 = vector.load %arg7[%c0_12, %c0_13] : memref<1x64xf32, #tpu.memory_space<vmem>>, vector<1x64xf32>
    %28 = vector.broadcast %27 : vector<1x64xf32> to vector<16x64xf32>
    %29 = arith.addf %26, %28 : vector<16x64xf32>
    %c0_14 = arith.constant 0 : index
    %c0_15 = arith.constant 0 : index
    %30 = vector.load %arg8[%c0_14, %c0_15] : memref<1x64xf32, #tpu.memory_space<vmem>>, vector<1x64xf32>
    %c0_16 = arith.constant 0 : index
    %c0_17 = arith.constant 0 : index
    %31 = vector.load %arg9[%c0_16, %c0_17] : memref<1x64xf32, #tpu.memory_space<vmem>>, vector<1x64xf32>
    %cst_18 = arith.constant dense<0.000000e+00> : vector<16xf32>
    %32 = vector.multi_reduction <add>, %29, %cst_18 [1] : vector<16x64xf32> to vector<16xf32>
    %33 = vector.shape_cast %32 : vector<16xf32> to vector<16x1xf32>
    %cst_19 = arith.constant 6.400000e+01 : f32
    %34 = vector.broadcast %cst_19 : f32 to vector<16x1xf32>
    %35 = arith.divf %33, %34 : vector<16x1xf32>
    %36 = vector.broadcast %35 : vector<16x1xf32> to vector<16x64xf32>
    %37 = arith.subf %29, %36 : vector<16x64xf32>
    %38 = arith.mulf %37, %37 : vector<16x64xf32>
    %cst_20 = arith.constant dense<0.000000e+00> : vector<16xf32>
    %39 = vector.multi_reduction <add>, %38, %cst_20 [1] : vector<16x64xf32> to vector<16xf32>
    %40 = vector.shape_cast %39 : vector<16xf32> to vector<16x1xf32>
    %cst_21 = arith.constant 6.400000e+01 : f32
    %41 = vector.broadcast %cst_21 : f32 to vector<16x1xf32>
    %42 = arith.divf %40, %41 : vector<16x1xf32>
    %43 = vector.broadcast %35 : vector<16x1xf32> to vector<16x64xf32>
    %44 = arith.subf %29, %43 : vector<16x64xf32>
    %cst_22 = arith.constant 9.99999974E-6 : f32
    %45 = vector.broadcast %cst_22 : f32 to vector<16x1xf32>
    %46 = arith.addf %42, %45 : vector<16x1xf32>
    %47 = math.rsqrt %46 : vector<16x1xf32>
    %48 = vector.broadcast %47 : vector<16x1xf32> to vector<16x64xf32>
    %49 = arith.mulf %44, %48 : vector<16x64xf32>
    %50 = vector.broadcast %30 : vector<1x64xf32> to vector<16x64xf32>
    %51 = arith.mulf %49, %50 : vector<16x64xf32>
    %52 = vector.broadcast %31 : vector<1x64xf32> to vector<16x64xf32>
    %53 = arith.addf %51, %52 : vector<16x64xf32>
    %c0_23 = arith.constant 0 : index
    %c0_24 = arith.constant 0 : index
    %54 = vector.load %arg3[%c0_23, %c0_24] : memref<16x64xf32, #tpu.memory_space<vmem>>, vector<16x64xf32>
    %c0_25 = arith.constant 0 : index
    %c0_26 = arith.constant 0 : index
    %55 = vector.load %arg2[%c0_25, %c0_26] : memref<16x1xf32, #tpu.memory_space<vmem>>, vector<16x1xf32>
    %56 = vector.broadcast %55 : vector<16x1xf32> to vector<16x64xf32>
    %57 = arith.mulf %56, %53 : vector<16x64xf32>
    %58 = arith.addf %54, %57 : vector<16x64xf32>
    %59 = tpu.iota {dimensions = array<i32: 2>} : vector<1x8x8xi32>
    %c5_i32 = arith.constant 5 : i32
    %60 = vector.broadcast %c5_i32 : i32 to vector<1x8x8xi32>
    %61 = arith.cmpi slt, %59, %60 : vector<1x8x8xi32>
    %cst_27 = arith.constant 0.000000e+00 : f32
    %cst_28 = arith.constant -1.000000e+30 : f32
    %62 = vector.broadcast %cst_27 : f32 to vector<1x8x8xf32>
    %63 = vector.broadcast %cst_28 : f32 to vector<1x8x8xf32>
    %64 = arith.select %61, %62, %63 : vector<1x8x8xi1>, vector<1x8x8xf32>
    %c0_29 = arith.constant 0 : index
    %c0_30 = arith.constant 0 : index
    %c0_31 = arith.constant 0 : index
    %65 = vector.load %arg10[%c0_29, %c0_30, %c0_31] : memref<2x1x64xf32, #tpu.memory_space<vmem>>, vector<1x1x64xf32>
    %66 = vector.shape_cast %65 : vector<1x1x64xf32> to vector<1x64xf32>
    %c0_32 = arith.constant 0 : index
    %c0_33 = arith.constant 0 : index
    %c0_34 = arith.constant 0 : index
    %67 = vector.load %arg11[%c0_32, %c0_33, %c0_34] : memref<2x1x64xf32, #tpu.memory_space<vmem>>, vector<1x1x64xf32>
    %68 = vector.shape_cast %67 : vector<1x1x64xf32> to vector<1x64xf32>
    %cst_35 = arith.constant dense<0.000000e+00> : vector<16xf32>
    %69 = vector.multi_reduction <add>, %58, %cst_35 [1] : vector<16x64xf32> to vector<16xf32>
    %70 = vector.shape_cast %69 : vector<16xf32> to vector<16x1xf32>
    %cst_36 = arith.constant 6.400000e+01 : f32
    %71 = vector.broadcast %cst_36 : f32 to vector<16x1xf32>
    %72 = arith.divf %70, %71 : vector<16x1xf32>
    %73 = vector.broadcast %72 : vector<16x1xf32> to vector<16x64xf32>
    %74 = arith.subf %58, %73 : vector<16x64xf32>
    %75 = arith.mulf %74, %74 : vector<16x64xf32>
    %cst_37 = arith.constant dense<0.000000e+00> : vector<16xf32>
    %76 = vector.multi_reduction <add>, %75, %cst_37 [1] : vector<16x64xf32> to vector<16xf32>
    %77 = vector.shape_cast %76 : vector<16xf32> to vector<16x1xf32>
    %cst_38 = arith.constant 6.400000e+01 : f32
    %78 = vector.broadcast %cst_38 : f32 to vector<16x1xf32>
    %79 = arith.divf %77, %78 : vector<16x1xf32>
    %80 = vector.broadcast %72 : vector<16x1xf32> to vector<16x64xf32>
    %81 = arith.subf %58, %80 : vector<16x64xf32>
    %cst_39 = arith.constant 9.99999974E-6 : f32
    %82 = vector.broadcast %cst_39 : f32 to vector<16x1xf32>
    %83 = arith.addf %79, %82 : vector<16x1xf32>
    %84 = math.rsqrt %83 : vector<16x1xf32>
    %85 = vector.broadcast %84 : vector<16x1xf32> to vector<16x64xf32>
    %86 = arith.mulf %81, %85 : vector<16x64xf32>
    %87 = vector.broadcast %66 : vector<1x64xf32> to vector<16x64xf32>
    %88 = arith.mulf %86, %87 : vector<16x64xf32>
    %89 = vector.broadcast %68 : vector<1x64xf32> to vector<16x64xf32>
    %90 = arith.addf %88, %89 : vector<16x64xf32>
    %c0_40 = arith.constant 0 : index
    %c0_41 = arith.constant 0 : index
    %c0_42 = arith.constant 0 : index
    %91 = vector.load %arg12[%c0_40, %c0_41, %c0_42] : memref<2x64x192xf32, #tpu.memory_space<vmem>>, vector<1x64x192xf32>
    %92 = vector.shape_cast %91 : vector<1x64x192xf32> to vector<64x192xf32>
    %cst_43 = arith.constant dense<0.000000e+00> : vector<16x192xf32>
    %93 = tpu.matmul %90, %92, %cst_43 {dimension_numbers = #tpu.dot_dimension_numbers<[1], [0], [0], [1], [0, 0, 1, 1], [], []>} : vector<16x64xf32>, vector<64x192xf32>, vector<16x192xf32> -> vector<16x192xf32>
    %c0_44 = arith.constant 0 : index
    %c0_45 = arith.constant 0 : index
    %c0_46 = arith.constant 0 : index
    %94 = vector.load %arg13[%c0_44, %c0_45, %c0_46] : memref<2x1x192xf32, #tpu.memory_space<vmem>>, vector<1x1x192xf32>
    %95 = vector.shape_cast %94 : vector<1x1x192xf32> to vector<1x192xf32>
    %96 = vector.broadcast %95 : vector<1x192xf32> to vector<16x192xf32>
    %97 = arith.addf %93, %96 : vector<16x192xf32>
    %98 = vector.shape_cast %97 : vector<16x192xf32> to vector<2x8x192xf32>
    %c0_47 = arith.constant 0 : index
    %c0_48 = arith.constant 0 : index
    %c0_49 = arith.constant 0 : index
    %99 = vector.load %arg14[%c0_47, %c0_48, %c0_49] : memref<2x64x64xf32, #tpu.memory_space<vmem>>, vector<1x64x64xf32>
    %100 = vector.shape_cast %99 : vector<1x64x64xf32> to vector<64x64xf32>
    %cst_50 = arith.constant 0.000000e+00 : f32
    %101 = vector.broadcast %cst_50 : f32 to vector<16x64xf32>
    %102 = vector.extract_strided_slice %98 {offsets = [0, 0, 0], sizes = [2, 8, 16], strides = [1, 1, 1]} : vector<2x8x192xf32> to vector<2x8x16xf32>
    %103 = vector.extract_strided_slice %98 {offsets = [0, 0, 64], sizes = [2, 8, 16], strides = [1, 1, 1]} : vector<2x8x192xf32> to vector<2x8x16xf32>
    %104 = vector.extract_strided_slice %98 {offsets = [0, 0, 128], sizes = [2, 8, 16], strides = [1, 1, 1]} : vector<2x8x192xf32> to vector<2x8x16xf32>
    "tpu.trace_start"() <{level = 10 : i32, message = "bqd,bkd->bqk"}> : () -> ()
    %cst_51 = arith.constant dense<0.000000e+00> : vector<2x8x8xf32>
    %105 = tpu.matmul %102, %103, %cst_51 {dimension_numbers = #tpu.dot_dimension_numbers<[2], [2], [1], [1], [0, 0, 0, 1, 1, 1], [0], [0]>} : vector<2x8x16xf32>, vector<2x8x16xf32>, vector<2x8x8xf32> -> vector<2x8x8xf32>
    "tpu.trace_stop"() : () -> ()
    %cst_52 = arith.constant 2.500000e-01 : f32
    %106 = vector.broadcast %cst_52 : f32 to vector<2x8x8xf32>
    %107 = arith.mulf %105, %106 : vector<2x8x8xf32>
    %108 = vector.broadcast %64 : vector<1x8x8xf32> to vector<2x8x8xf32>
    %109 = arith.addf %107, %108 : vector<2x8x8xf32>
    %cst_53 = arith.constant dense<0xFF800000> : vector<2x8xf32>
    %110 = vector.multi_reduction <maximumf>, %109, %cst_53 [2] : vector<2x8x8xf32> to vector<2x8xf32>
    %111 = vector.shape_cast %110 : vector<2x8xf32> to vector<2x8x1xf32>
    %112 = vector.broadcast %111 : vector<2x8x1xf32> to vector<2x8x8xf32>
    %113 = arith.subf %109, %112 : vector<2x8x8xf32>
    %114 = math.exp %113 : vector<2x8x8xf32>
    %cst_54 = arith.constant dense<0.000000e+00> : vector<2x8xf32>
    %115 = vector.multi_reduction <add>, %114, %cst_54 [2] : vector<2x8x8xf32> to vector<2x8xf32>
    %116 = vector.shape_cast %115 : vector<2x8xf32> to vector<2x8x1xf32>
    %117 = tpu.reciprocal %116 {approx = true} : vector<2x8x1xf32> -> vector<2x8x1xf32>
    %118 = vector.broadcast %117 : vector<2x8x1xf32> to vector<2x8x8xf32>
    %119 = arith.mulf %114, %118 : vector<2x8x8xf32>
    "tpu.trace_start"() <{level = 10 : i32, message = "bqk,bkd->bqd"}> : () -> ()
    %cst_55 = arith.constant dense<0.000000e+00> : vector<2x8x16xf32>
    %120 = tpu.matmul %119, %104, %cst_55 {dimension_numbers = #tpu.dot_dimension_numbers<[2], [1], [1], [2], [0, 0, 0, 1, 1, 2], [0], [0]>} : vector<2x8x8xf32>, vector<2x8x16xf32>, vector<2x8x16xf32> -> vector<2x8x16xf32>
    "tpu.trace_stop"() : () -> ()
    %121 = vector.shape_cast %120 : vector<2x8x16xf32> to vector<16x16xf32>
    %122 = vector.extract_strided_slice %100 {offsets = [0, 0], sizes = [16, 64], strides = [1, 1]} : vector<64x64xf32> to vector<16x64xf32>
    %cst_56 = arith.constant dense<0.000000e+00> : vector<16x64xf32>
    %123 = tpu.matmul %121, %122, %cst_56 {dimension_numbers = #tpu.dot_dimension_numbers<[1], [0], [0], [1], [0, 0, 1, 1], [], []>} : vector<16x16xf32>, vector<16x64xf32>, vector<16x64xf32> -> vector<16x64xf32>
    %124 = arith.addf %101, %123 : vector<16x64xf32>
    %125 = vector.extract_strided_slice %98 {offsets = [0, 0, 16], sizes = [2, 8, 16], strides = [1, 1, 1]} : vector<2x8x192xf32> to vector<2x8x16xf32>
    %126 = vector.extract_strided_slice %98 {offsets = [0, 0, 80], sizes = [2, 8, 16], strides = [1, 1, 1]} : vector<2x8x192xf32> to vector<2x8x16xf32>
    %127 = vector.extract_strided_slice %98 {offsets = [0, 0, 144], sizes = [2, 8, 16], strides = [1, 1, 1]} : vector<2x8x192xf32> to vector<2x8x16xf32>
    "tpu.trace_start"() <{level = 10 : i32, message = "bqd,bkd->bqk"}> : () -> ()
    %cst_57 = arith.constant dense<0.000000e+00> : vector<2x8x8xf32>
    %128 = tpu.matmul %125, %126, %cst_57 {dimension_numbers = #tpu.dot_dimension_numbers<[2], [2], [1], [1], [0, 0, 0, 1, 1, 1], [0], [0]>} : vector<2x8x16xf32>, vector<2x8x16xf32>, vector<2x8x8xf32> -> vector<2x8x8xf32>
    "tpu.trace_stop"() : () -> ()
    %cst_58 = arith.constant 2.500000e-01 : f32
    %129 = vector.broadcast %cst_58 : f32 to vector<2x8x8xf32>
    %130 = arith.mulf %128, %129 : vector<2x8x8xf32>
    %131 = vector.broadcast %64 : vector<1x8x8xf32> to vector<2x8x8xf32>
    %132 = arith.addf %130, %131 : vector<2x8x8xf32>
    %cst_59 = arith.constant dense<0xFF800000> : vector<2x8xf32>
    %133 = vector.multi_reduction <maximumf>, %132, %cst_59 [2] : vector<2x8x8xf32> to vector<2x8xf32>
    %134 = vector.shape_cast %133 : vector<2x8xf32> to vector<2x8x1xf32>
    %135 = vector.broadcast %134 : vector<2x8x1xf32> to vector<2x8x8xf32>
    %136 = arith.subf %132, %135 : vector<2x8x8xf32>
    %137 = math.exp %136 : vector<2x8x8xf32>
    %cst_60 = arith.constant dense<0.000000e+00> : vector<2x8xf32>
    %138 = vector.multi_reduction <add>, %137, %cst_60 [2] : vector<2x8x8xf32> to vector<2x8xf32>
    %139 = vector.shape_cast %138 : vector<2x8xf32> to vector<2x8x1xf32>
    %140 = tpu.reciprocal %139 {approx = true} : vector<2x8x1xf32> -> vector<2x8x1xf32>
    %141 = vector.broadcast %140 : vector<2x8x1xf32> to vector<2x8x8xf32>
    %142 = arith.mulf %137, %141 : vector<2x8x8xf32>
    "tpu.trace_start"() <{level = 10 : i32, message = "bqk,bkd->bqd"}> : () -> ()
    %cst_61 = arith.constant dense<0.000000e+00> : vector<2x8x16xf32>
    %143 = tpu.matmul %142, %127, %cst_61 {dimension_numbers = #tpu.dot_dimension_numbers<[2], [1], [1], [2], [0, 0, 0, 1, 1, 2], [0], [0]>} : vector<2x8x8xf32>, vector<2x8x16xf32>, vector<2x8x16xf32> -> vector<2x8x16xf32>
    "tpu.trace_stop"() : () -> ()
    %144 = vector.shape_cast %143 : vector<2x8x16xf32> to vector<16x16xf32>
    %145 = vector.extract_strided_slice %100 {offsets = [16, 0], sizes = [16, 64], strides = [1, 1]} : vector<64x64xf32> to vector<16x64xf32>
    %cst_62 = arith.constant dense<0.000000e+00> : vector<16x64xf32>
    %146 = tpu.matmul %144, %145, %cst_62 {dimension_numbers = #tpu.dot_dimension_numbers<[1], [0], [0], [1], [0, 0, 1, 1], [], []>} : vector<16x16xf32>, vector<16x64xf32>, vector<16x64xf32> -> vector<16x64xf32>
    %147 = arith.addf %124, %146 : vector<16x64xf32>
    %148 = vector.extract_strided_slice %98 {offsets = [0, 0, 32], sizes = [2, 8, 16], strides = [1, 1, 1]} : vector<2x8x192xf32> to vector<2x8x16xf32>
    %149 = vector.extract_strided_slice %98 {offsets = [0, 0, 96], sizes = [2, 8, 16], strides = [1, 1, 1]} : vector<2x8x192xf32> to vector<2x8x16xf32>
    %150 = vector.extract_strided_slice %98 {offsets = [0, 0, 160], sizes = [2, 8, 16], strides = [1, 1, 1]} : vector<2x8x192xf32> to vector<2x8x16xf32>
    "tpu.trace_start"() <{level = 10 : i32, message = "bqd,bkd->bqk"}> : () -> ()
    %cst_63 = arith.constant dense<0.000000e+00> : vector<2x8x8xf32>
    %151 = tpu.matmul %148, %149, %cst_63 {dimension_numbers = #tpu.dot_dimension_numbers<[2], [2], [1], [1], [0, 0, 0, 1, 1, 1], [0], [0]>} : vector<2x8x16xf32>, vector<2x8x16xf32>, vector<2x8x8xf32> -> vector<2x8x8xf32>
    "tpu.trace_stop"() : () -> ()
    %cst_64 = arith.constant 2.500000e-01 : f32
    %152 = vector.broadcast %cst_64 : f32 to vector<2x8x8xf32>
    %153 = arith.mulf %151, %152 : vector<2x8x8xf32>
    %154 = vector.broadcast %64 : vector<1x8x8xf32> to vector<2x8x8xf32>
    %155 = arith.addf %153, %154 : vector<2x8x8xf32>
    %cst_65 = arith.constant dense<0xFF800000> : vector<2x8xf32>
    %156 = vector.multi_reduction <maximumf>, %155, %cst_65 [2] : vector<2x8x8xf32> to vector<2x8xf32>
    %157 = vector.shape_cast %156 : vector<2x8xf32> to vector<2x8x1xf32>
    %158 = vector.broadcast %157 : vector<2x8x1xf32> to vector<2x8x8xf32>
    %159 = arith.subf %155, %158 : vector<2x8x8xf32>
    %160 = math.exp %159 : vector<2x8x8xf32>
    %cst_66 = arith.constant dense<0.000000e+00> : vector<2x8xf32>
    %161 = vector.multi_reduction <add>, %160, %cst_66 [2] : vector<2x8x8xf32> to vector<2x8xf32>
    %162 = vector.shape_cast %161 : vector<2x8xf32> to vector<2x8x1xf32>
    %163 = tpu.reciprocal %162 {approx = true} : vector<2x8x1xf32> -> vector<2x8x1xf32>
    %164 = vector.broadcast %163 : vector<2x8x1xf32> to vector<2x8x8xf32>
    %165 = arith.mulf %160, %164 : vector<2x8x8xf32>
    "tpu.trace_start"() <{level = 10 : i32, message = "bqk,bkd->bqd"}> : () -> ()
    %cst_67 = arith.constant dense<0.000000e+00> : vector<2x8x16xf32>
    %166 = tpu.matmul %165, %150, %cst_67 {dimension_numbers = #tpu.dot_dimension_numbers<[2], [1], [1], [2], [0, 0, 0, 1, 1, 2], [0], [0]>} : vector<2x8x8xf32>, vector<2x8x16xf32>, vector<2x8x16xf32> -> vector<2x8x16xf32>
    "tpu.trace_stop"() : () -> ()
    %167 = vector.shape_cast %166 : vector<2x8x16xf32> to vector<16x16xf32>
    %168 = vector.extract_strided_slice %100 {offsets = [32, 0], sizes = [16, 64], strides = [1, 1]} : vector<64x64xf32> to vector<16x64xf32>
    %cst_68 = arith.constant dense<0.000000e+00> : vector<16x64xf32>
    %169 = tpu.matmul %167, %168, %cst_68 {dimension_numbers = #tpu.dot_dimension_numbers<[1], [0], [0], [1], [0, 0, 1, 1], [], []>} : vector<16x16xf32>, vector<16x64xf32>, vector<16x64xf32> -> vector<16x64xf32>
    %170 = arith.addf %147, %169 : vector<16x64xf32>
    %171 = vector.extract_strided_slice %98 {offsets = [0, 0, 48], sizes = [2, 8, 16], strides = [1, 1, 1]} : vector<2x8x192xf32> to vector<2x8x16xf32>
    %172 = vector.extract_strided_slice %98 {offsets = [0, 0, 112], sizes = [2, 8, 16], strides = [1, 1, 1]} : vector<2x8x192xf32> to vector<2x8x16xf32>
    %173 = vector.extract_strided_slice %98 {offsets = [0, 0, 176], sizes = [2, 8, 16], strides = [1, 1, 1]} : vector<2x8x192xf32> to vector<2x8x16xf32>
    "tpu.trace_start"() <{level = 10 : i32, message = "bqd,bkd->bqk"}> : () -> ()
    %cst_69 = arith.constant dense<0.000000e+00> : vector<2x8x8xf32>
    %174 = tpu.matmul %171, %172, %cst_69 {dimension_numbers = #tpu.dot_dimension_numbers<[2], [2], [1], [1], [0, 0, 0, 1, 1, 1], [0], [0]>} : vector<2x8x16xf32>, vector<2x8x16xf32>, vector<2x8x8xf32> -> vector<2x8x8xf32>
    "tpu.trace_stop"() : () -> ()
    %cst_70 = arith.constant 2.500000e-01 : f32
    %175 = vector.broadcast %cst_70 : f32 to vector<2x8x8xf32>
    %176 = arith.mulf %174, %175 : vector<2x8x8xf32>
    %177 = vector.broadcast %64 : vector<1x8x8xf32> to vector<2x8x8xf32>
    %178 = arith.addf %176, %177 : vector<2x8x8xf32>
    %cst_71 = arith.constant dense<0xFF800000> : vector<2x8xf32>
    %179 = vector.multi_reduction <maximumf>, %178, %cst_71 [2] : vector<2x8x8xf32> to vector<2x8xf32>
    %180 = vector.shape_cast %179 : vector<2x8xf32> to vector<2x8x1xf32>
    %181 = vector.broadcast %180 : vector<2x8x1xf32> to vector<2x8x8xf32>
    %182 = arith.subf %178, %181 : vector<2x8x8xf32>
    %183 = math.exp %182 : vector<2x8x8xf32>
    %cst_72 = arith.constant dense<0.000000e+00> : vector<2x8xf32>
    %184 = vector.multi_reduction <add>, %183, %cst_72 [2] : vector<2x8x8xf32> to vector<2x8xf32>
    %185 = vector.shape_cast %184 : vector<2x8xf32> to vector<2x8x1xf32>
    %186 = tpu.reciprocal %185 {approx = true} : vector<2x8x1xf32> -> vector<2x8x1xf32>
    %187 = vector.broadcast %186 : vector<2x8x1xf32> to vector<2x8x8xf32>
    %188 = arith.mulf %183, %187 : vector<2x8x8xf32>
    "tpu.trace_start"() <{level = 10 : i32, message = "bqk,bkd->bqd"}> : () -> ()
    %cst_73 = arith.constant dense<0.000000e+00> : vector<2x8x16xf32>
    %189 = tpu.matmul %188, %173, %cst_73 {dimension_numbers = #tpu.dot_dimension_numbers<[2], [1], [1], [2], [0, 0, 0, 1, 1, 2], [0], [0]>} : vector<2x8x8xf32>, vector<2x8x16xf32>, vector<2x8x16xf32> -> vector<2x8x16xf32>
    "tpu.trace_stop"() : () -> ()
    %190 = vector.shape_cast %189 : vector<2x8x16xf32> to vector<16x16xf32>
    %191 = vector.extract_strided_slice %100 {offsets = [48, 0], sizes = [16, 64], strides = [1, 1]} : vector<64x64xf32> to vector<16x64xf32>
    %cst_74 = arith.constant dense<0.000000e+00> : vector<16x64xf32>
    %192 = tpu.matmul %190, %191, %cst_74 {dimension_numbers = #tpu.dot_dimension_numbers<[1], [0], [0], [1], [0, 0, 1, 1], [], []>} : vector<16x16xf32>, vector<16x64xf32>, vector<16x64xf32> -> vector<16x64xf32>
    %193 = arith.addf %170, %192 : vector<16x64xf32>
    %194 = arith.addf %58, %193 : vector<16x64xf32>
    %c0_75 = arith.constant 0 : index
    %c0_76 = arith.constant 0 : index
    %c0_77 = arith.constant 0 : index
    %195 = vector.load %arg15[%c0_75, %c0_76, %c0_77] : memref<2x1x64xf32, #tpu.memory_space<vmem>>, vector<1x1x64xf32>
    %196 = vector.shape_cast %195 : vector<1x1x64xf32> to vector<1x64xf32>
    %197 = vector.broadcast %196 : vector<1x64xf32> to vector<16x64xf32>
    %198 = arith.addf %194, %197 : vector<16x64xf32>
    %c0_78 = arith.constant 0 : index
    %c0_79 = arith.constant 0 : index
    %c0_80 = arith.constant 0 : index
    %199 = vector.load %arg16[%c0_78, %c0_79, %c0_80] : memref<2x1x64xf32, #tpu.memory_space<vmem>>, vector<1x1x64xf32>
    %200 = vector.shape_cast %199 : vector<1x1x64xf32> to vector<1x64xf32>
    %c0_81 = arith.constant 0 : index
    %c0_82 = arith.constant 0 : index
    %c0_83 = arith.constant 0 : index
    %201 = vector.load %arg17[%c0_81, %c0_82, %c0_83] : memref<2x1x64xf32, #tpu.memory_space<vmem>>, vector<1x1x64xf32>
    %202 = vector.shape_cast %201 : vector<1x1x64xf32> to vector<1x64xf32>
    %cst_84 = arith.constant dense<0.000000e+00> : vector<16xf32>
    %203 = vector.multi_reduction <add>, %198, %cst_84 [1] : vector<16x64xf32> to vector<16xf32>
    %204 = vector.shape_cast %203 : vector<16xf32> to vector<16x1xf32>
    %cst_85 = arith.constant 6.400000e+01 : f32
    %205 = vector.broadcast %cst_85 : f32 to vector<16x1xf32>
    %206 = arith.divf %204, %205 : vector<16x1xf32>
    %207 = vector.broadcast %206 : vector<16x1xf32> to vector<16x64xf32>
    %208 = arith.subf %198, %207 : vector<16x64xf32>
    %209 = arith.mulf %208, %208 : vector<16x64xf32>
    %cst_86 = arith.constant dense<0.000000e+00> : vector<16xf32>
    %210 = vector.multi_reduction <add>, %209, %cst_86 [1] : vector<16x64xf32> to vector<16xf32>
    %211 = vector.shape_cast %210 : vector<16xf32> to vector<16x1xf32>
    %cst_87 = arith.constant 6.400000e+01 : f32
    %212 = vector.broadcast %cst_87 : f32 to vector<16x1xf32>
    %213 = arith.divf %211, %212 : vector<16x1xf32>
    %214 = vector.broadcast %206 : vector<16x1xf32> to vector<16x64xf32>
    %215 = arith.subf %198, %214 : vector<16x64xf32>
    %cst_88 = arith.constant 9.99999974E-6 : f32
    %216 = vector.broadcast %cst_88 : f32 to vector<16x1xf32>
    %217 = arith.addf %213, %216 : vector<16x1xf32>
    %218 = math.rsqrt %217 : vector<16x1xf32>
    %219 = vector.broadcast %218 : vector<16x1xf32> to vector<16x64xf32>
    %220 = arith.mulf %215, %219 : vector<16x64xf32>
    %221 = vector.broadcast %200 : vector<1x64xf32> to vector<16x64xf32>
    %222 = arith.mulf %220, %221 : vector<16x64xf32>
    %223 = vector.broadcast %202 : vector<1x64xf32> to vector<16x64xf32>
    %224 = arith.addf %222, %223 : vector<16x64xf32>
    %c0_89 = arith.constant 0 : index
    %c0_90 = arith.constant 0 : index
    %c0_91 = arith.constant 0 : index
    %225 = vector.load %arg18[%c0_89, %c0_90, %c0_91] : memref<2x64x128xf32, #tpu.memory_space<vmem>>, vector<1x64x128xf32>
    %226 = vector.shape_cast %225 : vector<1x64x128xf32> to vector<64x128xf32>
    %cst_92 = arith.constant dense<0.000000e+00> : vector<16x128xf32>
    %227 = tpu.matmul %224, %226, %cst_92 {dimension_numbers = #tpu.dot_dimension_numbers<[1], [0], [0], [1], [0, 0, 1, 1], [], []>} : vector<16x64xf32>, vector<64x128xf32>, vector<16x128xf32> -> vector<16x128xf32>
    %c0_93 = arith.constant 0 : index
    %c0_94 = arith.constant 0 : index
    %c0_95 = arith.constant 0 : index
    %228 = vector.load %arg19[%c0_93, %c0_94, %c0_95] : memref<2x1x128xf32, #tpu.memory_space<vmem>>, vector<1x1x128xf32>
    %229 = vector.shape_cast %228 : vector<1x1x128xf32> to vector<1x128xf32>
    %230 = vector.broadcast %229 : vector<1x128xf32> to vector<16x128xf32>
    %231 = arith.addf %227, %230 : vector<16x128xf32>
    %cst_96 = arith.constant 5.000000e-01 : f32
    %232 = vector.broadcast %cst_96 : f32 to vector<16x128xf32>
    %233 = arith.mulf %232, %231 : vector<16x128xf32>
    %cst_97 = arith.constant 4.471500e-02 : f32
    %234 = vector.broadcast %cst_97 : f32 to vector<16x128xf32>
    %235 = arith.mulf %234, %231 : vector<16x128xf32>
    %236 = arith.mulf %235, %231 : vector<16x128xf32>
    %237 = arith.mulf %236, %231 : vector<16x128xf32>
    %238 = arith.addf %231, %237 : vector<16x128xf32>
    %cst_98 = arith.constant 0.797884583 : f32
    %239 = vector.broadcast %cst_98 : f32 to vector<16x128xf32>
    %240 = arith.mulf %239, %238 : vector<16x128xf32>
    %241 = math.tanh %240 : vector<16x128xf32>
    %cst_99 = arith.constant 1.000000e+00 : f32
    %242 = vector.broadcast %cst_99 : f32 to vector<16x128xf32>
    %243 = arith.addf %242, %241 : vector<16x128xf32>
    %244 = arith.mulf %233, %243 : vector<16x128xf32>
    %c0_100 = arith.constant 0 : index
    %c0_101 = arith.constant 0 : index
    %c0_102 = arith.constant 0 : index
    %245 = vector.load %arg20[%c0_100, %c0_101, %c0_102] : memref<2x128x64xf32, #tpu.memory_space<vmem>>, vector<1x128x64xf32>
    %246 = vector.shape_cast %245 : vector<1x128x64xf32> to vector<128x64xf32>
    %cst_103 = arith.constant dense<0.000000e+00> : vector<16x64xf32>
    %247 = tpu.matmul %244, %246, %cst_103 {dimension_numbers = #tpu.dot_dimension_numbers<[1], [0], [0], [1], [0, 0, 1, 1], [], []>} : vector<16x128xf32>, vector<128x64xf32>, vector<16x64xf32> -> vector<16x64xf32>
    %248 = arith.addf %198, %247 : vector<16x64xf32>
    %c0_104 = arith.constant 0 : index
    %c0_105 = arith.constant 0 : index
    %c0_106 = arith.constant 0 : index
    %249 = vector.load %arg21[%c0_104, %c0_105, %c0_106] : memref<2x1x64xf32, #tpu.memory_space<vmem>>, vector<1x1x64xf32>
    %250 = vector.shape_cast %249 : vector<1x1x64xf32> to vector<1x64xf32>
    %251 = vector.broadcast %250 : vector<1x64xf32> to vector<16x64xf32>
    %252 = arith.addf %248, %251 : vector<16x64xf32>
    %c1 = arith.constant 1 : index
    %c0_107 = arith.constant 0 : index
    %c0_108 = arith.constant 0 : index
    %253 = vector.load %arg10[%c1, %c0_107, %c0_108] : memref<2x1x64xf32, #tpu.memory_space<vmem>>, vector<1x1x64xf32>
    %254 = vector.shape_cast %253 : vector<1x1x64xf32> to vector<1x64xf32>
    %c1_109 = arith.constant 1 : index
    %c0_110 = arith.constant 0 : index
    %c0_111 = arith.constant 0 : index
    %255 = vector.load %arg11[%c1_109, %c0_110, %c0_111] : memref<2x1x64xf32, #tpu.memory_space<vmem>>, vector<1x1x64xf32>
    %256 = vector.shape_cast %255 : vector<1x1x64xf32> to vector<1x64xf32>
    %cst_112 = arith.constant dense<0.000000e+00> : vector<16xf32>
    %257 = vector.multi_reduction <add>, %252, %cst_112 [1] : vector<16x64xf32> to vector<16xf32>
    %258 = vector.shape_cast %257 : vector<16xf32> to vector<16x1xf32>
    %cst_113 = arith.constant 6.400000e+01 : f32
    %259 = vector.broadcast %cst_113 : f32 to vector<16x1xf32>
    %260 = arith.divf %258, %259 : vector<16x1xf32>
    %261 = vector.broadcast %260 : vector<16x1xf32> to vector<16x64xf32>
    %262 = arith.subf %252, %261 : vector<16x64xf32>
    %263 = arith.mulf %262, %262 : vector<16x64xf32>
    %cst_114 = arith.constant dense<0.000000e+00> : vector<16xf32>
    %264 = vector.multi_reduction <add>, %263, %cst_114 [1] : vector<16x64xf32> to vector<16xf32>
    %265 = vector.shape_cast %264 : vector<16xf32> to vector<16x1xf32>
    %cst_115 = arith.constant 6.400000e+01 : f32
    %266 = vector.broadcast %cst_115 : f32 to vector<16x1xf32>
    %267 = arith.divf %265, %266 : vector<16x1xf32>
    %268 = vector.broadcast %260 : vector<16x1xf32> to vector<16x64xf32>
    %269 = arith.subf %252, %268 : vector<16x64xf32>
    %cst_116 = arith.constant 9.99999974E-6 : f32
    %270 = vector.broadcast %cst_116 : f32 to vector<16x1xf32>
    %271 = arith.addf %267, %270 : vector<16x1xf32>
    %272 = math.rsqrt %271 : vector<16x1xf32>
    %273 = vector.broadcast %272 : vector<16x1xf32> to vector<16x64xf32>
    %274 = arith.mulf %269, %273 : vector<16x64xf32>
    %275 = vector.broadcast %254 : vector<1x64xf32> to vector<16x64xf32>
    %276 = arith.mulf %274, %275 : vector<16x64xf32>
    %277 = vector.broadcast %256 : vector<1x64xf32> to vector<16x64xf32>
    %278 = arith.addf %276, %277 : vector<16x64xf32>
    %c1_117 = arith.constant 1 : index
    %c0_118 = arith.constant 0 : index
    %c0_119 = arith.constant 0 : index
    %279 = vector.load %arg12[%c1_117, %c0_118, %c0_119] : memref<2x64x192xf32, #tpu.memory_space<vmem>>, vector<1x64x192xf32>
    %280 = vector.shape_cast %279 : vector<1x64x192xf32> to vector<64x192xf32>
    %cst_120 = arith.constant dense<0.000000e+00> : vector<16x192xf32>
    %281 = tpu.matmul %278, %280, %cst_120 {dimension_numbers = #tpu.dot_dimension_numbers<[1], [0], [0], [1], [0, 0, 1, 1], [], []>} : vector<16x64xf32>, vector<64x192xf32>, vector<16x192xf32> -> vector<16x192xf32>
    %c1_121 = arith.constant 1 : index
    %c0_122 = arith.constant 0 : index
    %c0_123 = arith.constant 0 : index
    %282 = vector.load %arg13[%c1_121, %c0_122, %c0_123] : memref<2x1x192xf32, #tpu.memory_space<vmem>>, vector<1x1x192xf32>
    %283 = vector.shape_cast %282 : vector<1x1x192xf32> to vector<1x192xf32>
    %284 = vector.broadcast %283 : vector<1x192xf32> to vector<16x192xf32>
    %285 = arith.addf %281, %284 : vector<16x192xf32>
    %286 = vector.shape_cast %285 : vector<16x192xf32> to vector<2x8x192xf32>
    %c1_124 = arith.constant 1 : index
    %c0_125 = arith.constant 0 : index
    %c0_126 = arith.constant 0 : index
    %287 = vector.load %arg14[%c1_124, %c0_125, %c0_126] : memref<2x64x64xf32, #tpu.memory_space<vmem>>, vector<1x64x64xf32>
    %288 = vector.shape_cast %287 : vector<1x64x64xf32> to vector<64x64xf32>
    %cst_127 = arith.constant 0.000000e+00 : f32
    %289 = vector.broadcast %cst_127 : f32 to vector<16x64xf32>
    %290 = vector.extract_strided_slice %286 {offsets = [0, 0, 0], sizes = [2, 8, 16], strides = [1, 1, 1]} : vector<2x8x192xf32> to vector<2x8x16xf32>
    %291 = vector.extract_strided_slice %286 {offsets = [0, 0, 64], sizes = [2, 8, 16], strides = [1, 1, 1]} : vector<2x8x192xf32> to vector<2x8x16xf32>
    %292 = vector.extract_strided_slice %286 {offsets = [0, 0, 128], sizes = [2, 8, 16], strides = [1, 1, 1]} : vector<2x8x192xf32> to vector<2x8x16xf32>
    "tpu.trace_start"() <{level = 10 : i32, message = "bqd,bkd->bqk"}> : () -> ()
    %cst_128 = arith.constant dense<0.000000e+00> : vector<2x8x8xf32>
    %293 = tpu.matmul %290, %291, %cst_128 {dimension_numbers = #tpu.dot_dimension_numbers<[2], [2], [1], [1], [0, 0, 0, 1, 1, 1], [0], [0]>} : vector<2x8x16xf32>, vector<2x8x16xf32>, vector<2x8x8xf32> -> vector<2x8x8xf32>
    "tpu.trace_stop"() : () -> ()
    %cst_129 = arith.constant 2.500000e-01 : f32
    %294 = vector.broadcast %cst_129 : f32 to vector<2x8x8xf32>
    %295 = arith.mulf %293, %294 : vector<2x8x8xf32>
    %296 = vector.broadcast %64 : vector<1x8x8xf32> to vector<2x8x8xf32>
    %297 = arith.addf %295, %296 : vector<2x8x8xf32>
    %cst_130 = arith.constant dense<0xFF800000> : vector<2x8xf32>
    %298 = vector.multi_reduction <maximumf>, %297, %cst_130 [2] : vector<2x8x8xf32> to vector<2x8xf32>
    %299 = vector.shape_cast %298 : vector<2x8xf32> to vector<2x8x1xf32>
    %300 = vector.broadcast %299 : vector<2x8x1xf32> to vector<2x8x8xf32>
    %301 = arith.subf %297, %300 : vector<2x8x8xf32>
    %302 = math.exp %301 : vector<2x8x8xf32>
    %cst_131 = arith.constant dense<0.000000e+00> : vector<2x8xf32>
    %303 = vector.multi_reduction <add>, %302, %cst_131 [2] : vector<2x8x8xf32> to vector<2x8xf32>
    %304 = vector.shape_cast %303 : vector<2x8xf32> to vector<2x8x1xf32>
    %305 = tpu.reciprocal %304 {approx = true} : vector<2x8x1xf32> -> vector<2x8x1xf32>
    %306 = vector.broadcast %305 : vector<2x8x1xf32> to vector<2x8x8xf32>
    %307 = arith.mulf %302, %306 : vector<2x8x8xf32>
    "tpu.trace_start"() <{level = 10 : i32, message = "bqk,bkd->bqd"}> : () -> ()
    %cst_132 = arith.constant dense<0.000000e+00> : vector<2x8x16xf32>
    %308 = tpu.matmul %307, %292, %cst_132 {dimension_numbers = #tpu.dot_dimension_numbers<[2], [1], [1], [2], [0, 0, 0, 1, 1, 2], [0], [0]>} : vector<2x8x8xf32>, vector<2x8x16xf32>, vector<2x8x16xf32> -> vector<2x8x16xf32>
    "tpu.trace_stop"() : () -> ()
    %309 = vector.shape_cast %308 : vector<2x8x16xf32> to vector<16x16xf32>
    %310 = vector.extract_strided_slice %288 {offsets = [0, 0], sizes = [16, 64], strides = [1, 1]} : vector<64x64xf32> to vector<16x64xf32>
    %cst_133 = arith.constant dense<0.000000e+00> : vector<16x64xf32>
    %311 = tpu.matmul %309, %310, %cst_133 {dimension_numbers = #tpu.dot_dimension_numbers<[1], [0], [0], [1], [0, 0, 1, 1], [], []>} : vector<16x16xf32>, vector<16x64xf32>, vector<16x64xf32> -> vector<16x64xf32>
    %312 = arith.addf %289, %311 : vector<16x64xf32>
    %313 = vector.extract_strided_slice %286 {offsets = [0, 0, 16], sizes = [2, 8, 16], strides = [1, 1, 1]} : vector<2x8x192xf32> to vector<2x8x16xf32>
    %314 = vector.extract_strided_slice %286 {offsets = [0, 0, 80], sizes = [2, 8, 16], strides = [1, 1, 1]} : vector<2x8x192xf32> to vector<2x8x16xf32>
    %315 = vector.extract_strided_slice %286 {offsets = [0, 0, 144], sizes = [2, 8, 16], strides = [1, 1, 1]} : vector<2x8x192xf32> to vector<2x8x16xf32>
    "tpu.trace_start"() <{level = 10 : i32, message = "bqd,bkd->bqk"}> : () -> ()
    %cst_134 = arith.constant dense<0.000000e+00> : vector<2x8x8xf32>
    %316 = tpu.matmul %313, %314, %cst_134 {dimension_numbers = #tpu.dot_dimension_numbers<[2], [2], [1], [1], [0, 0, 0, 1, 1, 1], [0], [0]>} : vector<2x8x16xf32>, vector<2x8x16xf32>, vector<2x8x8xf32> -> vector<2x8x8xf32>
    "tpu.trace_stop"() : () -> ()
    %cst_135 = arith.constant 2.500000e-01 : f32
    %317 = vector.broadcast %cst_135 : f32 to vector<2x8x8xf32>
    %318 = arith.mulf %316, %317 : vector<2x8x8xf32>
    %319 = vector.broadcast %64 : vector<1x8x8xf32> to vector<2x8x8xf32>
    %320 = arith.addf %318, %319 : vector<2x8x8xf32>
    %cst_136 = arith.constant dense<0xFF800000> : vector<2x8xf32>
    %321 = vector.multi_reduction <maximumf>, %320, %cst_136 [2] : vector<2x8x8xf32> to vector<2x8xf32>
    %322 = vector.shape_cast %321 : vector<2x8xf32> to vector<2x8x1xf32>
    %323 = vector.broadcast %322 : vector<2x8x1xf32> to vector<2x8x8xf32>
    %324 = arith.subf %320, %323 : vector<2x8x8xf32>
    %325 = math.exp %324 : vector<2x8x8xf32>
    %cst_137 = arith.constant dense<0.000000e+00> : vector<2x8xf32>
    %326 = vector.multi_reduction <add>, %325, %cst_137 [2] : vector<2x8x8xf32> to vector<2x8xf32>
    %327 = vector.shape_cast %326 : vector<2x8xf32> to vector<2x8x1xf32>
    %328 = tpu.reciprocal %327 {approx = true} : vector<2x8x1xf32> -> vector<2x8x1xf32>
    %329 = vector.broadcast %328 : vector<2x8x1xf32> to vector<2x8x8xf32>
    %330 = arith.mulf %325, %329 : vector<2x8x8xf32>
    "tpu.trace_start"() <{level = 10 : i32, message = "bqk,bkd->bqd"}> : () -> ()
    %cst_138 = arith.constant dense<0.000000e+00> : vector<2x8x16xf32>
    %331 = tpu.matmul %330, %315, %cst_138 {dimension_numbers = #tpu.dot_dimension_numbers<[2], [1], [1], [2], [0, 0, 0, 1, 1, 2], [0], [0]>} : vector<2x8x8xf32>, vector<2x8x16xf32>, vector<2x8x16xf32> -> vector<2x8x16xf32>
    "tpu.trace_stop"() : () -> ()
    %332 = vector.shape_cast %331 : vector<2x8x16xf32> to vector<16x16xf32>
    %333 = vector.extract_strided_slice %288 {offsets = [16, 0], sizes = [16, 64], strides = [1, 1]} : vector<64x64xf32> to vector<16x64xf32>
    %cst_139 = arith.constant dense<0.000000e+00> : vector<16x64xf32>
    %334 = tpu.matmul %332, %333, %cst_139 {dimension_numbers = #tpu.dot_dimension_numbers<[1], [0], [0], [1], [0, 0, 1, 1], [], []>} : vector<16x16xf32>, vector<16x64xf32>, vector<16x64xf32> -> vector<16x64xf32>
    %335 = arith.addf %312, %334 : vector<16x64xf32>
    %336 = vector.extract_strided_slice %286 {offsets = [0, 0, 32], sizes = [2, 8, 16], strides = [1, 1, 1]} : vector<2x8x192xf32> to vector<2x8x16xf32>
    %337 = vector.extract_strided_slice %286 {offsets = [0, 0, 96], sizes = [2, 8, 16], strides = [1, 1, 1]} : vector<2x8x192xf32> to vector<2x8x16xf32>
    %338 = vector.extract_strided_slice %286 {offsets = [0, 0, 160], sizes = [2, 8, 16], strides = [1, 1, 1]} : vector<2x8x192xf32> to vector<2x8x16xf32>
    "tpu.trace_start"() <{level = 10 : i32, message = "bqd,bkd->bqk"}> : () -> ()
    %cst_140 = arith.constant dense<0.000000e+00> : vector<2x8x8xf32>
    %339 = tpu.matmul %336, %337, %cst_140 {dimension_numbers = #tpu.dot_dimension_numbers<[2], [2], [1], [1], [0, 0, 0, 1, 1, 1], [0], [0]>} : vector<2x8x16xf32>, vector<2x8x16xf32>, vector<2x8x8xf32> -> vector<2x8x8xf32>
    "tpu.trace_stop"() : () -> ()
    %cst_141 = arith.constant 2.500000e-01 : f32
    %340 = vector.broadcast %cst_141 : f32 to vector<2x8x8xf32>
    %341 = arith.mulf %339, %340 : vector<2x8x8xf32>
    %342 = vector.broadcast %64 : vector<1x8x8xf32> to vector<2x8x8xf32>
    %343 = arith.addf %341, %342 : vector<2x8x8xf32>
    %cst_142 = arith.constant dense<0xFF800000> : vector<2x8xf32>
    %344 = vector.multi_reduction <maximumf>, %343, %cst_142 [2] : vector<2x8x8xf32> to vector<2x8xf32>
    %345 = vector.shape_cast %344 : vector<2x8xf32> to vector<2x8x1xf32>
    %346 = vector.broadcast %345 : vector<2x8x1xf32> to vector<2x8x8xf32>
    %347 = arith.subf %343, %346 : vector<2x8x8xf32>
    %348 = math.exp %347 : vector<2x8x8xf32>
    %cst_143 = arith.constant dense<0.000000e+00> : vector<2x8xf32>
    %349 = vector.multi_reduction <add>, %348, %cst_143 [2] : vector<2x8x8xf32> to vector<2x8xf32>
    %350 = vector.shape_cast %349 : vector<2x8xf32> to vector<2x8x1xf32>
    %351 = tpu.reciprocal %350 {approx = true} : vector<2x8x1xf32> -> vector<2x8x1xf32>
    %352 = vector.broadcast %351 : vector<2x8x1xf32> to vector<2x8x8xf32>
    %353 = arith.mulf %348, %352 : vector<2x8x8xf32>
    "tpu.trace_start"() <{level = 10 : i32, message = "bqk,bkd->bqd"}> : () -> ()
    %cst_144 = arith.constant dense<0.000000e+00> : vector<2x8x16xf32>
    %354 = tpu.matmul %353, %338, %cst_144 {dimension_numbers = #tpu.dot_dimension_numbers<[2], [1], [1], [2], [0, 0, 0, 1, 1, 2], [0], [0]>} : vector<2x8x8xf32>, vector<2x8x16xf32>, vector<2x8x16xf32> -> vector<2x8x16xf32>
    "tpu.trace_stop"() : () -> ()
    %355 = vector.shape_cast %354 : vector<2x8x16xf32> to vector<16x16xf32>
    %356 = vector.extract_strided_slice %288 {offsets = [32, 0], sizes = [16, 64], strides = [1, 1]} : vector<64x64xf32> to vector<16x64xf32>
    %cst_145 = arith.constant dense<0.000000e+00> : vector<16x64xf32>
    %357 = tpu.matmul %355, %356, %cst_145 {dimension_numbers = #tpu.dot_dimension_numbers<[1], [0], [0], [1], [0, 0, 1, 1], [], []>} : vector<16x16xf32>, vector<16x64xf32>, vector<16x64xf32> -> vector<16x64xf32>
    %358 = arith.addf %335, %357 : vector<16x64xf32>
    %359 = vector.extract_strided_slice %286 {offsets = [0, 0, 48], sizes = [2, 8, 16], strides = [1, 1, 1]} : vector<2x8x192xf32> to vector<2x8x16xf32>
    %360 = vector.extract_strided_slice %286 {offsets = [0, 0, 112], sizes = [2, 8, 16], strides = [1, 1, 1]} : vector<2x8x192xf32> to vector<2x8x16xf32>
    %361 = vector.extract_strided_slice %286 {offsets = [0, 0, 176], sizes = [2, 8, 16], strides = [1, 1, 1]} : vector<2x8x192xf32> to vector<2x8x16xf32>
    "tpu.trace_start"() <{level = 10 : i32, message = "bqd,bkd->bqk"}> : () -> ()
    %cst_146 = arith.constant dense<0.000000e+00> : vector<2x8x8xf32>
    %362 = tpu.matmul %359, %360, %cst_146 {dimension_numbers = #tpu.dot_dimension_numbers<[2], [2], [1], [1], [0, 0, 0, 1, 1, 1], [0], [0]>} : vector<2x8x16xf32>, vector<2x8x16xf32>, vector<2x8x8xf32> -> vector<2x8x8xf32>
    "tpu.trace_stop"() : () -> ()
    %cst_147 = arith.constant 2.500000e-01 : f32
    %363 = vector.broadcast %cst_147 : f32 to vector<2x8x8xf32>
    %364 = arith.mulf %362, %363 : vector<2x8x8xf32>
    %365 = vector.broadcast %64 : vector<1x8x8xf32> to vector<2x8x8xf32>
    %366 = arith.addf %364, %365 : vector<2x8x8xf32>
    %cst_148 = arith.constant dense<0xFF800000> : vector<2x8xf32>
    %367 = vector.multi_reduction <maximumf>, %366, %cst_148 [2] : vector<2x8x8xf32> to vector<2x8xf32>
    %368 = vector.shape_cast %367 : vector<2x8xf32> to vector<2x8x1xf32>
    %369 = vector.broadcast %368 : vector<2x8x1xf32> to vector<2x8x8xf32>
    %370 = arith.subf %366, %369 : vector<2x8x8xf32>
    %371 = math.exp %370 : vector<2x8x8xf32>
    %cst_149 = arith.constant dense<0.000000e+00> : vector<2x8xf32>
    %372 = vector.multi_reduction <add>, %371, %cst_149 [2] : vector<2x8x8xf32> to vector<2x8xf32>
    %373 = vector.shape_cast %372 : vector<2x8xf32> to vector<2x8x1xf32>
    %374 = tpu.reciprocal %373 {approx = true} : vector<2x8x1xf32> -> vector<2x8x1xf32>
    %375 = vector.broadcast %374 : vector<2x8x1xf32> to vector<2x8x8xf32>
    %376 = arith.mulf %371, %375 : vector<2x8x8xf32>
    "tpu.trace_start"() <{level = 10 : i32, message = "bqk,bkd->bqd"}> : () -> ()
    %cst_150 = arith.constant dense<0.000000e+00> : vector<2x8x16xf32>
    %377 = tpu.matmul %376, %361, %cst_150 {dimension_numbers = #tpu.dot_dimension_numbers<[2], [1], [1], [2], [0, 0, 0, 1, 1, 2], [0], [0]>} : vector<2x8x8xf32>, vector<2x8x16xf32>, vector<2x8x16xf32> -> vector<2x8x16xf32>
    "tpu.trace_stop"() : () -> ()
    %378 = vector.shape_cast %377 : vector<2x8x16xf32> to vector<16x16xf32>
    %379 = vector.extract_strided_slice %288 {offsets = [48, 0], sizes = [16, 64], strides = [1, 1]} : vector<64x64xf32> to vector<16x64xf32>
    %cst_151 = arith.constant dense<0.000000e+00> : vector<16x64xf32>
    %380 = tpu.matmul %378, %379, %cst_151 {dimension_numbers = #tpu.dot_dimension_numbers<[1], [0], [0], [1], [0, 0, 1, 1], [], []>} : vector<16x16xf32>, vector<16x64xf32>, vector<16x64xf32> -> vector<16x64xf32>
    %381 = arith.addf %358, %380 : vector<16x64xf32>
    %382 = arith.addf %252, %381 : vector<16x64xf32>
    %c1_152 = arith.constant 1 : index
    %c0_153 = arith.constant 0 : index
    %c0_154 = arith.constant 0 : index
    %383 = vector.load %arg15[%c1_152, %c0_153, %c0_154] : memref<2x1x64xf32, #tpu.memory_space<vmem>>, vector<1x1x64xf32>
    %384 = vector.shape_cast %383 : vector<1x1x64xf32> to vector<1x64xf32>
    %385 = vector.broadcast %384 : vector<1x64xf32> to vector<16x64xf32>
    %386 = arith.addf %382, %385 : vector<16x64xf32>
    %c1_155 = arith.constant 1 : index
    %c0_156 = arith.constant 0 : index
    %c0_157 = arith.constant 0 : index
    %387 = vector.load %arg16[%c1_155, %c0_156, %c0_157] : memref<2x1x64xf32, #tpu.memory_space<vmem>>, vector<1x1x64xf32>
    %388 = vector.shape_cast %387 : vector<1x1x64xf32> to vector<1x64xf32>
    %c1_158 = arith.constant 1 : index
    %c0_159 = arith.constant 0 : index
    %c0_160 = arith.constant 0 : index
    %389 = vector.load %arg17[%c1_158, %c0_159, %c0_160] : memref<2x1x64xf32, #tpu.memory_space<vmem>>, vector<1x1x64xf32>
    %390 = vector.shape_cast %389 : vector<1x1x64xf32> to vector<1x64xf32>
    %cst_161 = arith.constant dense<0.000000e+00> : vector<16xf32>
    %391 = vector.multi_reduction <add>, %386, %cst_161 [1] : vector<16x64xf32> to vector<16xf32>
    %392 = vector.shape_cast %391 : vector<16xf32> to vector<16x1xf32>
    %cst_162 = arith.constant 6.400000e+01 : f32
    %393 = vector.broadcast %cst_162 : f32 to vector<16x1xf32>
    %394 = arith.divf %392, %393 : vector<16x1xf32>
    %395 = vector.broadcast %394 : vector<16x1xf32> to vector<16x64xf32>
    %396 = arith.subf %386, %395 : vector<16x64xf32>
    %397 = arith.mulf %396, %396 : vector<16x64xf32>
    %cst_163 = arith.constant dense<0.000000e+00> : vector<16xf32>
    %398 = vector.multi_reduction <add>, %397, %cst_163 [1] : vector<16x64xf32> to vector<16xf32>
    %399 = vector.shape_cast %398 : vector<16xf32> to vector<16x1xf32>
    %cst_164 = arith.constant 6.400000e+01 : f32
    %400 = vector.broadcast %cst_164 : f32 to vector<16x1xf32>
    %401 = arith.divf %399, %400 : vector<16x1xf32>
    %402 = vector.broadcast %394 : vector<16x1xf32> to vector<16x64xf32>
    %403 = arith.subf %386, %402 : vector<16x64xf32>
    %cst_165 = arith.constant 9.99999974E-6 : f32
    %404 = vector.broadcast %cst_165 : f32 to vector<16x1xf32>
    %405 = arith.addf %401, %404 : vector<16x1xf32>
    %406 = math.rsqrt %405 : vector<16x1xf32>
    %407 = vector.broadcast %406 : vector<16x1xf32> to vector<16x64xf32>
    %408 = arith.mulf %403, %407 : vector<16x64xf32>
    %409 = vector.broadcast %388 : vector<1x64xf32> to vector<16x64xf32>
    %410 = arith.mulf %408, %409 : vector<16x64xf32>
    %411 = vector.broadcast %390 : vector<1x64xf32> to vector<16x64xf32>
    %412 = arith.addf %410, %411 : vector<16x64xf32>
    %c1_166 = arith.constant 1 : index
    %c0_167 = arith.constant 0 : index
    %c0_168 = arith.constant 0 : index
    %413 = vector.load %arg18[%c1_166, %c0_167, %c0_168] : memref<2x64x128xf32, #tpu.memory_space<vmem>>, vector<1x64x128xf32>
    %414 = vector.shape_cast %413 : vector<1x64x128xf32> to vector<64x128xf32>
    %cst_169 = arith.constant dense<0.000000e+00> : vector<16x128xf32>
    %415 = tpu.matmul %412, %414, %cst_169 {dimension_numbers = #tpu.dot_dimension_numbers<[1], [0], [0], [1], [0, 0, 1, 1], [], []>} : vector<16x64xf32>, vector<64x128xf32>, vector<16x128xf32> -> vector<16x128xf32>
    %c1_170 = arith.constant 1 : index
    %c0_171 = arith.constant 0 : index
    %c0_172 = arith.constant 0 : index
    %416 = vector.load %arg19[%c1_170, %c0_171, %c0_172] : memref<2x1x128xf32, #tpu.memory_space<vmem>>, vector<1x1x128xf32>
    %417 = vector.shape_cast %416 : vector<1x1x128xf32> to vector<1x128xf32>
    %418 = vector.broadcast %417 : vector<1x128xf32> to vector<16x128xf32>
    %419 = arith.addf %415, %418 : vector<16x128xf32>
    %cst_173 = arith.constant 5.000000e-01 : f32
    %420 = vector.broadcast %cst_173 : f32 to vector<16x128xf32>
    %421 = arith.mulf %420, %419 : vector<16x128xf32>
    %cst_174 = arith.constant 4.471500e-02 : f32
    %422 = vector.broadcast %cst_174 : f32 to vector<16x128xf32>
    %423 = arith.mulf %422, %419 : vector<16x128xf32>
    %424 = arith.mulf %423, %419 : vector<16x128xf32>
    %425 = arith.mulf %424, %419 : vector<16x128xf32>
    %426 = arith.addf %419, %425 : vector<16x128xf32>
    %cst_175 = arith.constant 0.797884583 : f32
    %427 = vector.broadcast %cst_175 : f32 to vector<16x128xf32>
    %428 = arith.mulf %427, %426 : vector<16x128xf32>
    %429 = math.tanh %428 : vector<16x128xf32>
    %cst_176 = arith.constant 1.000000e+00 : f32
    %430 = vector.broadcast %cst_176 : f32 to vector<16x128xf32>
    %431 = arith.addf %430, %429 : vector<16x128xf32>
    %432 = arith.mulf %421, %431 : vector<16x128xf32>
    %c1_177 = arith.constant 1 : index
    %c0_178 = arith.constant 0 : index
    %c0_179 = arith.constant 0 : index
    %433 = vector.load %arg20[%c1_177, %c0_178, %c0_179] : memref<2x128x64xf32, #tpu.memory_space<vmem>>, vector<1x128x64xf32>
    %434 = vector.shape_cast %433 : vector<1x128x64xf32> to vector<128x64xf32>
    %cst_180 = arith.constant dense<0.000000e+00> : vector<16x64xf32>
    %435 = tpu.matmul %432, %434, %cst_180 {dimension_numbers = #tpu.dot_dimension_numbers<[1], [0], [0], [1], [0, 0, 1, 1], [], []>} : vector<16x128xf32>, vector<128x64xf32>, vector<16x64xf32> -> vector<16x64xf32>
    %436 = arith.addf %386, %435 : vector<16x64xf32>
    %c1_181 = arith.constant 1 : index
    %c0_182 = arith.constant 0 : index
    %c0_183 = arith.constant 0 : index
    %437 = vector.load %arg21[%c1_181, %c0_182, %c0_183] : memref<2x1x64xf32, #tpu.memory_space<vmem>>, vector<1x1x64xf32>
    %438 = vector.shape_cast %437 : vector<1x1x64xf32> to vector<1x64xf32>
    %439 = vector.broadcast %438 : vector<1x64xf32> to vector<16x64xf32>
    %440 = arith.addf %436, %439 : vector<16x64xf32>
    %441 = vector.extract_strided_slice %440 {offsets = [0, 0], sizes = [1, 64], strides = [1, 1]} : vector<16x64xf32> to vector<1x64xf32>
    %442 = vector.extract_strided_slice %440 {offsets = [8, 0], sizes = [1, 64], strides = [1, 1]} : vector<16x64xf32> to vector<1x64xf32>
    %443 = tpu.concatenate %441, %442 in 0 : vector<1x64xf32>, vector<1x64xf32> -> vector<2x64xf32>
    %c0_184 = arith.constant 0 : index
    %c0_185 = arith.constant 0 : index
    %444 = vector.load %arg22[%c0_184, %c0_185] : memref<1x64xf32, #tpu.memory_space<vmem>>, vector<1x64xf32>
    %c0_186 = arith.constant 0 : index
    %c0_187 = arith.constant 0 : index
    %445 = vector.load %arg23[%c0_186, %c0_187] : memref<1x64xf32, #tpu.memory_space<vmem>>, vector<1x64xf32>
    %cst_188 = arith.constant dense<0.000000e+00> : vector<2xf32>
    %446 = vector.multi_reduction <add>, %443, %cst_188 [1] : vector<2x64xf32> to vector<2xf32>
    %447 = vector.shape_cast %446 : vector<2xf32> to vector<2x1xf32>
    %cst_189 = arith.constant 6.400000e+01 : f32
    %448 = vector.broadcast %cst_189 : f32 to vector<2x1xf32>
    %449 = arith.divf %447, %448 : vector<2x1xf32>
    %450 = vector.broadcast %449 : vector<2x1xf32> to vector<2x64xf32>
    %451 = arith.subf %443, %450 : vector<2x64xf32>
    %452 = arith.mulf %451, %451 : vector<2x64xf32>
    %cst_190 = arith.constant dense<0.000000e+00> : vector<2xf32>
    %453 = vector.multi_reduction <add>, %452, %cst_190 [1] : vector<2x64xf32> to vector<2xf32>
    %454 = vector.shape_cast %453 : vector<2xf32> to vector<2x1xf32>
    %cst_191 = arith.constant 6.400000e+01 : f32
    %455 = vector.broadcast %cst_191 : f32 to vector<2x1xf32>
    %456 = arith.divf %454, %455 : vector<2x1xf32>
    %457 = vector.broadcast %449 : vector<2x1xf32> to vector<2x64xf32>
    %458 = arith.subf %443, %457 : vector<2x64xf32>
    %cst_192 = arith.constant 9.99999974E-6 : f32
    %459 = vector.broadcast %cst_192 : f32 to vector<2x1xf32>
    %460 = arith.addf %456, %459 : vector<2x1xf32>
    %461 = math.rsqrt %460 : vector<2x1xf32>
    %462 = vector.broadcast %461 : vector<2x1xf32> to vector<2x64xf32>
    %463 = arith.mulf %458, %462 : vector<2x64xf32>
    %464 = vector.broadcast %444 : vector<1x64xf32> to vector<2x64xf32>
    %465 = arith.mulf %463, %464 : vector<2x64xf32>
    %466 = vector.broadcast %445 : vector<1x64xf32> to vector<2x64xf32>
    %467 = arith.addf %465, %466 : vector<2x64xf32>
    %c0_193 = arith.constant 0 : index
    %c0_194 = arith.constant 0 : index
    %468 = vector.load %arg24[%c0_193, %c0_194] : memref<64x128xf32, #tpu.memory_space<vmem>>, vector<64x128xf32>
    %cst_195 = arith.constant dense<0.000000e+00> : vector<2x128xf32>
    %469 = tpu.matmul %467, %468, %cst_195 {dimension_numbers = #tpu.dot_dimension_numbers<[1], [0], [0], [1], [0, 0, 1, 1], [], []>} : vector<2x64xf32>, vector<64x128xf32>, vector<2x128xf32> -> vector<2x128xf32>
    %c0_196 = arith.constant 0 : index
    %c0_197 = arith.constant 0 : index
    %470 = vector.load %arg25[%c0_196, %c0_197] : memref<1x128xf32, #tpu.memory_space<vmem>>, vector<1x128xf32>
    %471 = vector.broadcast %470 : vector<1x128xf32> to vector<2x128xf32>
    %472 = arith.addf %469, %471 : vector<2x128xf32>
    %c0_198 = arith.constant 0 : index
    %c0_199 = arith.constant 0 : index
    %473 = vector.load %arg26[%c0_198, %c0_199] : memref<2x128xf32, #tpu.memory_space<vmem>>, vector<2x128xf32>
    tpu.vector_store %arg26[%c0_198, %c0_199], %472 {strides = array<i32>} : memref<2x128xf32, #tpu.memory_space<vmem>>, vector<2x128xf32>,
    return
  }
  func.func @transform_0(%arg0: i32) -> (i32, i32) {
    %c0_i32 = arith.constant 0 : i32
    %c0_i32_0 = arith.constant 0 : i32
    %c0_i32_1 = arith.constant 0 : i32
    return %c0_i32, %c0_i32_0 : i32, i32
  }
  func.func @transform_1(%arg0: i32) -> (i32, i32) {
    %c0_i32 = arith.constant 0 : i32
    %c0_i32_0 = arith.constant 0 : i32
    %c0_i32_1 = arith.constant 0 : i32
    return %c0_i32, %c0_i32_0 : i32, i32
  }
  func.func @transform_2(%arg0: i32) -> (i32, i32) {
    %c0_i32 = arith.constant 0 : i32
    %c0_i32_0 = arith.constant 0 : i32
    %c0_i32_1 = arith.constant 0 : i32
    return %c0_i32, %c0_i32_0 : i32, i32
  }
  func.func @transform_3(%arg0: i32) -> (i32, i32) {
    %c0_i32 = arith.constant 0 : i32
    %c0_i32_0 = arith.constant 0 : i32
    %c0_i32_1 = arith.constant 0 : i32
    return %c0_i32, %c0_i32_0 : i32, i32
  }
  func.func @transform_4(%arg0: i32) -> (i32, i32) {
    %c0_i32 = arith.constant 0 : i32
    %c0_i32_0 = arith.constant 0 : i32
    %c0_i32_1 = arith.constant 0 : i32
    return %c0_i32, %c0_i32_0 : i32, i32
  }
  func.func @transform_5(%arg0: i32) -> (i32, i32) {
    %c0_i32 = arith.constant 0 : i32
    %c0_i32_0 = arith.constant 0 : i32
    %c0_i32_1 = arith.constant 0 : i32
    return %c0_i32, %c0_i32_0 : i32, i32
  }
  func.func @transform_6(%arg0: i32) -> (i32, i32) {
    %c0_i32 = arith.constant 0 : i32
    %c0_i32_0 = arith.constant 0 : i32
    %c0_i32_1 = arith.constant 0 : i32
    return %c0_i32, %c0_i32_0 : i32, i32
  }
  func.func @transform_7(%arg0: i32) -> (i32, i32) {
    %c0_i32 = arith.constant 0 : i32
    %c0_i32_0 = arith.constant 0 : i32
    %c0_i32_1 = arith.constant 0 : i32
    return %c0_i32, %c0_i32_0 : i32, i32
  }
  func.func @transform_8(%arg0: i32) -> (i32, i32) {
    %c0_i32 = arith.constant 0 : i32
    %c0_i32_0 = arith.constant 0 : i32
    %c0_i32_1 = arith.constant 0 : i32
    return %c0_i32, %c0_i32_0 : i32, i32
  }
  func.func @transform_9(%arg0: i32) -> (i32, i32, i32) {
    %c0_i32 = arith.constant 0 : i32
    %c0_i32_0 = arith.constant 0 : i32
    %c0_i32_1 = arith.constant 0 : i32
    %c0_i32_2 = arith.constant 0 : i32
    return %c0_i32, %c0_i32_0, %c0_i32_1 : i32, i32, i32
  }
  func.func @transform_10(%arg0: i32) -> (i32, i32, i32) {
    %c0_i32 = arith.constant 0 : i32
    %c0_i32_0 = arith.constant 0 : i32
    %c0_i32_1 = arith.constant 0 : i32
    %c0_i32_2 = arith.constant 0 : i32
    return %c0_i32, %c0_i32_0, %c0_i32_1 : i32, i32, i32
  }
  func.func @transform_11(%arg0: i32) -> (i32, i32, i32) {
    %c0_i32 = arith.constant 0 : i32
    %c0_i32_0 = arith.constant 0 : i32
    %c0_i32_1 = arith.constant 0 : i32
    %c0_i32_2 = arith.constant 0 : i32
    return %c0_i32, %c0_i32_0, %c0_i32_1 : i32, i32, i32
  }
  func.func @transform_12(%arg0: i32) -> (i32, i32, i32) {
    %c0_i32 = arith.constant 0 : i32
    %c0_i32_0 = arith.constant 0 : i32
    %c0_i32_1 = arith.constant 0 : i32
    %c0_i32_2 = arith.constant 0 : i32
    return %c0_i32, %c0_i32_0, %c0_i32_1 : i32, i32, i32
  }
  func.func @transform_13(%arg0: i32) -> (i32, i32, i32) {
    %c0_i32 = arith.constant 0 : i32
    %c0_i32_0 = arith.constant 0 : i32
    %c0_i32_1 = arith.constant 0 : i32
    %c0_i32_2 = arith.constant 0 : i32
    return %c0_i32, %c0_i32_0, %c0_i32_1 : i32, i32, i32
  }
  func.func @transform_14(%arg0: i32) -> (i32, i32, i32) {
    %c0_i32 = arith.constant 0 : i32
    %c0_i32_0 = arith.constant 0 : i32
    %c0_i32_1 = arith.constant 0 : i32
    %c0_i32_2 = arith.constant 0 : i32
    return %c0_i32, %c0_i32_0, %c0_i32_1 : i32, i32, i32
  }
  func.func @transform_15(%arg0: i32) -> (i32, i32, i32) {
    %c0_i32 = arith.constant 0 : i32
    %c0_i32_0 = arith.constant 0 : i32
    %c0_i32_1 = arith.constant 0 : i32
    %c0_i32_2 = arith.constant 0 : i32
    return %c0_i32, %c0_i32_0, %c0_i32_1 : i32, i32, i32
  }
  func.func @transform_16(%arg0: i32) -> (i32, i32, i32) {
    %c0_i32 = arith.constant 0 : i32
    %c0_i32_0 = arith.constant 0 : i32
    %c0_i32_1 = arith.constant 0 : i32
    %c0_i32_2 = arith.constant 0 : i32
    return %c0_i32, %c0_i32_0, %c0_i32_1 : i32, i32, i32
  }
  func.func @transform_17(%arg0: i32) -> (i32, i32, i32) {
    %c0_i32 = arith.constant 0 : i32
    %c0_i32_0 = arith.constant 0 : i32
    %c0_i32_1 = arith.constant 0 : i32
    %c0_i32_2 = arith.constant 0 : i32
    return %c0_i32, %c0_i32_0, %c0_i32_1 : i32, i32, i32
  }
  func.func @transform_18(%arg0: i32) -> (i32, i32, i32) {
    %c0_i32 = arith.constant 0 : i32
    %c0_i32_0 = arith.constant 0 : i32
    %c0_i32_1 = arith.constant 0 : i32
    %c0_i32_2 = arith.constant 0 : i32
    return %c0_i32, %c0_i32_0, %c0_i32_1 : i32, i32, i32
  }
  func.func @transform_19(%arg0: i32) -> (i32, i32, i32) {
    %c0_i32 = arith.constant 0 : i32
    %c0_i32_0 = arith.constant 0 : i32
    %c0_i32_1 = arith.constant 0 : i32
    %c0_i32_2 = arith.constant 0 : i32
    return %c0_i32, %c0_i32_0, %c0_i32_1 : i32, i32, i32
  }
  func.func @transform_20(%arg0: i32) -> (i32, i32, i32) {
    %c0_i32 = arith.constant 0 : i32
    %c0_i32_0 = arith.constant 0 : i32
    %c0_i32_1 = arith.constant 0 : i32
    %c0_i32_2 = arith.constant 0 : i32
    return %c0_i32, %c0_i32_0, %c0_i32_1 : i32, i32, i32
  }
  func.func @transform_21(%arg0: i32) -> (i32, i32) {
    %c0_i32 = arith.constant 0 : i32
    %c0_i32_0 = arith.constant 0 : i32
    %c0_i32_1 = arith.constant 0 : i32
    return %c0_i32, %c0_i32_0 : i32, i32
  }
  func.func @transform_22(%arg0: i32) -> (i32, i32) {
    %c0_i32 = arith.constant 0 : i32
    %c0_i32_0 = arith.constant 0 : i32
    %c0_i32_1 = arith.constant 0 : i32
    return %c0_i32, %c0_i32_0 : i32, i32
  }
  func.func @transform_23(%arg0: i32) -> (i32, i32) {
    %c0_i32 = arith.constant 0 : i32
    %c0_i32_0 = arith.constant 0 : i32
    %c0_i32_1 = arith.constant 0 : i32
    return %c0_i32, %c0_i32_0 : i32, i32
  }
  func.func @transform_24(%arg0: i32) -> (i32, i32) {
    %c0_i32 = arith.constant 0 : i32
    %c0_i32_0 = arith.constant 0 : i32
    %c0_i32_1 = arith.constant 0 : i32
    return %c0_i32, %c0_i32_0 : i32, i32
  }
  func.func @transform_25(%arg0: i32) -> (i32, i32) {
    %c0_i32 = arith.constant 0 : i32
    %c0_i32_0 = arith.constant 0 : i32
    %c0_i32_1 = arith.constant 0 : i32
    return %c0_i32, %c0_i32_0 : i32, i32
  }
}

</mosaic_0001>

<llo_original>
// kernel: vit_forward.1
$region0: #{vit_forward.1}
  #allocation0 [shape = 'u32[]', space=smem, size = 0x4, offset = 0x4, fixed_abs, tag = 'smem constant byte address 0x4 - core index']
  #allocation1 [shape = 'u32[144,128]{1,0:T(1,128)}', space=vmem, size = 0x12000, scoped, tag = 'internal scratch']
  %s0 = inlined_call_operand.vmem [shape: f32[16,192], index: 0, kind: input, shape index: {}]
  %s1 = inlined_call_operand.vmem [shape: f32[16,1], index: 1, kind: input, shape index: {}]
  %s2 = inlined_call_operand.vmem [shape: f32[16,64], index: 2, kind: input, shape index: {}]
  %s3 = inlined_call_operand.vmem [shape: f32[1,192], index: 3, kind: input, shape index: {}]
  %s4 = inlined_call_operand.vmem [shape: f32[1,192], index: 4, kind: input, shape index: {}]
  %s5 = inlined_call_operand.vmem [shape: f32[192,64], index: 5, kind: input, shape index: {}]
  %s6 = inlined_call_operand.vmem [shape: f32[1,64], index: 6, kind: input, shape index: {}]
  %s7 = inlined_call_operand.vmem [shape: f32[1,64], index: 7, kind: input, shape index: {}]
  %s8 = inlined_call_operand.vmem [shape: f32[1,64], index: 8, kind: input, shape index: {}]
  %s9 = inlined_call_operand.vmem [shape: f32[2,1,64], index: 9, kind: input, shape index: {}]
  %s10 = inlined_call_operand.vmem [shape: f32[2,1,64], index: 10, kind: input, shape index: {}]
  %s11 = inlined_call_operand.vmem [shape: f32[2,64,192], index: 11, kind: input, shape index: {}]
  %s12 = inlined_call_operand.vmem [shape: f32[2,1,192], index: 12, kind: input, shape index: {}]
  %s13 = inlined_call_operand.vmem [shape: f32[2,64,64], index: 13, kind: input, shape index: {}]
  %s14 = inlined_call_operand.vmem [shape: f32[2,1,64], index: 14, kind: input, shape index: {}]
  %s15 = inlined_call_operand.vmem [shape: f32[2,1,64], index: 15, kind: input, shape index: {}]
  %s16 = inlined_call_operand.vmem [shape: f32[2,1,64], index: 16, kind: input, shape index: {}]
  %s17 = inlined_call_operand.vmem [shape: f32[2,64,128], index: 17, kind: input, shape index: {}]
  %s18 = inlined_call_operand.vmem [shape: f32[2,1,128], index: 18, kind: input, shape index: {}]
  %s19 = inlined_call_operand.vmem [shape: f32[2,128,64], index: 19, kind: input, shape index: {}]
  %s20 = inlined_call_operand.vmem [shape: f32[2,1,64], index: 20, kind: input, shape index: {}]
  %s21 = inlined_call_operand.vmem [shape: f32[1,64], index: 21, kind: input, shape index: {}]
  %s22 = inlined_call_operand.vmem [shape: f32[1,64], index: 22, kind: input, shape index: {}]
  %s23 = inlined_call_operand.vmem [shape: f32[64,128], index: 23, kind: input, shape index: {}]
  %s24 = inlined_call_operand.vmem [shape: f32[1,128], index: 24, kind: input, shape index: {}]
  %s25 = inlined_call_operand.hbm [shape: f32[2,128], index: 25, kind: output, shape index: {}]
  %s26 = sld [smem:[#allocation0]]
  $region110: #{vit_forward.1} parent=0
    _
  %s28 = ssub.s32 1, %s26
  %s29 = scalar_select 0, %s28, %s26
  $region1: #{vit_forward.1} parent=0
    #allocation2 [shape = 'u8[1024]{0}', space=vmem, size = 0x400, scoped, tag = 'output window, operand 0, single buffered']
    #allocation3 [shape = 's32[1]{0}', space=sflag, size = 0x4, scoped, tag = 'scoped memory for vit_forward.1']
    %30 = vsyncpa [#allocation3], 0
    // Predicated region
    $region2: #{vit_forward.1} parent=1 // pred_check
      _
    $region3: #{vit_forward.1} parent=1 // pred_check_branch
      %32 = sbr.rel (0) target = $region5
    $region4: #{vit_forward.1} parent=1 // pred_region
      _
    $region5: #{vit_forward.1} parent=1 // pred_fallthru
      _
    // Predicated region
    $region6: #{vit_forward.1} parent=1 // pred_check
      _
    $region7: #{vit_forward.1} parent=1 // pred_check_branch
      %34 = sbr.rel (0) target = $region9
    $region8: #{vit_forward.1} parent=1 // pred_region
      _
    $region9: #{vit_forward.1} parent=1 // pred_fallthru
      _
    // Predicated region
    $region10: #{vit_forward.1} parent=1 // pred_check
      _
    $region11: #{vit_forward.1} parent=1 // pred_check_branch
      %36 = sbr.rel (0) target = $region13
    $region12: #{vit_forward.1} parent=1 // pred_region
      _
    $region13: #{vit_forward.1} parent=1 // pred_fallthru
      _
    // Predicated region
    $region14: #{vit_forward.1} parent=1 // pred_check
      _
    $region15: #{vit_forward.1} parent=1 // pred_check_branch
      %38 = sbr.rel (0) target = $region17
    $region16: #{vit_forward.1} parent=1 // pred_region
      _
    $region17: #{vit_forward.1} parent=1 // pred_fallthru
      _
    // Predicated region
    $region18: #{vit_forward.1} parent=1 // pred_check
      _
    $region19: #{vit_forward.1} parent=1 // pred_check_branch
      %40 = sbr.rel (0) target = $region21
    $region20: #{vit_forward.1} parent=1 // pred_region
      _
    $region21: #{vit_forward.1} parent=1 // pred_fallthru
      _
    // Predicated region
    $region22: #{vit_forward.1} parent=1 // pred_check
      _
    $region23: #{vit_forward.1} parent=1 // pred_check_branch
      %42 = sbr.rel (0) target = $region25
    $region24: #{vit_forward.1} parent=1 // pred_region
      _
    $region25: #{vit_forward.1} parent=1 // pred_fallthru
      _
    // Predicated region
    $region26: #{vit_forward.1} parent=1 // pred_check
      _
    $region27: #{vit_forward.1} parent=1 // pred_check_branch
      %44 = sbr.rel (0) target = $region29
    $region28: #{vit_forward.1} parent=1 // pred_region
      _
    $region29: #{vit_forward.1} parent=1 // pred_fallthru
      _
    // Predicated region
    $region30: #{vit_forward.1} parent=1 // pred_check
      _
    $region31: #{vit_forward.1} parent=1 // pred_check_branch
      %46 = sbr.rel (0) target = $region33
    $region32: #{vit_forward.1} parent=1 // pred_region
      _
    $region33: #{vit_forward.1} parent=1 // pred_fallthru
      _
    // Predicated region
    $region34: #{vit_forward.1} parent=1 // pred_check
      _
    $region35: #{vit_forward.1} parent=1 // pred_check_branch
      %48 = sbr.rel (0) target = $region37
    $region36: #{vit_forward.1} parent=1 // pred_region
      _
    $region37: #{vit_forward.1} parent=1 // pred_fallthru
      _
    // Predicated region
    $region38: #{vit_forward.1} parent=1 // pred_check
      _
    $region39: #{vit_forward.1} parent=1 // pred_check_branch
      %50 = sbr.rel (0) target = $region41
    $region40: #{vit_forward.1} parent=1 // pred_region
      _
    $region41: #{vit_forward.1} parent=1 // pred_fallthru
      _
    // Predicated region
    $region42: #{vit_forward.1} parent=1 // pred_check
      _
    $region43: #{vit_forward.1} parent=1 // pred_check_branch
      %52 = sbr.rel (0) target = $region45
    $region44: #{vit_forward.1} parent=1 // pred_region
      _
    $region45: #{vit_forward.1} parent=1 // pred_fallthru
      _
    // Predicated region
    $region46: #{vit_forward.1} parent=1 // pred_check
      _
    $region47: #{vit_forward.1} parent=1 // pred_check_branch
      %54 = sbr.rel (0) target = $region49
    $region48: #{vit_forward.1} parent=1 // pred_region
      _
    $region49: #{vit_forward.1} parent=1 // pred_fallthru
      _
    // Predicated region
    $region50: #{vit_forward.1} parent=1 // pred_check
      _
    $region51: #{vit_forward.1} parent=1 // pred_check_branch
      %56 = sbr.rel (0) target = $region53
    $region52: #{vit_forward.1} parent=1 // pred_region
      _
    $region53: #{vit_forward.1} parent=1 // pred_fallthru
      _
    // Predicated region
    $region54: #{vit_forward.1} parent=1 // pred_check
      _
    $region55: #{vit_forward.1} parent=1 // pred_check_branch
      %58 = sbr.rel (0) target = $region57
    $region56: #{vit_forward.1} parent=1 // pred_region
      _
    $region57: #{vit_forward.1} parent=1 // pred_fallthru
      _
    // Predicated region
    $region58: #{vit_forward.1} parent=1 // pred_check
      _
    $region59: #{vit_forward.1} parent=1 // pred_check_branch
      %60 = sbr.rel (0) target = $region61
    $region60: #{vit_forward.1} parent=1 // pred_region
      _
    $region61: #{vit_forward.1} parent=1 // pred_fallthru
      _
    // Predicated region
    $region62: #{vit_forward.1} parent=1 // pred_check
      _
    $region63: #{vit_forward.1} parent=1 // pred_check_branch
      %62 = sbr.rel (0) target = $region65
    $region64: #{vit_forward.1} parent=1 // pred_region
      _
    $region65: #{vit_forward.1} parent=1 // pred_fallthru
      _
    // Predicated region
    $region66: #{vit_forward.1} parent=1 // pred_check
      _
    $region67: #{vit_forward.1} parent=1 // pred_check_branch
      %64 = sbr.rel (0) target = $region69
    $region68: #{vit_forward.1} parent=1 // pred_region
      _
    $region69: #{vit_forward.1} parent=1 // pred_fallthru
      _
    // Predicated region
    $region70: #{vit_forward.1} parent=1 // pred_check
      _
    $region71: #{vit_forward.1} parent=1 // pred_check_branch
      %66 = sbr.rel (0) target = $region73
    $region72: #{vit_forward.1} parent=1 // pred_region
      _
    $region73: #{vit_forward.1} parent=1 // pred_fallthru
      _
    // Predicated region
    $region74: #{vit_forward.1} parent=1 // pred_check
      _
    $region75: #{vit_forward.1} parent=1 // pred_check_branch
      %68 = sbr.rel (0) target = $region77
    $region76: #{vit_forward.1} parent=1 // pred_region
      _
    $region77: #{vit_forward.1} parent=1 // pred_fallthru
      _
    // Predicated region
    $region78: #{vit_forward.1} parent=1 // pred_check
      _
    $region79: #{vit_forward.1} parent=1 // pred_check_branch
      %70 = sbr.rel (0) target = $region81
    $region80: #{vit_forward.1} parent=1 // pred_region
      _
    $region81: #{vit_forward.1} parent=1 // pred_fallthru
      _
    // Predicated region
    $region82: #{vit_forward.1} parent=1 // pred_check
      _
    $region83: #{vit_forward.1} parent=1 // pred_check_branch
      %72 = sbr.rel (0) target = $region85
    $region84: #{vit_forward.1} parent=1 // pred_region
      _
    $region85: #{vit_forward.1} parent=1 // pred_fallthru
      _
    // Predicated region
    $region86: #{vit_forward.1} parent=1 // pred_check
      _
    $region87: #{vit_forward.1} parent=1 // pred_check_branch
      %74 = sbr.rel (0) target = $region89
    $region88: #{vit_forward.1} parent=1 // pred_region
      _
    $region89: #{vit_forward.1} parent=1 // pred_fallthru
      _
    // Predicated region
    $region90: #{vit_forward.1} parent=1 // pred_check
      _
    $region91: #{vit_forward.1} parent=1 // pred_check_branch
      %76 = sbr.rel (0) target = $region93
    $region92: #{vit_forward.1} parent=1 // pred_region
      _
    $region93: #{vit_forward.1} parent=1 // pred_fallthru
      _
    // Predicated region
    $region94: #{vit_forward.1} parent=1 // pred_check
      _
    $region95: #{vit_forward.1} parent=1 // pred_check_branch
      %78 = sbr.rel (0) target = $region97
    $region96: #{vit_forward.1} parent=1 // pred_region
      _
    $region97: #{vit_forward.1} parent=1 // pred_fallthru
      _
    // Predicated region
    $region98: #{vit_forward.1} parent=1 // pred_check
      _
    $region99: #{vit_forward.1} parent=1 // pred_check_branch
      %80 = sbr.rel (0) target = $region101
    $region100: #{vit_forward.1} parent=1 // pred_region
      _
    $region101: #{vit_forward.1} parent=1 // pred_fallthru
      _
    %v81 = vld [vmem:[%s0] sm:$0xff]
    %v82 = vld [vmem:[%s0 + $0x8] sm:$0xff]
    %v83 = vld [vmem:[%s0 + $0x10] sm:$0xff]
    %v84 = vld [vmem:[%s0 + $0x18] sm:$0xff]
    %v85 = vld [vmem:[%s3] sm:$0x3]
    %v86 = vld [vmem:[%s4] sm:$0x3]
    %vm87 = vcmask 523264
    %v88 = vsel %vm87, %v82, 0.0
    %v89 = vadd.f32 %v81, %v88
    %90 = vadd.xlane.f32.xlu0 %v89
    %v91 = vpop.xlane.xlu0 %90
    %v92 = vsel %vm87, %v84, 0.0
    %v93 = vadd.f32 %v83, %v92
    %94 = vadd.xlane.f32.xlu0 %v93
    %v95 = vpop.xlane.xlu0 %94
    %v96 = vrcp.pop 192.0
    %v97 = vmul.f32 %v91, %v96
    %v98 = vmul.f32 %v95, %v96
    %v99 = vsub.f32 %v81, %v97
    %v100 = vsub.f32 %v82, %v97
    %v101 = vsub.f32 %v83, %v98
    %v102 = vsub.f32 %v84, %v98
    %v103 = vmul.f32 %v99, %v99
    %v104 = vmul.f32 %v100, %v100
    %v105 = vmul.f32 %v101, %v101
    %v106 = vmul.f32 %v102, %v102
    %v107 = vsel %vm87, %v104, 0.0
    %v108 = vadd.f32 %v103, %v107
    %109 = vadd.xlane.f32.xlu0 %v108
    %v110 = vpop.xlane.xlu0 %109
    %v111 = vsel %vm87, %v106, 0.0
    %v112 = vadd.f32 %v105, %v111
    %113 = vadd.xlane.f32.xlu0 %v112
    %v114 = vpop.xlane.xlu0 %113
    %v115 = vmul.f32 %v110, %v96
    %v116 = vmul.f32 %v114, %v96
    %v117 = vadd.f32 %v115, 1e-05
    %v118 = vadd.f32 %v116, 1e-05
    %v119 = vrsqrt.pop %v117
    %v120 = vrsqrt.pop %v118
    %v121 = vmul.f32 %v99, %v119
    %v122 = vmul.f32 %v100, %v119
    %v123 = vmul.f32 %v101, %v120
    %v124 = vmul.f32 %v102, %v120
    %v126 = vlaneseq
    %v127 = vshrl.u32 %v126, 7
    %v128 = vsub.s32 0, %v127
    %v129 = vrot.slane %v85, %v128
    %v130 = vlaneseq
    %v131 = vshrl.u32 %v130, 7
    %v132 = vsub.s32 1, %v131
    %v133 = vrot.slane %v85, %v132
    %v136 = vmul.f32 %v121, %v129
    %v137 = vmul.f32 %v122, %v133
    %v138 = vmul.f32 %v123, %v129
    %v139 = vmul.f32 %v124, %v133
    %v141 = vlaneseq
    %v142 = vshrl.u32 %v141, 7
    %v143 = vsub.s32 0, %v142
    %v144 = vrot.slane %v86, %v143
    %v145 = vlaneseq
    %v146 = vshrl.u32 %v145, 7
    %v147 = vsub.s32 1, %v146
    %v148 = vrot.slane %v86, %v147
    %v151 = vadd.f32 %v136, %v144
    %v152 = vadd.f32 %v137, %v148
    %v153 = vadd.f32 %v138, %v144
    %v154 = vadd.f32 %v139, %v148
    %v155 = vld [vmem:[%s5] sm:$0xff]
    %v156 = vld [vmem:[%s5 + $0x8] sm:$0xff]
    %v157 = vld [vmem:[%s5 + $0x10] sm:$0xff]
    %v158 = vld [vmem:[%s5 + $0x18] sm:$0xff]
    %v159 = vld [vmem:[%s5 + $0x20] sm:$0xff]
    %v160 = vld [vmem:[%s5 + $0x28] sm:$0xff]
    %v161 = vld [vmem:[%s5 + $0x30] sm:$0xff]
    %v162 = vld [vmem:[%s5 + $0x38] sm:$0xff]
    %v163 = vld [vmem:[%s5 + $0x40] sm:$0xff]
    %v164 = vld [vmem:[%s5 + $0x48] sm:$0xff]
    %v165 = vld [vmem:[%s5 + $0x50] sm:$0xff]
    %v166 = vld [vmem:[%s5 + $0x58] sm:$0xff]
    %v167 = vld [vmem:[%s5 + $0x60] sm:$0xff]
    %v168 = vld [vmem:[%s5 + $0x68] sm:$0xff]
    %v169 = vld [vmem:[%s5 + $0x70] sm:$0xff]
    %v170 = vld [vmem:[%s5 + $0x78] sm:$0xff]
    %v171 = vld [vmem:[%s5 + $0x80] sm:$0xff]
    %v172 = vld [vmem:[%s5 + $0x88] sm:$0xff]
    %v173 = vld [vmem:[%s5 + $0x90] sm:$0xff]
    %v174 = vld [vmem:[%s5 + $0x98] sm:$0xff]
    %v175 = vld [vmem:[%s5 + $0xa0] sm:$0xff]
    %v176 = vld [vmem:[%s5 + $0xa8] sm:$0xff]
    %v177 = vld [vmem:[%s5 + $0xb0] sm:$0xff]
    %v178 = vld [vmem:[%s5 + $0xb8] sm:$0xff]
    %v179 = vld [vmem:[%s6] sm:$0x1]
    %v181 = vlaneseq
    %v182 = vshrl.u32 %v181, 7
    %v183 = vsub.s32 0, %v182
    %v184 = vrot.slane %v179, %v183
    %v187 = vsel %vm87, %v152, 0
    %v190 = vsel %vm87, %v154, 0
    %192 = vmatprep.subr.mxu0 0.0
    %193 = vmatpush1.msra.mxu0 %v170
    %194 = vmatprep.subr.mxu0 0.0
    %195 = vmatpush1.msra.mxu0 %v169
    %196 = vmatprep.subr.mxu0 0.0
    %197 = vmatpush1.msra.mxu0 %v168
    %198 = vmatprep.subr.mxu0 0.0
    %199 = vmatpush1.msra.mxu0 %v167
    %200 = vmatprep.subr.mxu0 0.0
    %201 = vmatpush1.msra.mxu0 %v166
    %202 = vmatprep.subr.mxu0 0.0
    %203 = vmatpush1.msra.mxu0 %v165
    %204 = vmatprep.subr.mxu0 0.0
    %205 = vmatpush1.msra.mxu0 %v164
    %206 = vmatprep.subr.mxu0 0.0
    %207 = vmatpush1.msra.mxu0 %v163
    %208 = vmatprep.subr.mxu0 0.0
    %209 = vmatpush1.msra.mxu0 %v162
    %210 = vmatprep.subr.mxu0 0.0
    %211 = vmatpush1.msra.mxu0 %v161
    %212 = vmatprep.subr.mxu0 0.0
    %213 = vmatpush1.msra.mxu0 %v160
    %214 = vmatprep.subr.mxu0 0.0
    %215 = vmatpush1.msra.mxu0 %v159
    %216 = vmatprep.subr.mxu0 0.0
    %217 = vmatpush1.msra.mxu0 %v158
    %218 = vmatprep.subr.mxu0 0.0
    %219 = vmatpush1.msra.mxu0 %v157
    %220 = vmatprep.subr.mxu0 0.0
    %221 = vmatpush1.msra.mxu0 %v156
    %222 = vmatprep.subr.mxu0 0.0
    %223 = vmatpush1.msra.mxu0 %v155
    %224 = vmatprep.subr.mxu0 0.0
    %225 = vmatpush2.msra.mxu0 0.0
    %226 = vmatprep.subr.mxu0 0.0
    %227 = vmatpush2.msra.mxu0 0.0
    %228 = vmatprep.subr.mxu0 0.0
    %229 = vmatpush2.msra.mxu0 0.0
    %230 = vmatprep.subr.mxu0 0.0
    %231 = vmatpush2.msra.mxu0 0.0
    %232 = vmatprep.subr.mxu0 0.0
    %233 = vmatpush2.msra.mxu0 0.0
    %234 = vmatprep.subr.mxu0 0.0
    %235 = vmatpush2.msra.mxu0 0.0
    %236 = vmatprep.subr.mxu0 0.0
    %237 = vmatpush2.msra.mxu0 0.0
    %238 = vmatprep.subr.mxu0 0.0
    %239 = vmatpush2.msra.mxu0 0.0
    %240 = vmatprep.subr.mxu0 0.0
    %241 = vmatpush2.msra.mxu0 %v178
    %242 = vmatprep.subr.mxu0 0.0
    %243 = vmatpush2.msra.mxu0 %v177
    %244 = vmatprep.subr.mxu0 0.0
    %245 = vmatpush2.msra.mxu0 %v176
    %246 = vmatprep.subr.mxu0 0.0
    %247 = vmatpush2.msra.mxu0 %v175
    %248 = vmatprep.subr.mxu0 0.0
    %249 = vmatpush2.msra.mxu0 %v174
    %250 = vmatprep.subr.mxu0 0.0
    %251 = vmatpush2.msra.mxu0 %v173
    %252 = vmatprep.subr.mxu0 0.0
    %253 = vmatpush2.msra.mxu0 %v172
    %254 = vmatprep.subr.mxu0 0.0
    %255 = vmatpush2.msra.mxu0 %v171
    %256 = vmatprep.mubr.f32.mxu0 %v187
    %257 = vmatmul.mubr.f32.gmra.mxu0 %v151
    %v258 = vpop.f32.mrf.mxu0
    %v259 = vadd.f32 %v184, %v258
    %v260 = vpop.f32.mrf.mxu0
    %261 = vmatprep.mubr.f32.mxu0 %v190
    %262 = vmatmul.mubr.f32.gmra.mxu0 %v153
    %v263 = vpop.f32.mrf.mxu0
    %v264 = vadd.f32 %v184, %v263
    %v265 = vpop.f32.mrf.mxu0
    %266 = vdwg.mxu0
    %v267 = vld [vmem:[%s7] sm:$0x1]
    %v268 = vld [vmem:[%s8] sm:$0x1]
    %v269 = vsel %vm87, %v259, 0.0
    %270 = vadd.xlane.f32.xlu0 %v269
    %v271 = vpop.xlane.xlu0 %270
    %v272 = vsel %vm87, %v264, 0.0
    %273 = vadd.xlane.f32.xlu0 %v272
    %v274 = vpop.xlane.xlu0 %273
    %v275 = vrcp.pop 64.0
    %v276 = vmul.f32 %v271, %v275
    %v277 = vmul.f32 %v274, %v275
    %v278 = vsub.f32 %v259, %v276
    %v279 = vsub.f32 %v264, %v277
    %v280 = vmul.f32 %v278, %v278
    %v281 = vmul.f32 %v279, %v279
    %v282 = vsel %vm87, %v280, 0.0
    %283 = vadd.xlane.f32.xlu0 %v282
    %v284 = vpop.xlane.xlu0 %283
    %v285 = vsel %vm87, %v281, 0.0
    %286 = vadd.xlane.f32.xlu0 %v285
    %v287 = vpop.xlane.xlu0 %286
    %v288 = vmul.f32 %v284, %v275
    %v289 = vmul.f32 %v287, %v275
    %v290 = vadd.f32 %v288, 1e-05
    %v291 = vadd.f32 %v289, 1e-05
    %v292 = vrsqrt.pop %v290
    %v293 = vrsqrt.pop %v291
    %v294 = vmul.f32 %v278, %v292
    %v295 = vmul.f32 %v279, %v293
    %v297 = vlaneseq
    %v298 = vshrl.u32 %v297, 7
    %v299 = vsub.s32 0, %v298
    %v300 = vrot.slane %v267, %v299
    %v302 = vmul.f32 %v294, %v300
    %v303 = vmul.f32 %v295, %v300
    %v305 = vlaneseq
    %v306 = vshrl.u32 %v305, 7
    %v307 = vsub.s32 0, %v306
    %v308 = vrot.slane %v268, %v307
    %v310 = vadd.f32 %v302, %v308
    %v311 = vadd.f32 %v303, %v308
    %v312 = vld [vmem:[%s2] sm:$0xff]
    %v313 = vld [vmem:[%s2 + $0x8] sm:$0xff]
    %v314 = vld [vmem:[%s1] sm:$0xff]
    %v315 = vld [vmem:[%s1 + $0x8] sm:$0xff]
    %317 = vset.pattern.permute.xlu0 0
    %318 = vperm.xlu0 %317, %v314
    %v319 = vpop.permute.xlu0 %318
    %322 = vset.pattern.permute.xlu0 0
    %323 = vperm.xlu0 %322, %v315
    %v324 = vpop.permute.xlu0 %323
    %v326 = vmul.f32 %v319, %v310
    %v327 = vmul.f32 %v324, %v311
    %v328 = vadd.f32 %v312, %v326
    %v329 = vadd.f32 %v313, %v327
    %v330 = vlaneseq
    %v331 = vand.u32 %v330, 127
    %vm332 = vcmp.lt.s32.totalorder %v331, 5
    %v333 = vsel %vm332, 0.0, -1e+30
    %v334 = vld [vmem:[%s9] sm:$0x1]
    %v335 = vld [vmem:[%s10] sm:$0x1]
    %v336 = vsel %vm87, %v328, 0.0
    %337 = vadd.xlane.f32.xlu0 %v336
    %v338 = vpop.xlane.xlu0 %337
    %v339 = vsel %vm87, %v329, 0.0
    %340 = vadd.xlane.f32.xlu0 %v339
    %v341 = vpop.xlane.xlu0 %340
    %v342 = vmul.f32 %v338, %v275
    %v343 = vmul.f32 %v341, %v275
    %v344 = vsub.f32 %v328, %v342
    %v345 = vsub.f32 %v329, %v343
    %v346 = vmul.f32 %v344, %v344
    %v347 = vmul.f32 %v345, %v345
    %v348 = vsel %vm87, %v346, 0.0
    %349 = vadd.xlane.f32.xlu0 %v348
    %v350 = vpop.xlane.xlu0 %349
    %v351 = vsel %vm87, %v347, 0.0
    %352 = vadd.xlane.f32.xlu0 %v351
    %v353 = vpop.xlane.xlu0 %352
    %v354 = vmul.f32 %v350, %v275
    %v355 = vmul.f32 %v353, %v275
    %v356 = vadd.f32 %v354, 1e-05
    %v357 = vadd.f32 %v355, 1e-05
    %v358 = vrsqrt.pop %v356
    %v359 = vrsqrt.pop %v357
    %v360 = vmul.f32 %v344, %v358
    %v361 = vmul.f32 %v345, %v359
    %v363 = vlaneseq
    %v364 = vshrl.u32 %v363, 7
    %v365 = vsub.s32 0, %v364
    %v366 = vrot.slane %v334, %v365
    %v368 = vmul.f32 %v360, %v366
    %v369 = vmul.f32 %v361, %v366
    %v371 = vlaneseq
    %v372 = vshrl.u32 %v371, 7
    %v373 = vsub.s32 0, %v372
    %v374 = vrot.slane %v335, %v373
    %v376 = vadd.f32 %v368, %v374
    %v377 = vadd.f32 %v369, %v374
    %v378 = vld [vmem:[%s11] sm:$0xff]
    %v379 = vld [vmem:[%s11 + $0x8] sm:$0xff]
    %v380 = vld [vmem:[%s11 + $0x10] sm:$0xff]
    %v381 = vld [vmem:[%s11 + $0x18] sm:$0xff]
    %v382 = vld [vmem:[%s11 + $0x20] sm:$0xff]
    %v383 = vld [vmem:[%s11 + $0x28] sm:$0xff]
    %v384 = vld [vmem:[%s11 + $0x30] sm:$0xff]
    %v385 = vld [vmem:[%s11 + $0x38] sm:$0xff]
    %v386 = vld [vmem:[%s11 + $0x40] sm:$0xff]
    %v387 = vld [vmem:[%s11 + $0x48] sm:$0xff]
    %v388 = vld [vmem:[%s11 + $0x50] sm:$0xff]
    %v389 = vld [vmem:[%s11 + $0x58] sm:$0xff]
    %v390 = vld [vmem:[%s11 + $0x60] sm:$0xff]
    %v391 = vld [vmem:[%s11 + $0x68] sm:$0xff]
    %v392 = vld [vmem:[%s11 + $0x70] sm:$0xff]
    %v393 = vld [vmem:[%s11 + $0x78] sm:$0xff]
    %v394 = vld [vmem:[%s12] sm:$0x3]
    %v396 = vlaneseq
    %v397 = vshrl.u32 %v396, 7
    %v398 = vsub.s32 0, %v397
    %v399 = vrot.slane %v394, %v398
    %v400 = vlaneseq
    %v401 = vshrl.u32 %v400, 7
    %v402 = vsub.s32 1, %v401
    %v403 = vrot.slane %v394, %v402
    %v407 = vsel %vm87, %v376, 0
    %v410 = vsel %vm87, %v377, 0
    %412 = vmatprep.subr.mxu0 0.0
    %413 = vmatpush1.msra.mxu0 0.0
    %414 = vmatprep.subr.mxu0 0.0
    %415 = vmatpush1.msra.mxu0 0.0
    %416 = vmatprep.subr.mxu0 0.0
    %417 = vmatpush1.msra.mxu0 0.0
    %418 = vmatprep.subr.mxu0 0.0
    %419 = vmatpush1.msra.mxu0 0.0
    %420 = vmatprep.subr.mxu0 0.0
    %421 = vmatpush1.msra.mxu0 0.0
    %422 = vmatprep.subr.mxu0 0.0
    %423 = vmatpush1.msra.mxu0 0.0
    %424 = vmatprep.subr.mxu0 0.0
    %425 = vmatpush1.msra.mxu0 0.0
    %426 = vmatprep.subr.mxu0 0.0
    %427 = vmatpush1.msra.mxu0 0.0
    %428 = vmatprep.subr.mxu0 %v393
    %429 = vmatpush1.msra.mxu0 %v392
    %430 = vmatprep.subr.mxu0 %v391
    %431 = vmatpush1.msra.mxu0 %v390
    %432 = vmatprep.subr.mxu0 %v389
    %433 = vmatpush1.msra.mxu0 %v388
    %434 = vmatprep.subr.mxu0 %v387
    %435 = vmatpush1.msra.mxu0 %v386
    %436 = vmatprep.subr.mxu0 %v385
    %437 = vmatpush1.msra.mxu0 %v384
    %438 = vmatprep.subr.mxu0 %v383
    %439 = vmatpush1.msra.mxu0 %v382
    %440 = vmatprep.subr.mxu0 %v381
    %441 = vmatpush1.msra.mxu0 %v380
    %442 = vmatprep.subr.mxu0 %v379
    %443 = vmatpush1.msra.mxu0 %v378
    %444 = vmatprep.subr.mxu0 0.0
    %445 = vmatpush2.msra.mxu0 0.0
    %446 = vmatprep.subr.mxu0 0.0
    %447 = vmatpush2.msra.mxu0 0.0
    %448 = vmatprep.subr.mxu0 0.0
    %449 = vmatpush2.msra.mxu0 0.0
    %450 = vmatprep.subr.mxu0 0.0
    %451 = vmatpush2.msra.mxu0 0.0
    %452 = vmatprep.subr.mxu0 0.0
    %453 = vmatpush2.msra.mxu0 0.0
    %454 = vmatprep.subr.mxu0 0.0
    %455 = vmatpush2.msra.mxu0 0.0
    %456 = vmatprep.subr.mxu0 0.0
    %457 = vmatpush2.msra.mxu0 0.0
    %458 = vmatprep.subr.mxu0 0.0
    %459 = vmatpush2.msra.mxu0 0.0
    %460 = vmatprep.subr.mxu0 0.0
    %461 = vmatpush2.msra.mxu0 0.0
    %462 = vmatprep.subr.mxu0 0.0
    %463 = vmatpush2.msra.mxu0 0.0
    %464 = vmatprep.subr.mxu0 0.0
    %465 = vmatpush2.msra.mxu0 0.0
    %466 = vmatprep.subr.mxu0 0.0
    %467 = vmatpush2.msra.mxu0 0.0
    %468 = vmatprep.subr.mxu0 0.0
    %469 = vmatpush2.msra.mxu0 0.0
    %470 = vmatprep.subr.mxu0 0.0
    %471 = vmatpush2.msra.mxu0 0.0
    %472 = vmatprep.subr.mxu0 0.0
    %473 = vmatpush2.msra.mxu0 0.0
    %474 = vmatprep.subr.mxu0 0.0
    %475 = vmatpush2.msra.mxu0 0.0
    %476 = vmatprep.mubr.f32.mxu0 0.0
    %477 = vmatmul.mubr.f32.gmra.mxu0 %v407
    %v478 = vpop.f32.mrf.mxu0
    %v479 = vadd.f32 %v399, %v478
    %v480 = vpop.f32.mrf.mxu0
    %v481 = vadd.f32 %v403, %v480
    %482 = vmatprep.mubr.f32.mxu0 0.0
    %483 = vmatmul.mubr.f32.gmra.mxu0 %v410
    %v484 = vpop.f32.mrf.mxu0
    %v485 = vadd.f32 %v399, %v484
    %v486 = vpop.f32.mrf.mxu0
    %v487 = vadd.f32 %v403, %v486
    %488 = vdwg.mxu0
    %v489 = vld [vmem:[%s13] sm:$0xff]
    %v490 = vld [vmem:[%s13 + $0x8] sm:$0xff]
    %v491 = vld [vmem:[%s13 + $0x10] sm:$0xff]
    %v492 = vld [vmem:[%s13 + $0x18] sm:$0xff]
    %v493 = vld [vmem:[%s13 + $0x20] sm:$0xff]
    %v494 = vld [vmem:[%s13 + $0x28] sm:$0xff]
    %v495 = vld [vmem:[%s13 + $0x30] sm:$0xff]
    %v496 = vld [vmem:[%s13 + $0x38] sm:$0xff]
    %498 = vrot.lane.b32.xlu0 %v479, 64
    %v499 = vpop.permute.xlu0 %498
    %vm500 = vcmask 130048
    %v501 = vsel %vm500, %v479, 0
    %v503 = vsel %vm500, %v499, 0
    %505 = vmatprep.subr.mxu0 0.0
    %506 = vmatpush1.xpose.msra.mxu0 0.0
    %507 = vmatprep.subr.mxu0 0.0
    %508 = vmatpush1.xpose.msra.mxu0 0.0
    %509 = vmatprep.subr.mxu0 0.0
    %510 = vmatpush1.xpose.msra.mxu0 0.0
    %511 = vmatprep.subr.mxu0 0.0
    %512 = vmatpush1.xpose.msra.mxu0 0.0
    %513 = vmatprep.subr.mxu0 0.0
    %514 = vmatpush1.xpose.msra.mxu0 0.0
    %515 = vmatprep.subr.mxu0 0.0
    %516 = vmatpush1.xpose.msra.mxu0 0.0
    %517 = vmatprep.subr.mxu0 0.0
    %518 = vmatpush1.xpose.msra.mxu0 0.0
    %519 = vmatprep.subr.mxu0 0.0
    %520 = vmatpush1.xpose.msra.mxu0 0.0
    %521 = vmatprep.subr.mxu0 0.0
    %522 = vmatpush1.xpose.msra.mxu0 0.0
    %523 = vmatprep.subr.mxu0 0.0
    %524 = vmatpush1.xpose.msra.mxu0 0.0
    %525 = vmatprep.subr.mxu0 0.0
    %526 = vmatpush1.xpose.msra.mxu0 0.0
    %527 = vmatprep.subr.mxu0 0.0
    %528 = vmatpush1.xpose.msra.mxu0 0.0
    %529 = vmatprep.subr.mxu0 0.0
    %530 = vmatpush1.xpose.msra.mxu0 0.0
    %531 = vmatprep.subr.mxu0 0.0
    %532 = vmatpush1.xpose.msra.mxu0 0.0
    %533 = vmatprep.subr.mxu0 0.0
    %534 = vmatpush1.xpose.msra.mxu0 0.0
    %535 = vmatprep.subr.mxu0 0.0
    %536 = vmatpush1.xpose.msra.mxu0 %v503
    %537 = vmatprep.subr.mxu0 0.0
    %538 = vmatpush2.xpose.msra.mxu0 0.0
    %539 = vmatprep.subr.mxu0 0.0
    %540 = vmatpush2.xpose.msra.mxu0 0.0
    %541 = vmatprep.subr.mxu0 0.0
    %542 = vmatpush2.xpose.msra.mxu0 0.0
    %543 = vmatprep.subr.mxu0 0.0
    %544 = vmatpush2.xpose.msra.mxu0 0.0
    %545 = vmatprep.subr.mxu0 0.0
    %546 = vmatpush2.xpose.msra.mxu0 0.0
    %547 = vmatprep.subr.mxu0 0.0
    %548 = vmatpush2.xpose.msra.mxu0 0.0
    %549 = vmatprep.subr.mxu0 0.0
    %550 = vmatpush2.xpose.msra.mxu0 0.0
    %551 = vmatprep.subr.mxu0 0.0
    %552 = vmatpush2.xpose.msra.mxu0 0.0
    %553 = vmatprep.subr.mxu0 0.0
    %554 = vmatpush2.xpose.msra.mxu0 0.0
    %555 = vmatprep.subr.mxu0 0.0
    %556 = vmatpush2.xpose.msra.mxu0 0.0
    %557 = vmatprep.subr.mxu0 0.0
    %558 = vmatpush2.xpose.msra.mxu0 0.0
    %559 = vmatprep.subr.mxu0 0.0
    %560 = vmatpush2.xpose.msra.mxu0 0.0
    %561 = vmatprep.subr.mxu0 0.0
    %562 = vmatpush2.xpose.msra.mxu0 0.0
    %563 = vmatprep.subr.mxu0 0.0
    %564 = vmatpush2.xpose.msra.mxu0 0.0
    %565 = vmatprep.subr.mxu0 0.0
    %566 = vmatpush2.xpose.msra.mxu0 0.0
    %567 = vmatprep.subr.mxu0 0.0
    %568 = vmatpush2.xpose.msra.mxu0 0.0
    %569 = vmatprep.mubr.f32.mxu0 0.0
    %570 = vmatmul.mubr.f32.gmra.mxu0 %v501
    %v571 = vpop.f32.mrf.mxu0
    %v572 = vadd.f32 0.0, %v571
    %v573 = vpop.f32.mrf.mxu0
    %574 = vdwg.mxu0
    %576 = vrot.lane.b32.xlu0 %v485, 64
    %v577 = vpop.permute.xlu0 %576
    %v578 = vsel %vm500, %v485, 0
    %v580 = vsel %vm500, %v577, 0
    %582 = vmatprep.subr.mxu0 0.0
    %583 = vmatpush1.xpose.msra.mxu0 0.0
    %584 = vmatprep.subr.mxu0 0.0
    %585 = vmatpush1.xpose.msra.mxu0 0.0
    %586 = vmatprep.subr.mxu0 0.0
    %587 = vmatpush1.xpose.msra.mxu0 0.0
    %588 = vmatprep.subr.mxu0 0.0
    %589 = vmatpush1.xpose.msra.mxu0 0.0
    %590 = vmatprep.subr.mxu0 0.0
    %591 = vmatpush1.xpose.msra.mxu0 0.0
    %592 = vmatprep.subr.mxu0 0.0
    %593 = vmatpush1.xpose.msra.mxu0 0.0
    %594 = vmatprep.subr.mxu0 0.0
    %595 = vmatpush1.xpose.msra.mxu0 0.0
    %596 = vmatprep.subr.mxu0 0.0
    %597 = vmatpush1.xpose.msra.mxu0 0.0
    %598 = vmatprep.subr.mxu0 0.0
    %599 = vmatpush1.xpose.msra.mxu0 0.0
    %600 = vmatprep.subr.mxu0 0.0
    %601 = vmatpush1.xpose.msra.mxu0 0.0
    %602 = vmatprep.subr.mxu0 0.0
    %603 = vmatpush1.xpose.msra.mxu0 0.0
    %604 = vmatprep.subr.mxu0 0.0
    %605 = vmatpush1.xpose.msra.mxu0 0.0
    %606 = vmatprep.subr.mxu0 0.0
    %607 = vmatpush1.xpose.msra.mxu0 0.0
    %608 = vmatprep.subr.mxu0 0.0
    %609 = vmatpush1.xpose.msra.mxu0 0.0
    %610 = vmatprep.subr.mxu0 0.0
    %611 = vmatpush1.xpose.msra.mxu0 0.0
    %612 = vmatprep.subr.mxu0 0.0
    %613 = vmatpush1.xpose.msra.mxu0 %v580
    %614 = vmatprep.subr.mxu0 0.0
    %615 = vmatpush2.xpose.msra.mxu0 0.0
    %616 = vmatprep.subr.mxu0 0.0
    %617 = vmatpush2.xpose.msra.mxu0 0.0
    %618 = vmatprep.subr.mxu0 0.0
    %619 = vmatpush2.xpose.msra.mxu0 0.0
    %620 = vmatprep.subr.mxu0 0.0
    %621 = vmatpush2.xpose.msra.mxu0 0.0
    %622 = vmatprep.subr.mxu0 0.0
    %623 = vmatpush2.xpose.msra.mxu0 0.0
    %624 = vmatprep.subr.mxu0 0.0
    %625 = vmatpush2.xpose.msra.mxu0 0.0
    %626 = vmatprep.subr.mxu0 0.0
    %627 = vmatpush2.xpose.msra.mxu0 0.0
    %628 = vmatprep.subr.mxu0 0.0
    %629 = vmatpush2.xpose.msra.mxu0 0.0
    %630 = vmatprep.subr.mxu0 0.0
    %631 = vmatpush2.xpose.msra.mxu0 0.0
    %632 = vmatprep.subr.mxu0 0.0
    %633 = vmatpush2.xpose.msra.mxu0 0.0
    %634 = vmatprep.subr.mxu0 0.0
    %635 = vmatpush2.xpose.msra.mxu0 0.0
    %636 = vmatprep.subr.mxu0 0.0
    %637 = vmatpush2.xpose.msra.mxu0 0.0
    %638 = vmatprep.subr.mxu0 0.0
    %639 = vmatpush2.xpose.msra.mxu0 0.0
    %640 = vmatprep.subr.mxu0 0.0
    %641 = vmatpush2.xpose.msra.mxu0 0.0
    %642 = vmatprep.subr.mxu0 0.0
    %643 = vmatpush2.xpose.msra.mxu0 0.0
    %644 = vmatprep.subr.mxu0 0.0
    %645 = vmatpush2.xpose.msra.mxu0 0.0
    %646 = vmatprep.mubr.f32.mxu0 0.0
    %647 = vmatmul.mubr.f32.gmra.mxu0 %v578
    %v648 = vpop.f32.mrf.mxu0
    %v649 = vadd.f32 0.0, %v648
    %v650 = vpop.f32.mrf.mxu0
    %651 = vdwg.mxu0
    %v652 = vmul.f32 %v572, 0.25
    %v653 = vmul.f32 %v649, 0.25
    %v654 = vadd.f32 %v652, %v333
    %v655 = vadd.f32 %v653, %v333
    %vm656 = vcmask 64512
    %v657 = vsel %vm656, %v654, -inf
    %658 = vmax.xlane.f32.xlu0 %v657
    %v659 = vpop.xlane.xlu0 %658
    %v660 = vsel %vm656, %v655, -inf
    %661 = vmax.xlane.f32.xlu0 %v660
    %v662 = vpop.xlane.xlu0 %661
    %v663 = vsub.f32 %v654, %v659
    %v664 = vsub.f32 %v655, %v662
    %v665 = vmul.f32 %v663, 1.442695
    %v666 = vpow.pop %v665
    %v667 = vmul.f32 %v664, 1.442695
    %v668 = vpow.pop %v667
    %v669 = vsel %vm656, %v666, 0.0
    %670 = vadd.xlane.f32.xlu0 %v669
    %v671 = vpop.xlane.xlu0 %670
    %v672 = vsel %vm656, %v668, 0.0
    %673 = vadd.xlane.f32.xlu0 %v672
    %v674 = vpop.xlane.xlu0 %673
    %v675 = vrcp.pop %v671
    %v676 = vrcp.pop %v674
    %v677 = vmul.f32 %v666, %v675
    %v678 = vmul.f32 %v668, %v676
    %v680 = vsel %vm656, %v677, 0
    %682 = vmatprep.subr.mxu0 0.0
    %683 = vmatpush1.msra.mxu0 0.0
    %684 = vmatprep.subr.mxu0 0.0
    %685 = vmatpush1.msra.mxu0 0.0
    %686 = vmatprep.subr.mxu0 0.0
    %687 = vmatpush1.msra.mxu0 0.0
    %688 = vmatprep.subr.mxu0 0.0
    %689 = vmatpush1.msra.mxu0 0.0
    %690 = vmatprep.subr.mxu0 0.0
    %691 = vmatpush1.msra.mxu0 0.0
    %692 = vmatprep.subr.mxu0 0.0
    %693 = vmatpush1.msra.mxu0 0.0
    %694 = vmatprep.subr.mxu0 0.0
    %695 = vmatpush1.msra.mxu0 0.0
    %696 = vmatprep.subr.mxu0 0.0
    %697 = vmatpush1.msra.mxu0 0.0
    %698 = vmatprep.subr.mxu0 0.0
    %699 = vmatpush1.msra.mxu0 0.0
    %700 = vmatprep.subr.mxu0 0.0
    %701 = vmatpush1.msra.mxu0 0.0
    %702 = vmatprep.subr.mxu0 0.0
    %703 = vmatpush1.msra.mxu0 0.0
    %704 = vmatprep.subr.mxu0 0.0
    %705 = vmatpush1.msra.mxu0 0.0
    %706 = vmatprep.subr.mxu0 0.0
    %707 = vmatpush1.msra.mxu0 0.0
    %708 = vmatprep.subr.mxu0 0.0
    %709 = vmatpush1.msra.mxu0 0.0
    %710 = vmatprep.subr.mxu0 0.0
    %711 = vmatpush1.msra.mxu0 0.0
    %712 = vmatprep.subr.mxu0 0.0
    %713 = vmatpush1.msra.mxu0 %v481
    %714 = vmatprep.subr.mxu0 0.0
    %715 = vmatpush2.msra.mxu0 0.0
    %716 = vmatprep.subr.mxu0 0.0
    %717 = vmatpush2.msra.mxu0 0.0
    %718 = vmatprep.subr.mxu0 0.0
    %719 = vmatpush2.msra.mxu0 0.0
    %720 = vmatprep.subr.mxu0 0.0
    %721 = vmatpush2.msra.mxu0 0.0
    %722 = vmatprep.subr.mxu0 0.0
    %723 = vmatpush2.msra.mxu0 0.0
    %724 = vmatprep.subr.mxu0 0.0
    %725 = vmatpush2.msra.mxu0 0.0
    %726 = vmatprep.subr.mxu0 0.0
    %727 = vmatpush2.msra.mxu0 0.0
    %728 = vmatprep.subr.mxu0 0.0
    %729 = vmatpush2.msra.mxu0 0.0
    %730 = vmatprep.subr.mxu0 0.0
    %731 = vmatpush2.msra.mxu0 0.0
    %732 = vmatprep.subr.mxu0 0.0
    %733 = vmatpush2.msra.mxu0 0.0
    %734 = vmatprep.subr.mxu0 0.0
    %735 = vmatpush2.msra.mxu0 0.0
    %736 = vmatprep.subr.mxu0 0.0
    %737 = vmatpush2.msra.mxu0 0.0
    %738 = vmatprep.subr.mxu0 0.0
    %739 = vmatpush2.msra.mxu0 0.0
    %740 = vmatprep.subr.mxu0 0.0
    %741 = vmatpush2.msra.mxu0 0.0
    %742 = vmatprep.subr.mxu0 0.0
    %743 = vmatpush2.msra.mxu0 0.0
    %744 = vmatprep.subr.mxu0 0.0
    %745 = vmatpush2.msra.mxu0 0.0
    %746 = vmatprep.mubr.f32.mxu0 0.0
    %747 = vmatmul.mubr.f32.gmra.mxu0 %v680
    %v748 = vpop.f32.mrf.mxu0
    %v749 = vadd.f32 0.0, %v748
    %v750 = vpop.f32.mrf.mxu0
    %751 = vdwg.mxu0
    %v753 = vsel %vm656, %v678, 0
    %755 = vmatprep.subr.mxu0 0.0
    %756 = vmatpush1.msra.mxu0 0.0
    %757 = vmatprep.subr.mxu0 0.0
    %758 = vmatpush1.msra.mxu0 0.0
    %759 = vmatprep.subr.mxu0 0.0
    %760 = vmatpush1.msra.mxu0 0.0
    %761 = vmatprep.subr.mxu0 0.0
    %762 = vmatpush1.msra.mxu0 0.0
    %763 = vmatprep.subr.mxu0 0.0
    %764 = vmatpush1.msra.mxu0 0.0
    %765 = vmatprep.subr.mxu0 0.0
    %766 = vmatpush1.msra.mxu0 0.0
    %767 = vmatprep.subr.mxu0 0.0
    %768 = vmatpush1.msra.mxu0 0.0
    %769 = vmatprep.subr.mxu0 0.0
    %770 = vmatpush1.msra.mxu0 0.0
    %771 = vmatprep.subr.mxu0 0.0
    %772 = vmatpush1.msra.mxu0 0.0
    %773 = vmatprep.subr.mxu0 0.0
    %774 = vmatpush1.msra.mxu0 0.0
    %775 = vmatprep.subr.mxu0 0.0
    %776 = vmatpush1.msra.mxu0 0.0
    %777 = vmatprep.subr.mxu0 0.0
    %778 = vmatpush1.msra.mxu0 0.0
    %779 = vmatprep.subr.mxu0 0.0
    %780 = vmatpush1.msra.mxu0 0.0
    %781 = vmatprep.subr.mxu0 0.0
    %782 = vmatpush1.msra.mxu0 0.0
    %783 = vmatprep.subr.mxu0 0.0
    %784 = vmatpush1.msra.mxu0 0.0
    %785 = vmatprep.subr.mxu0 0.0
    %786 = vmatpush1.msra.mxu0 %v487
    %787 = vmatprep.subr.mxu0 0.0
    %788 = vmatpush2.msra.mxu0 0.0
    %789 = vmatprep.subr.mxu0 0.0
    %790 = vmatpush2.msra.mxu0 0.0
    %791 = vmatprep.subr.mxu0 0.0
    %792 = vmatpush2.msra.mxu0 0.0
    %793 = vmatprep.subr.mxu0 0.0
    %794 = vmatpush2.msra.mxu0 0.0
    %795 = vmatprep.subr.mxu0 0.0
    %796 = vmatpush2.msra.mxu0 0.0
    %797 = vmatprep.subr.mxu0 0.0
    %798 = vmatpush2.msra.mxu0 0.0
    %799 = vmatprep.subr.mxu0 0.0
    %800 = vmatpush2.msra.mxu0 0.0
    %801 = vmatprep.subr.mxu0 0.0
    %802 = vmatpush2.msra.mxu0 0.0
    %803 = vmatprep.subr.mxu0 0.0
    %804 = vmatpush2.msra.mxu0 0.0
    %805 = vmatprep.subr.mxu0 0.0
    %806 = vmatpush2.msra.mxu0 0.0
    %807 = vmatprep.subr.mxu0 0.0
    %808 = vmatpush2.msra.mxu0 0.0
    %809 = vmatprep.subr.mxu0 0.0
    %810 = vmatpush2.msra.mxu0 0.0
    %811 = vmatprep.subr.mxu0 0.0
    %812 = vmatpush2.msra.mxu0 0.0
    %813 = vmatprep.subr.mxu0 0.0
    %814 = vmatpush2.msra.mxu0 0.0
    %815 = vmatprep.subr.mxu0 0.0
    %816 = vmatpush2.msra.mxu0 0.0
    %817 = vmatprep.subr.mxu0 0.0
    %818 = vmatpush2.msra.mxu0 0.0
    %819 = vmatprep.mubr.f32.mxu0 0.0
    %820 = vmatmul.mubr.f32.gmra.mxu0 %v753
    %v821 = vpop.f32.mrf.mxu0
    %v822 = vadd.f32 0.0, %v821
    %v823 = vpop.f32.mrf.mxu0
    %824 = vdwg.mxu0
    %825 = vrot.lane.b32.xlu0 %v479, 112
    %v826 = vpop.permute.xlu0 %825
    %827 = vrot.lane.b32.xlu0 %v479, 48
    %v828 = vpop.permute.xlu0 %827
    %v829 = vsel %vm500, %v826, 0
    %v831 = vsel %vm500, %v828, 0
    %833 = vmatprep.subr.mxu0 0.0
    %834 = vmatpush1.xpose.msra.mxu0 0.0
    %835 = vmatprep.subr.mxu0 0.0
    %836 = vmatpush1.xpose.msra.mxu0 0.0
    %837 = vmatprep.subr.mxu0 0.0
    %838 = vmatpush1.xpose.msra.mxu0 0.0
    %839 = vmatprep.subr.mxu0 0.0
    %840 = vmatpush1.xpose.msra.mxu0 0.0
    %841 = vmatprep.subr.mxu0 0.0
    %842 = vmatpush1.xpose.msra.mxu0 0.0
    %843 = vmatprep.subr.mxu0 0.0
    %844 = vmatpush1.xpose.msra.mxu0 0.0
    %845 = vmatprep.subr.mxu0 0.0
    %846 = vmatpush1.xpose.msra.mxu0 0.0
    %847 = vmatprep.subr.mxu0 0.0
    %848 = vmatpush1.xpose.msra.mxu0 0.0
    %849 = vmatprep.subr.mxu0 0.0
    %850 = vmatpush1.xpose.msra.mxu0 0.0
    %851 = vmatprep.subr.mxu0 0.0
    %852 = vmatpush1.xpose.msra.mxu0 0.0
    %853 = vmatprep.subr.mxu0 0.0
    %854 = vmatpush1.xpose.msra.mxu0 0.0
    %855 = vmatprep.subr.mxu0 0.0
    %856 = vmatpush1.xpose.msra.mxu0 0.0
    %857 = vmatprep.subr.mxu0 0.0
    %858 = vmatpush1.xpose.msra.mxu0 0.0
    %859 = vmatprep.subr.mxu0 0.0
    %860 = vmatpush1.xpose.msra.mxu0 0.0
    %861 = vmatprep.subr.mxu0 0.0
    %862 = vmatpush1.xpose.msra.mxu0 0.0
    %863 = vmatprep.subr.mxu0 0.0
    %864 = vmatpush1.xpose.msra.mxu0 %v831
    %865 = vmatprep.subr.mxu0 0.0
    %866 = vmatpush2.xpose.msra.mxu0 0.0
    %867 = vmatprep.subr.mxu0 0.0
    %868 = vmatpush2.xpose.msra.mxu0 0.0
    %869 = vmatprep.subr.mxu0 0.0
    %870 = vmatpush2.xpose.msra.mxu0 0.0
    %871 = vmatprep.subr.mxu0 0.0
    %872 = vmatpush2.xpose.msra.mxu0 0.0
    %873 = vmatprep.subr.mxu0 0.0
    %874 = vmatpush2.xpose.msra.mxu0 0.0
    %875 = vmatprep.subr.mxu0 0.0
    %876 = vmatpush2.xpose.msra.mxu0 0.0
    %877 = vmatprep.subr.mxu0 0.0
    %878 = vmatpush2.xpose.msra.mxu0 0.0
    %879 = vmatprep.subr.mxu0 0.0
    %880 = vmatpush2.xpose.msra.mxu0 0.0
    %881 = vmatprep.subr.mxu0 0.0
    %882 = vmatpush2.xpose.msra.mxu0 0.0
    %883 = vmatprep.subr.mxu0 0.0
    %884 = vmatpush2.xpose.msra.mxu0 0.0
    %885 = vmatprep.subr.mxu0 0.0
    %886 = vmatpush2.xpose.msra.mxu0 0.0
    %887 = vmatprep.subr.mxu0 0.0
    %888 = vmatpush2.xpose.msra.mxu0 0.0
    %889 = vmatprep.subr.mxu0 0.0
    %890 = vmatpush2.xpose.msra.mxu0 0.0
    %891 = vmatprep.subr.mxu0 0.0
    %892 = vmatpush2.xpose.msra.mxu0 0.0
    %893 = vmatprep.subr.mxu0 0.0
    %894 = vmatpush2.xpose.msra.mxu0 0.0
    %895 = vmatprep.subr.mxu0 0.0
    %896 = vmatpush2.xpose.msra.mxu0 0.0
    %897 = vmatprep.mubr.f32.mxu0 0.0
    %898 = vmatmul.mubr.f32.gmra.mxu0 %v829
    %v899 = vpop.f32.mrf.mxu0
    %v900 = vadd.f32 0.0, %v899
    %v901 = vpop.f32.mrf.mxu0
    %902 = vdwg.mxu0
    %903 = vrot.lane.b32.xlu0 %v485, 112
    %v904 = vpop.permute.xlu0 %903
    %905 = vrot.lane.b32.xlu0 %v485, 48
    %v906 = vpop.permute.xlu0 %905
    %v907 = vsel %vm500, %v904, 0
    %v909 = vsel %vm500, %v906, 0
    %911 = vmatprep.subr.mxu0 0.0
    %912 = vmatpush1.xpose.msra.mxu0 0.0
    %913 = vmatprep.subr.mxu0 0.0
    %914 = vmatpush1.xpose.msra.mxu0 0.0
    %915 = vmatprep.subr.mxu0 0.0
    %916 = vmatpush1.xpose.msra.mxu0 0.0
    %917 = vmatprep.subr.mxu0 0.0
    %918 = vmatpush1.xpose.msra.mxu0 0.0
    %919 = vmatprep.subr.mxu0 0.0
    %920 = vmatpush1.xpose.msra.mxu0 0.0
    %921 = vmatprep.subr.mxu0 0.0
    %922 = vmatpush1.xpose.msra.mxu0 0.0
    %923 = vmatprep.subr.mxu0 0.0
    %924 = vmatpush1.xpose.msra.mxu0 0.0
    %925 = vmatprep.subr.mxu0 0.0
    %926 = vmatpush1.xpose.msra.mxu0 0.0
    %927 = vmatprep.subr.mxu0 0.0
    %928 = vmatpush1.xpose.msra.mxu0 0.0
    %929 = vmatprep.subr.mxu0 0.0
    %930 = vmatpush1.xpose.msra.mxu0 0.0
    %931 = vmatprep.subr.mxu0 0.0
    %932 = vmatpush1.xpose.msra.mxu0 0.0
    %933 = vmatprep.subr.mxu0 0.0
    %934 = vmatpush1.xpose.msra.mxu0 0.0
    %935 = vmatprep.subr.mxu0 0.0
    %936 = vmatpush1.xpose.msra.mxu0 0.0
    %937 = vmatprep.subr.mxu0 0.0
    %938 = vmatpush1.xpose.msra.mxu0 0.0
    %939 = vmatprep.subr.mxu0 0.0
    %940 = vmatpush1.xpose.msra.mxu0 0.0
    %941 = vmatprep.subr.mxu0 0.0
    %942 = vmatpush1.xpose.msra.mxu0 %v909
    %943 = vmatprep.subr.mxu0 0.0
    %944 = vmatpush2.xpose.msra.mxu0 0.0
    %945 = vmatprep.subr.mxu0 0.0
    %946 = vmatpush2.xpose.msra.mxu0 0.0
    %947 = vmatprep.subr.mxu0 0.0
    %948 = vmatpush2.xpose.msra.mxu0 0.0
    %949 = vmatprep.subr.mxu0 0.0
    %950 = vmatpush2.xpose.msra.mxu0 0.0
    %951 = vmatprep.subr.mxu0 0.0
    %952 = vmatpush2.xpose.msra.mxu0 0.0
    %953 = vmatprep.subr.mxu0 0.0
    %954 = vmatpush2.xpose.msra.mxu0 0.0
    %955 = vmatprep.subr.mxu0 0.0
    %956 = vmatpush2.xpose.msra.mxu0 0.0
    %957 = vmatprep.subr.mxu0 0.0
    %958 = vmatpush2.xpose.msra.mxu0 0.0
    %959 = vmatprep.subr.mxu0 0.0
    %960 = vmatpush2.xpose.msra.mxu0 0.0
    %961 = vmatprep.subr.mxu0 0.0
    %962 = vmatpush2.xpose.msra.mxu0 0.0
    %963 = vmatprep.subr.mxu0 0.0
    %964 = vmatpush2.xpose.msra.mxu0 0.0
    %965 = vmatprep.subr.mxu0 0.0
    %966 = vmatpush2.xpose.msra.mxu0 0.0
    %967 = vmatprep.subr.mxu0 0.0
    %968 = vmatpush2.xpose.msra.mxu0 0.0
    %969 = vmatprep.subr.mxu0 0.0
    %970 = vmatpush2.xpose.msra.mxu0 0.0
    %971 = vmatprep.subr.mxu0 0.0
    %972 = vmatpush2.xpose.msra.mxu0 0.0
    %973 = vmatprep.subr.mxu0 0.0
    %974 = vmatpush2.xpose.msra.mxu0 0.0
    %975 = vmatprep.mubr.f32.mxu0 0.0
    %976 = vmatmul.mubr.f32.gmra.mxu0 %v907
    %v977 = vpop.f32.mrf.mxu0
    %v978 = vadd.f32 0.0, %v977
    %v979 = vpop.f32.mrf.mxu0
    %980 = vdwg.mxu0
    %v981 = vmul.f32 %v900, 0.25
    %v982 = vmul.f32 %v978, 0.25
    %v983 = vadd.f32 %v981, %v333
    %v984 = vadd.f32 %v982, %v333
    %v985 = vsel %vm656, %v983, -inf
    %986 = vmax.xlane.f32.xlu0 %v985
    %v987 = vpop.xlane.xlu0 %986
    %v988 = vsel %vm656, %v984, -inf
    %989 = vmax.xlane.f32.xlu0 %v988
    %v990 = vpop.xlane.xlu0 %989
    %v991 = vsub.f32 %v983, %v987
    %v992 = vsub.f32 %v984, %v990
    %v993 = vmul.f32 %v991, 1.442695
    %v994 = vpow.pop %v993
    %v995 = vmul.f32 %v992, 1.442695
    %v996 = vpow.pop %v995
    %v997 = vsel %vm656, %v994, 0.0
    %998 = vadd.xlane.f32.xlu0 %v997
    %v999 = vpop.xlane.xlu0 %998
    %v1000 = vsel %vm656, %v996, 0.0
    %1001 = vadd.xlane.f32.xlu0 %v1000
    %v1002 = vpop.xlane.xlu0 %1001
    %v1003 = vrcp.pop %v999
    %v1004 = vrcp.pop %v1002
    %v1005 = vmul.f32 %v994, %v1003
    %v1006 = vmul.f32 %v996, %v1004
    %1008 = vrot.lane.b32.xlu0 %v481, 112
    %v1009 = vpop.permute.xlu0 %1008
    %v1012 = vsel %vm656, %v1005, 0
    %1014 = vmatprep.subr.mxu0 0.0
    %1015 = vmatpush1.msra.mxu0 0.0
    %1016 = vmatprep.subr.mxu0 0.0
    %1017 = vmatpush1.msra.mxu0 0.0
    %1018 = vmatprep.subr.mxu0 0.0
    %1019 = vmatpush1.msra.mxu0 0.0
    %1020 = vmatprep.subr.mxu0 0.0
    %1021 = vmatpush1.msra.mxu0 0.0
    %1022 = vmatprep.subr.mxu0 0.0
    %1023 = vmatpush1.msra.mxu0 0.0
    %1024 = vmatprep.subr.mxu0 0.0
    %1025 = vmatpush1.msra.mxu0 0.0
    %1026 = vmatprep.subr.mxu0 0.0
    %1027 = vmatpush1.msra.mxu0 0.0
    %1028 = vmatprep.subr.mxu0 0.0
    %1029 = vmatpush1.msra.mxu0 0.0
    %1030 = vmatprep.subr.mxu0 0.0
    %1031 = vmatpush1.msra.mxu0 0.0
    %1032 = vmatprep.subr.mxu0 0.0
    %1033 = vmatpush1.msra.mxu0 0.0
    %1034 = vmatprep.subr.mxu0 0.0
    %1035 = vmatpush1.msra.mxu0 0.0
    %1036 = vmatprep.subr.mxu0 0.0
    %1037 = vmatpush1.msra.mxu0 0.0
    %1038 = vmatprep.subr.mxu0 0.0
    %1039 = vmatpush1.msra.mxu0 0.0
    %1040 = vmatprep.subr.mxu0 0.0
    %1041 = vmatpush1.msra.mxu0 0.0
    %1042 = vmatprep.subr.mxu0 0.0
    %1043 = vmatpush1.msra.mxu0 0.0
    %1044 = vmatprep.subr.mxu0 0.0
    %1045 = vmatpush1.msra.mxu0 %v1009
    %1046 = vmatprep.subr.mxu0 0.0
    %1047 = vmatpush2.msra.mxu0 0.0
    %1048 = vmatprep.subr.mxu0 0.0
    %1049 = vmatpush2.msra.mxu0 0.0
    %1050 = vmatprep.subr.mxu0 0.0
    %1051 = vmatpush2.msra.mxu0 0.0
    %1052 = vmatprep.subr.mxu0 0.0
    %1053 = vmatpush2.msra.mxu0 0.0
    %1054 = vmatprep.subr.mxu0 0.0
    %1055 = vmatpush2.msra.mxu0 0.0
    %1056 = vmatprep.subr.mxu0 0.0
    %1057 = vmatpush2.msra.mxu0 0.0
    %1058 = vmatprep.subr.mxu0 0.0
    %1059 = vmatpush2.msra.mxu0 0.0
    %1060 = vmatprep.subr.mxu0 0.0
    %1061 = vmatpush2.msra.mxu0 0.0
    %1062 = vmatprep.subr.mxu0 0.0
    %1063 = vmatpush2.msra.mxu0 0.0
    %1064 = vmatprep.subr.mxu0 0.0
    %1065 = vmatpush2.msra.mxu0 0.0
    %1066 = vmatprep.subr.mxu0 0.0
    %1067 = vmatpush2.msra.mxu0 0.0
    %1068 = vmatprep.subr.mxu0 0.0
    %1069 = vmatpush2.msra.mxu0 0.0
    %1070 = vmatprep.subr.mxu0 0.0
    %1071 = vmatpush2.msra.mxu0 0.0
    %1072 = vmatprep.subr.mxu0 0.0
    %1073 = vmatpush2.msra.mxu0 0.0
    %1074 = vmatprep.subr.mxu0 0.0
    %1075 = vmatpush2.msra.mxu0 0.0
    %1076 = vmatprep.subr.mxu0 0.0
    %1077 = vmatpush2.msra.mxu0 0.0
    %1078 = vmatprep.mubr.f32.mxu0 0.0
    %1079 = vmatmul.mubr.f32.gmra.mxu0 %v1012
    %v1080 = vpop.f32.mrf.mxu0
    %v1081 = vadd.f32 0.0, %v1080
    %v1082 = vpop.f32.mrf.mxu0
    %1083 = vdwg.mxu0
    %1085 = vrot.lane.b32.xlu0 %v487, 112
    %v1086 = vpop.permute.xlu0 %1085
    %v1089 = vsel %vm656, %v1006, 0
    %1091 = vmatprep.subr.mxu0 0.0
    %1092 = vmatpush1.msra.mxu0 0.0
    %1093 = vmatprep.subr.mxu0 0.0
    %1094 = vmatpush1.msra.mxu0 0.0
    %1095 = vmatprep.subr.mxu0 0.0
    %1096 = vmatpush1.msra.mxu0 0.0
    %1097 = vmatprep.subr.mxu0 0.0
    %1098 = vmatpush1.msra.mxu0 0.0
    %1099 = vmatprep.subr.mxu0 0.0
    %1100 = vmatpush1.msra.mxu0 0.0
    %1101 = vmatprep.subr.mxu0 0.0
    %1102 = vmatpush1.msra.mxu0 0.0
    %1103 = vmatprep.subr.mxu0 0.0
    %1104 = vmatpush1.msra.mxu0 0.0
    %1105 = vmatprep.subr.mxu0 0.0
    %1106 = vmatpush1.msra.mxu0 0.0
    %1107 = vmatprep.subr.mxu0 0.0
    %1108 = vmatpush1.msra.mxu0 0.0
    %1109 = vmatprep.subr.mxu0 0.0
    %1110 = vmatpush1.msra.mxu0 0.0
    %1111 = vmatprep.subr.mxu0 0.0
    %1112 = vmatpush1.msra.mxu0 0.0
    %1113 = vmatprep.subr.mxu0 0.0
    %1114 = vmatpush1.msra.mxu0 0.0
    %1115 = vmatprep.subr.mxu0 0.0
    %1116 = vmatpush1.msra.mxu0 0.0
    %1117 = vmatprep.subr.mxu0 0.0
    %1118 = vmatpush1.msra.mxu0 0.0
    %1119 = vmatprep.subr.mxu0 0.0
    %1120 = vmatpush1.msra.mxu0 0.0
    %1121 = vmatprep.subr.mxu0 0.0
    %1122 = vmatpush1.msra.mxu0 %v1086
    %1123 = vmatprep.subr.mxu0 0.0
    %1124 = vmatpush2.msra.mxu0 0.0
    %1125 = vmatprep.subr.mxu0 0.0
    %1126 = vmatpush2.msra.mxu0 0.0
    %1127 = vmatprep.subr.mxu0 0.0
    %1128 = vmatpush2.msra.mxu0 0.0
    %1129 = vmatprep.subr.mxu0 0.0
    %1130 = vmatpush2.msra.mxu0 0.0
    %1131 = vmatprep.subr.mxu0 0.0
    %1132 = vmatpush2.msra.mxu0 0.0
    %1133 = vmatprep.subr.mxu0 0.0
    %1134 = vmatpush2.msra.mxu0 0.0
    %1135 = vmatprep.subr.mxu0 0.0
    %1136 = vmatpush2.msra.mxu0 0.0
    %1137 = vmatprep.subr.mxu0 0.0
    %1138 = vmatpush2.msra.mxu0 0.0
    %1139 = vmatprep.subr.mxu0 0.0
    %1140 = vmatpush2.msra.mxu0 0.0
    %1141 = vmatprep.subr.mxu0 0.0
    %1142 = vmatpush2.msra.mxu0 0.0
    %1143 = vmatprep.subr.mxu0 0.0
    %1144 = vmatpush2.msra.mxu0 0.0
    %1145 = vmatprep.subr.mxu0 0.0
    %1146 = vmatpush2.msra.mxu0 0.0
    %1147 = vmatprep.subr.mxu0 0.0
    %1148 = vmatpush2.msra.mxu0 0.0
    %1149 = vmatprep.subr.mxu0 0.0
    %1150 = vmatpush2.msra.mxu0 0.0
    %1151 = vmatprep.subr.mxu0 0.0
    %1152 = vmatpush2.msra.mxu0 0.0
    %1153 = vmatprep.subr.mxu0 0.0
    %1154 = vmatpush2.msra.mxu0 0.0
    %1155 = vmatprep.mubr.f32.mxu0 0.0
    %1156 = vmatmul.mubr.f32.gmra.mxu0 %v1089
    %v1157 = vpop.f32.mrf.mxu0
    %v1158 = vadd.f32 0.0, %v1157
    %v1159 = vpop.f32.mrf.mxu0
    %1160 = vdwg.mxu0
    %v1162 = vsel %vm500, %v1081, 0
    %v1165 = vsel %vm500, %v1158, 0
    %1167 = vmatprep.subr.mxu0 0.0
    %1168 = vmatpush1.msra.mxu0 0.0
    %1169 = vmatprep.subr.mxu0 0.0
    %1170 = vmatpush1.msra.mxu0 0.0
    %1171 = vmatprep.subr.mxu0 0.0
    %1172 = vmatpush1.msra.mxu0 0.0
    %1173 = vmatprep.subr.mxu0 0.0
    %1174 = vmatpush1.msra.mxu0 0.0
    %1175 = vmatprep.subr.mxu0 0.0
    %1176 = vmatpush1.msra.mxu0 0.0
    %1177 = vmatprep.subr.mxu0 0.0
    %1178 = vmatpush1.msra.mxu0 0.0
    %1179 = vmatprep.subr.mxu0 0.0
    %1180 = vmatpush1.msra.mxu0 0.0
    %1181 = vmatprep.subr.mxu0 0.0
    %1182 = vmatpush1.msra.mxu0 0.0
    %1183 = vmatprep.subr.mxu0 0.0
    %1184 = vmatpush1.msra.mxu0 0.0
    %1185 = vmatprep.subr.mxu0 0.0
    %1186 = vmatpush1.msra.mxu0 0.0
    %1187 = vmatprep.subr.mxu0 0.0
    %1188 = vmatpush1.msra.mxu0 0.0
    %1189 = vmatprep.subr.mxu0 0.0
    %1190 = vmatpush1.msra.mxu0 0.0
    %1191 = vmatprep.subr.mxu0 0.0
    %1192 = vmatpush1.msra.mxu0 0.0
    %1193 = vmatprep.subr.mxu0 0.0
    %1194 = vmatpush1.msra.mxu0 0.0
    %1195 = vmatprep.subr.mxu0 0.0
    %1196 = vmatpush1.msra.mxu0 %v492
    %1197 = vmatprep.subr.mxu0 0.0
    %1198 = vmatpush1.msra.mxu0 %v491
    %1199 = vmatprep.subr.mxu0 0.0
    %1200 = vmatpush2.msra.mxu0 0.0
    %1201 = vmatprep.subr.mxu0 0.0
    %1202 = vmatpush2.msra.mxu0 0.0
    %1203 = vmatprep.subr.mxu0 0.0
    %1204 = vmatpush2.msra.mxu0 0.0
    %1205 = vmatprep.subr.mxu0 0.0
    %1206 = vmatpush2.msra.mxu0 0.0
    %1207 = vmatprep.subr.mxu0 0.0
    %1208 = vmatpush2.msra.mxu0 0.0
    %1209 = vmatprep.subr.mxu0 0.0
    %1210 = vmatpush2.msra.mxu0 0.0
    %1211 = vmatprep.subr.mxu0 0.0
    %1212 = vmatpush2.msra.mxu0 0.0
    %1213 = vmatprep.subr.mxu0 0.0
    %1214 = vmatpush2.msra.mxu0 0.0
    %1215 = vmatprep.subr.mxu0 0.0
    %1216 = vmatpush2.msra.mxu0 0.0
    %1217 = vmatprep.subr.mxu0 0.0
    %1218 = vmatpush2.msra.mxu0 0.0
    %1219 = vmatprep.subr.mxu0 0.0
    %1220 = vmatpush2.msra.mxu0 0.0
    %1221 = vmatprep.subr.mxu0 0.0
    %1222 = vmatpush2.msra.mxu0 0.0
    %1223 = vmatprep.subr.mxu0 0.0
    %1224 = vmatpush2.msra.mxu0 0.0
    %1225 = vmatprep.subr.mxu0 0.0
    %1226 = vmatpush2.msra.mxu0 0.0
    %1227 = vmatprep.subr.mxu0 0.0
    %1228 = vmatpush2.msra.mxu0 0.0
    %1229 = vmatprep.subr.mxu0 0.0
    %1230 = vmatpush2.msra.mxu0 0.0
    %1231 = vmatprep.mubr.f32.mxu0 0.0
    %1232 = vmatmul.mubr.f32.gmra.mxu0 %v1162
    %v1233 = vpop.f32.mrf.mxu0
    %v1234 = vadd.f32 0.0, %v1233
    %v1235 = vpop.f32.mrf.mxu0
    %1236 = vmatprep.mubr.f32.mxu0 0.0
    %1237 = vmatmul.mubr.f32.gmra.mxu0 %v1165
    %v1238 = vpop.f32.mrf.mxu0
    %v1239 = vadd.f32 0.0, %v1238
    %v1240 = vpop.f32.mrf.mxu0
    %1241 = vdwg.mxu0
    %v1243 = vsel %vm500, %v749, 0
    %v1246 = vsel %vm500, %v822, 0
    %1248 = vmatprep.subr.mxu0 0.0
    %1249 = vmatpush1.msra.mxu0 0.0
    %1250 = vmatprep.subr.mxu0 0.0
    %1251 = vmatpush1.msra.mxu0 0.0
    %1252 = vmatprep.subr.mxu0 0.0
    %1253 = vmatpush1.msra.mxu0 0.0
    %1254 = vmatprep.subr.mxu0 0.0
    %1255 = vmatpush1.msra.mxu0 0.0
    %1256 = vmatprep.subr.mxu0 0.0
    %1257 = vmatpush1.msra.mxu0 0.0
    %1258 = vmatprep.subr.mxu0 0.0
    %1259 = vmatpush1.msra.mxu0 0.0
    %1260 = vmatprep.subr.mxu0 0.0
    %1261 = vmatpush1.msra.mxu0 0.0
    %1262 = vmatprep.subr.mxu0 0.0
    %1263 = vmatpush1.msra.mxu0 0.0
    %1264 = vmatprep.subr.mxu0 0.0
    %1265 = vmatpush1.msra.mxu0 0.0
    %1266 = vmatprep.subr.mxu0 0.0
    %1267 = vmatpush1.msra.mxu0 0.0
    %1268 = vmatprep.subr.mxu0 0.0
    %1269 = vmatpush1.msra.mxu0 0.0
    %1270 = vmatprep.subr.mxu0 0.0
    %1271 = vmatpush1.msra.mxu0 0.0
    %1272 = vmatprep.subr.mxu0 0.0
    %1273 = vmatpush1.msra.mxu0 0.0
    %1274 = vmatprep.subr.mxu0 0.0
    %1275 = vmatpush1.msra.mxu0 0.0
    %1276 = vmatprep.subr.mxu0 0.0
    %1277 = vmatpush1.msra.mxu0 %v490
    %1278 = vmatprep.subr.mxu0 0.0
    %1279 = vmatpush1.msra.mxu0 %v489
    %1280 = vmatprep.subr.mxu0 0.0
    %1281 = vmatpush2.msra.mxu0 0.0
    %1282 = vmatprep.subr.mxu0 0.0
    %1283 = vmatpush2.msra.mxu0 0.0
    %1284 = vmatprep.subr.mxu0 0.0
    %1285 = vmatpush2.msra.mxu0 0.0
    %1286 = vmatprep.subr.mxu0 0.0
    %1287 = vmatpush2.msra.mxu0 0.0
    %1288 = vmatprep.subr.mxu0 0.0
    %1289 = vmatpush2.msra.mxu0 0.0
    %1290 = vmatprep.subr.mxu0 0.0
    %1291 = vmatpush2.msra.mxu0 0.0
    %1292 = vmatprep.subr.mxu0 0.0
    %1293 = vmatpush2.msra.mxu0 0.0
    %1294 = vmatprep.subr.mxu0 0.0
    %1295 = vmatpush2.msra.mxu0 0.0
    %1296 = vmatprep.subr.mxu0 0.0
    %1297 = vmatpush2.msra.mxu0 0.0
    %1298 = vmatprep.subr.mxu0 0.0
    %1299 = vmatpush2.msra.mxu0 0.0
    %1300 = vmatprep.subr.mxu0 0.0
    %1301 = vmatpush2.msra.mxu0 0.0
    %1302 = vmatprep.subr.mxu0 0.0
    %1303 = vmatpush2.msra.mxu0 0.0
    %1304 = vmatprep.subr.mxu0 0.0
    %1305 = vmatpush2.msra.mxu0 0.0
    %1306 = vmatprep.subr.mxu0 0.0
    %1307 = vmatpush2.msra.mxu0 0.0
    %1308 = vmatprep.subr.mxu0 0.0
    %1309 = vmatpush2.msra.mxu0 0.0
    %1310 = vmatprep.subr.mxu0 0.0
    %1311 = vmatpush2.msra.mxu0 0.0
    %1312 = vmatprep.mubr.f32.mxu0 0.0
    %1313 = vmatmul.mubr.f32.gmra.mxu0 %v1243
    %v1314 = vpop.f32.mrf.mxu0
    %v1315 = vadd.f32 %v1234, %v1314
    %v1316 = vpop.f32.mrf.mxu0
    %1317 = vmatprep.mubr.f32.mxu0 0.0
    %1318 = vmatmul.mubr.f32.gmra.mxu0 %v1246
    %v1319 = vpop.f32.mrf.mxu0
    %v1320 = vadd.f32 %v1239, %v1319
    %v1321 = vpop.f32.mrf.mxu0
    %1322 = vdwg.mxu0
    %1323 = vrot.lane.b32.xlu0 %v479, 96
    %v1324 = vpop.permute.xlu0 %1323
    %1325 = vrot.lane.b32.xlu0 %v479, 32
    %v1326 = vpop.permute.xlu0 %1325
    %v1327 = vsel %vm500, %v1324, 0
    %v1329 = vsel %vm500, %v1326, 0
    %1331 = vmatprep.subr.mxu0 0.0
    %1332 = vmatpush1.xpose.msra.mxu0 0.0
    %1333 = vmatprep.subr.mxu0 0.0
    %1334 = vmatpush1.xpose.msra.mxu0 0.0
    %1335 = vmatprep.subr.mxu0 0.0
    %1336 = vmatpush1.xpose.msra.mxu0 0.0
    %1337 = vmatprep.subr.mxu0 0.0
    %1338 = vmatpush1.xpose.msra.mxu0 0.0
    %1339 = vmatprep.subr.mxu0 0.0
    %1340 = vmatpush1.xpose.msra.mxu0 0.0
    %1341 = vmatprep.subr.mxu0 0.0
    %1342 = vmatpush1.xpose.msra.mxu0 0.0
    %1343 = vmatprep.subr.mxu0 0.0
    %1344 = vmatpush1.xpose.msra.mxu0 0.0
    %1345 = vmatprep.subr.mxu0 0.0
    %1346 = vmatpush1.xpose.msra.mxu0 0.0
    %1347 = vmatprep.subr.mxu0 0.0
    %1348 = vmatpush1.xpose.msra.mxu0 0.0
    %1349 = vmatprep.subr.mxu0 0.0
    %1350 = vmatpush1.xpose.msra.mxu0 0.0
    %1351 = vmatprep.subr.mxu0 0.0
    %1352 = vmatpush1.xpose.msra.mxu0 0.0
    %1353 = vmatprep.subr.mxu0 0.0
    %1354 = vmatpush1.xpose.msra.mxu0 0.0
    %1355 = vmatprep.subr.mxu0 0.0
    %1356 = vmatpush1.xpose.msra.mxu0 0.0
    %1357 = vmatprep.subr.mxu0 0.0
    %1358 = vmatpush1.xpose.msra.mxu0 0.0
    %1359 = vmatprep.subr.mxu0 0.0
    %1360 = vmatpush1.xpose.msra.mxu0 0.0
    %1361 = vmatprep.subr.mxu0 0.0
    %1362 = vmatpush1.xpose.msra.mxu0 %v1329
    %1363 = vmatprep.subr.mxu0 0.0
    %1364 = vmatpush2.xpose.msra.mxu0 0.0
    %1365 = vmatprep.subr.mxu0 0.0
    %1366 = vmatpush2.xpose.msra.mxu0 0.0
    %1367 = vmatprep.subr.mxu0 0.0
    %1368 = vmatpush2.xpose.msra.mxu0 0.0
    %1369 = vmatprep.subr.mxu0 0.0
    %1370 = vmatpush2.xpose.msra.mxu0 0.0
    %1371 = vmatprep.subr.mxu0 0.0
    %1372 = vmatpush2.xpose.msra.mxu0 0.0
    %1373 = vmatprep.subr.mxu0 0.0
    %1374 = vmatpush2.xpose.msra.mxu0 0.0
    %1375 = vmatprep.subr.mxu0 0.0
    %1376 = vmatpush2.xpose.msra.mxu0 0.0
    %1377 = vmatprep.subr.mxu0 0.0
    %1378 = vmatpush2.xpose.msra.mxu0 0.0
    %1379 = vmatprep.subr.mxu0 0.0
    %1380 = vmatpush2.xpose.msra.mxu0 0.0
    %1381 = vmatprep.subr.mxu0 0.0
    %1382 = vmatpush2.xpose.msra.mxu0 0.0
    %1383 = vmatprep.subr.mxu0 0.0
    %1384 = vmatpush2.xpose.msra.mxu0 0.0
    %1385 = vmatprep.subr.mxu0 0.0
    %1386 = vmatpush2.xpose.msra.mxu0 0.0
    %1387 = vmatprep.subr.mxu0 0.0
    %1388 = vmatpush2.xpose.msra.mxu0 0.0
    %1389 = vmatprep.subr.mxu0 0.0
    %1390 = vmatpush2.xpose.msra.mxu0 0.0
    %1391 = vmatprep.subr.mxu0 0.0
    %1392 = vmatpush2.xpose.msra.mxu0 0.0
    %1393 = vmatprep.subr.mxu0 0.0
    %1394 = vmatpush2.xpose.msra.mxu0 0.0
    %1395 = vmatprep.mubr.f32.mxu0 0.0
    %1396 = vmatmul.mubr.f32.gmra.mxu0 %v1327
    %v1397 = vpop.f32.mrf.mxu0
    %v1398 = vadd.f32 0.0, %v1397
    %v1399 = vpop.f32.mrf.mxu0
    %1400 = vdwg.mxu0
    %1401 = vrot.lane.b32.xlu0 %v485, 96
    %v1402 = vpop.permute.xlu0 %1401
    %1403 = vrot.lane.b32.xlu0 %v485, 32
    %v1404 = vpop.permute.xlu0 %1403
    %v1405 = vsel %vm500, %v1402, 0
    %v1407 = vsel %vm500, %v1404, 0
    %1409 = vmatprep.subr.mxu0 0.0
    %1410 = vmatpush1.xpose.msra.mxu0 0.0
    %1411 = vmatprep.subr.mxu0 0.0
    %1412 = vmatpush1.xpose.msra.mxu0 0.0
    %1413 = vmatprep.subr.mxu0 0.0
    %1414 = vmatpush1.xpose.msra.mxu0 0.0
    %1415 = vmatprep.subr.mxu0 0.0
    %1416 = vmatpush1.xpose.msra.mxu0 0.0
    %1417 = vmatprep.subr.mxu0 0.0
    %1418 = vmatpush1.xpose.msra.mxu0 0.0
    %1419 = vmatprep.subr.mxu0 0.0
    %1420 = vmatpush1.xpose.msra.mxu0 0.0
    %1421 = vmatprep.subr.mxu0 0.0
    %1422 = vmatpush1.xpose.msra.mxu0 0.0
    %1423 = vmatprep.subr.mxu0 0.0
    %1424 = vmatpush1.xpose.msra.mxu0 0.0
    %1425 = vmatprep.subr.mxu0 0.0
    %1426 = vmatpush1.xpose.msra.mxu0 0.0
    %1427 = vmatprep.subr.mxu0 0.0
    %1428 = vmatpush1.xpose.msra.mxu0 0.0
    %1429 = vmatprep.subr.mxu0 0.0
    %1430 = vmatpush1.xpose.msra.mxu0 0.0
    %1431 = vmatprep.subr.mxu0 0.0
    %1432 = vmatpush1.xpose.msra.mxu0 0.0
    %1433 = vmatprep.subr.mxu0 0.0
    %1434 = vmatpush1.xpose.msra.mxu0 0.0
    %1435 = vmatprep.subr.mxu0 0.0
    %1436 = vmatpush1.xpose.msra.mxu0 0.0
    %1437 = vmatprep.subr.mxu0 0.0
    %1438 = vmatpush1.xpose.msra.mxu0 0.0
    %1439 = vmatprep.subr.mxu0 0.0
    %1440 = vmatpush1.xpose.msra.mxu0 %v1407
    %1441 = vmatprep.subr.mxu0 0.0
    %1442 = vmatpush2.xpose.msra.mxu0 0.0
    %1443 = vmatprep.subr.mxu0 0.0
    %1444 = vmatpush2.xpose.msra.mxu0 0.0
    %1445 = vmatprep.subr.mxu0 0.0
    %1446 = vmatpush2.xpose.msra.mxu0 0.0
    %1447 = vmatprep.subr.mxu0 0.0
    %1448 = vmatpush2.xpose.msra.mxu0 0.0
    %1449 = vmatprep.subr.mxu0 0.0
    %1450 = vmatpush2.xpose.msra.mxu0 0.0
    %1451 = vmatprep.subr.mxu0 0.0
    %1452 = vmatpush2.xpose.msra.mxu0 0.0
    %1453 = vmatprep.subr.mxu0 0.0
    %1454 = vmatpush2.xpose.msra.mxu0 0.0
    %1455 = vmatprep.subr.mxu0 0.0
    %1456 = vmatpush2.xpose.msra.mxu0 0.0
    %1457 = vmatprep.subr.mxu0 0.0
    %1458 = vmatpush2.xpose.msra.mxu0 0.0
    %1459 = vmatprep.subr.mxu0 0.0
    %1460 = vmatpush2.xpose.msra.mxu0 0.0
    %1461 = vmatprep.subr.mxu0 0.0
    %1462 = vmatpush2.xpose.msra.mxu0 0.0
    %1463 = vmatprep.subr.mxu0 0.0
    %1464 = vmatpush2.xpose.msra.mxu0 0.0
    %1465 = vmatprep.subr.mxu0 0.0
    %1466 = vmatpush2.xpose.msra.mxu0 0.0
    %1467 = vmatprep.subr.mxu0 0.0
    %1468 = vmatpush2.xpose.msra.mxu0 0.0
    %1469 = vmatprep.subr.mxu0 0.0
    %1470 = vmatpush2.xpose.msra.mxu0 0.0
    %1471 = vmatprep.subr.mxu0 0.0
    %1472 = vmatpush2.xpose.msra.mxu0 0.0
    %1473 = vmatprep.mubr.f32.mxu0 0.0
    %1474 = vmatmul.mubr.f32.gmra.mxu0 %v1405
    %v1475 = vpop.f32.mrf.mxu0
    %v1476 = vadd.f32 0.0, %v1475
    %v1477 = vpop.f32.mrf.mxu0
    %1478 = vdwg.mxu0
    %v1479 = vmul.f32 %v1398, 0.25
    %v1480 = vmul.f32 %v1476, 0.25
    %v1481 = vadd.f32 %v1479, %v333
    %v1482 = vadd.f32 %v1480, %v333
    %v1483 = vsel %vm656, %v1481, -inf
    %1484 = vmax.xlane.f32.xlu0 %v1483
    %v1485 = vpop.xlane.xlu0 %1484
    %v1486 = vsel %vm656, %v1482, -inf
    %1487 = vmax.xlane.f32.xlu0 %v1486
    %v1488 = vpop.xlane.xlu0 %1487
    %v1489 = vsub.f32 %v1481, %v1485
    %v1490 = vsub.f32 %v1482, %v1488
    %v1491 = vmul.f32 %v1489, 1.442695
    %v1492 = vpow.pop %v1491
    %v1493 = vmul.f32 %v1490, 1.442695
    %v1494 = vpow.pop %v1493
    %v1495 = vsel %vm656, %v1492, 0.0
    %1496 = vadd.xlane.f32.xlu0 %v1495
    %v1497 = vpop.xlane.xlu0 %1496
    %v1498 = vsel %vm656, %v1494, 0.0
    %1499 = vadd.xlane.f32.xlu0 %v1498
    %v1500 = vpop.xlane.xlu0 %1499
    %v1501 = vrcp.pop %v1497
    %v1502 = vrcp.pop %v1500
    %v1503 = vmul.f32 %v1492, %v1501
    %v1504 = vmul.f32 %v1494, %v1502
    %1505 = vrot.lane.b32.xlu0 %v481, 96
    %v1506 = vpop.permute.xlu0 %1505
    %v1509 = vsel %vm656, %v1503, 0
    %1511 = vmatprep.subr.mxu0 0.0
    %1512 = vmatpush1.msra.mxu0 0.0
    %1513 = vmatprep.subr.mxu0 0.0
    %1514 = vmatpush1.msra.mxu0 0.0
    %1515 = vmatprep.subr.mxu0 0.0
    %1516 = vmatpush1.msra.mxu0 0.0
    %1517 = vmatprep.subr.mxu0 0.0
    %1518 = vmatpush1.msra.mxu0 0.0
    %1519 = vmatprep.subr.mxu0 0.0
    %1520 = vmatpush1.msra.mxu0 0.0
    %1521 = vmatprep.subr.mxu0 0.0
    %1522 = vmatpush1.msra.mxu0 0.0
    %1523 = vmatprep.subr.mxu0 0.0
    %1524 = vmatpush1.msra.mxu0 0.0
    %1525 = vmatprep.subr.mxu0 0.0
    %1526 = vmatpush1.msra.mxu0 0.0
    %1527 = vmatprep.subr.mxu0 0.0
    %1528 = vmatpush1.msra.mxu0 0.0
    %1529 = vmatprep.subr.mxu0 0.0
    %1530 = vmatpush1.msra.mxu0 0.0
    %1531 = vmatprep.subr.mxu0 0.0
    %1532 = vmatpush1.msra.mxu0 0.0
    %1533 = vmatprep.subr.mxu0 0.0
    %1534 = vmatpush1.msra.mxu0 0.0
    %1535 = vmatprep.subr.mxu0 0.0
    %1536 = vmatpush1.msra.mxu0 0.0
    %1537 = vmatprep.subr.mxu0 0.0
    %1538 = vmatpush1.msra.mxu0 0.0
    %1539 = vmatprep.subr.mxu0 0.0
    %1540 = vmatpush1.msra.mxu0 0.0
    %1541 = vmatprep.subr.mxu0 0.0
    %1542 = vmatpush1.msra.mxu0 %v1506
    %1543 = vmatprep.subr.mxu0 0.0
    %1544 = vmatpush2.msra.mxu0 0.0
    %1545 = vmatprep.subr.mxu0 0.0
    %1546 = vmatpush2.msra.mxu0 0.0
    %1547 = vmatprep.subr.mxu0 0.0
    %1548 = vmatpush2.msra.mxu0 0.0
    %1549 = vmatprep.subr.mxu0 0.0
    %1550 = vmatpush2.msra.mxu0 0.0
    %1551 = vmatprep.subr.mxu0 0.0
    %1552 = vmatpush2.msra.mxu0 0.0
    %1553 = vmatprep.subr.mxu0 0.0
    %1554 = vmatpush2.msra.mxu0 0.0
    %1555 = vmatprep.subr.mxu0 0.0
    %1556 = vmatpush2.msra.mxu0 0.0
    %1557 = vmatprep.subr.mxu0 0.0
    %1558 = vmatpush2.msra.mxu0 0.0
    %1559 = vmatprep.subr.mxu0 0.0
    %1560 = vmatpush2.msra.mxu0 0.0
    %1561 = vmatprep.subr.mxu0 0.0
    %1562 = vmatpush2.msra.mxu0 0.0
    %1563 = vmatprep.subr.mxu0 0.0
    %1564 = vmatpush2.msra.mxu0 0.0
    %1565 = vmatprep.subr.mxu0 0.0
    %1566 = vmatpush2.msra.mxu0 0.0
    %1567 = vmatprep.subr.mxu0 0.0
    %1568 = vmatpush2.msra.mxu0 0.0
    %1569 = vmatprep.subr.mxu0 0.0
    %1570 = vmatpush2.msra.mxu0 0.0
    %1571 = vmatprep.subr.mxu0 0.0
    %1572 = vmatpush2.msra.mxu0 0.0
    %1573 = vmatprep.subr.mxu0 0.0
    %1574 = vmatpush2.msra.mxu0 0.0
    %1575 = vmatprep.mubr.f32.mxu0 0.0
    %1576 = vmatmul.mubr.f32.gmra.mxu0 %v1509
    %v1577 = vpop.f32.mrf.mxu0
    %v1578 = vadd.f32 0.0, %v1577
    %v1579 = vpop.f32.mrf.mxu0
    %1580 = vdwg.mxu0
    %1581 = vrot.lane.b32.xlu0 %v487, 96
    %v1582 = vpop.permute.xlu0 %1581
    %v1585 = vsel %vm656, %v1504, 0
    %1587 = vmatprep.subr.mxu0 0.0
    %1588 = vmatpush1.msra.mxu0 0.0
    %1589 = vmatprep.subr.mxu0 0.0
    %1590 = vmatpush1.msra.mxu0 0.0
    %1591 = vmatprep.subr.mxu0 0.0
    %1592 = vmatpush1.msra.mxu0 0.0
    %1593 = vmatprep.subr.mxu0 0.0
    %1594 = vmatpush1.msra.mxu0 0.0
    %1595 = vmatprep.subr.mxu0 0.0
    %1596 = vmatpush1.msra.mxu0 0.0
    %1597 = vmatprep.subr.mxu0 0.0
    %1598 = vmatpush1.msra.mxu0 0.0
    %1599 = vmatprep.subr.mxu0 0.0
    %1600 = vmatpush1.msra.mxu0 0.0
    %1601 = vmatprep.subr.mxu0 0.0
    %1602 = vmatpush1.msra.mxu0 0.0
    %1603 = vmatprep.subr.mxu0 0.0
    %1604 = vmatpush1.msra.mxu0 0.0
    %1605 = vmatprep.subr.mxu0 0.0
    %1606 = vmatpush1.msra.mxu0 0.0
    %1607 = vmatprep.subr.mxu0 0.0
    %1608 = vmatpush1.msra.mxu0 0.0
    %1609 = vmatprep.subr.mxu0 0.0
    %1610 = vmatpush1.msra.mxu0 0.0
    %1611 = vmatprep.subr.mxu0 0.0
    %1612 = vmatpush1.msra.mxu0 0.0
    %1613 = vmatprep.subr.mxu0 0.0
    %1614 = vmatpush1.msra.mxu0 0.0
    %1615 = vmatprep.subr.mxu0 0.0
    %1616 = vmatpush1.msra.mxu0 0.0
    %1617 = vmatprep.subr.mxu0 0.0
    %1618 = vmatpush1.msra.mxu0 %v1582
    %1619 = vmatprep.subr.mxu0 0.0
    %1620 = vmatpush2.msra.mxu0 0.0
    %1621 = vmatprep.subr.mxu0 0.0
    %1622 = vmatpush2.msra.mxu0 0.0
    %1623 = vmatprep.subr.mxu0 0.0
    %1624 = vmatpush2.msra.mxu0 0.0
    %1625 = vmatprep.subr.mxu0 0.0
    %1626 = vmatpush2.msra.mxu0 0.0
    %1627 = vmatprep.subr.mxu0 0.0
    %1628 = vmatpush2.msra.mxu0 0.0
    %1629 = vmatprep.subr.mxu0 0.0
    %1630 = vmatpush2.msra.mxu0 0.0
    %1631 = vmatprep.subr.mxu0 0.0
    %1632 = vmatpush2.msra.mxu0 0.0
    %1633 = vmatprep.subr.mxu0 0.0
    %1634 = vmatpush2.msra.mxu0 0.0
    %1635 = vmatprep.subr.mxu0 0.0
    %1636 = vmatpush2.msra.mxu0 0.0
    %1637 = vmatprep.subr.mxu0 0.0
    %1638 = vmatpush2.msra.mxu0 0.0
    %1639 = vmatprep.subr.mxu0 0.0
    %1640 = vmatpush2.msra.mxu0 0.0
    %1641 = vmatprep.subr.mxu0 0.0
    %1642 = vmatpush2.msra.mxu0 0.0
    %1643 = vmatprep.subr.mxu0 0.0
    %1644 = vmatpush2.msra.mxu0 0.0
    %1645 = vmatprep.subr.mxu0 0.0
    %1646 = vmatpush2.msra.mxu0 0.0
    %1647 = vmatprep.subr.mxu0 0.0
    %1648 = vmatpush2.msra.mxu0 0.0
    %1649 = vmatprep.subr.mxu0 0.0
    %1650 = vmatpush2.msra.mxu0 0.0
    %1651 = vmatprep.mubr.f32.mxu0 0.0
    %1652 = vmatmul.mubr.f32.gmra.mxu0 %v1585
    %v1653 = vpop.f32.mrf.mxu0
    %v1654 = vadd.f32 0.0, %v1653
    %v1655 = vpop.f32.mrf.mxu0
    %1656 = vdwg.mxu0
    %v1658 = vsel %vm500, %v1578, 0
    %v1661 = vsel %vm500, %v1654, 0
    %1663 = vmatprep.subr.mxu0 0.0
    %1664 = vmatpush1.msra.mxu0 0.0
    %1665 = vmatprep.subr.mxu0 0.0
    %1666 = vmatpush1.msra.mxu0 0.0
    %1667 = vmatprep.subr.mxu0 0.0
    %1668 = vmatpush1.msra.mxu0 0.0
    %1669 = vmatprep.subr.mxu0 0.0
    %1670 = vmatpush1.msra.mxu0 0.0
    %1671 = vmatprep.subr.mxu0 0.0
    %1672 = vmatpush1.msra.mxu0 0.0
    %1673 = vmatprep.subr.mxu0 0.0
    %1674 = vmatpush1.msra.mxu0 0.0
    %1675 = vmatprep.subr.mxu0 0.0
    %1676 = vmatpush1.msra.mxu0 0.0
    %1677 = vmatprep.subr.mxu0 0.0
    %1678 = vmatpush1.msra.mxu0 0.0
    %1679 = vmatprep.subr.mxu0 0.0
    %1680 = vmatpush1.msra.mxu0 0.0
    %1681 = vmatprep.subr.mxu0 0.0
    %1682 = vmatpush1.msra.mxu0 0.0
    %1683 = vmatprep.subr.mxu0 0.0
    %1684 = vmatpush1.msra.mxu0 0.0
    %1685 = vmatprep.subr.mxu0 0.0
    %1686 = vmatpush1.msra.mxu0 0.0
    %1687 = vmatprep.subr.mxu0 0.0
    %1688 = vmatpush1.msra.mxu0 0.0
    %1689 = vmatprep.subr.mxu0 0.0
    %1690 = vmatpush1.msra.mxu0 0.0
    %1691 = vmatprep.subr.mxu0 0.0
    %1692 = vmatpush1.msra.mxu0 %v494
    %1693 = vmatprep.subr.mxu0 0.0
    %1694 = vmatpush1.msra.mxu0 %v493
    %1695 = vmatprep.subr.mxu0 0.0
    %1696 = vmatpush2.msra.mxu0 0.0
    %1697 = vmatprep.subr.mxu0 0.0
    %1698 = vmatpush2.msra.mxu0 0.0
    %1699 = vmatprep.subr.mxu0 0.0
    %1700 = vmatpush2.msra.mxu0 0.0
    %1701 = vmatprep.subr.mxu0 0.0
    %1702 = vmatpush2.msra.mxu0 0.0
    %1703 = vmatprep.subr.mxu0 0.0
    %1704 = vmatpush2.msra.mxu0 0.0
    %1705 = vmatprep.subr.mxu0 0.0
    %1706 = vmatpush2.msra.mxu0 0.0
    %1707 = vmatprep.subr.mxu0 0.0
    %1708 = vmatpush2.msra.mxu0 0.0
    %1709 = vmatprep.subr.mxu0 0.0
    %1710 = vmatpush2.msra.mxu0 0.0
    %1711 = vmatprep.subr.mxu0 0.0
    %1712 = vmatpush2.msra.mxu0 0.0
    %1713 = vmatprep.subr.mxu0 0.0
    %1714 = vmatpush2.msra.mxu0 0.0
    %1715 = vmatprep.subr.mxu0 0.0
    %1716 = vmatpush2.msra.mxu0 0.0
    %1717 = vmatprep.subr.mxu0 0.0
    %1718 = vmatpush2.msra.mxu0 0.0
    %1719 = vmatprep.subr.mxu0 0.0
    %1720 = vmatpush2.msra.mxu0 0.0
    %1721 = vmatprep.subr.mxu0 0.0
    %1722 = vmatpush2.msra.mxu0 0.0
    %1723 = vmatprep.subr.mxu0 0.0
    %1724 = vmatpush2.msra.mxu0 0.0
    %1725 = vmatprep.subr.mxu0 0.0
    %1726 = vmatpush2.msra.mxu0 0.0
    %1727 = vmatprep.mubr.f32.mxu0 0.0
    %1728 = vmatmul.mubr.f32.gmra.mxu0 %v1658
    %v1729 = vpop.f32.mrf.mxu0
    %v1730 = vadd.f32 0.0, %v1729
    %v1731 = vpop.f32.mrf.mxu0
    %1732 = vmatprep.mubr.f32.mxu0 0.0
    %1733 = vmatmul.mubr.f32.gmra.mxu0 %v1661
    %v1734 = vpop.f32.mrf.mxu0
    %v1735 = vadd.f32 0.0, %v1734
    %v1736 = vpop.f32.mrf.mxu0
    %1737 = vdwg.mxu0
    %v1738 = vadd.f32 %v1315, %v1730
    %v1739 = vadd.f32 %v1320, %v1735
    %1740 = vrot.lane.b32.xlu0 %v479, 80
    %v1741 = vpop.permute.xlu0 %1740
    %1742 = vrot.lane.b32.xlu0 %v479, 16
    %v1743 = vpop.permute.xlu0 %1742
    %v1744 = vsel %vm500, %v1741, 0
    %v1746 = vsel %vm500, %v1743, 0
    %1748 = vmatprep.subr.mxu0 0.0
    %1749 = vmatpush1.xpose.msra.mxu0 0.0
    %1750 = vmatprep.subr.mxu0 0.0
    %1751 = vmatpush1.xpose.msra.mxu0 0.0
    %1752 = vmatprep.subr.mxu0 0.0
    %1753 = vmatpush1.xpose.msra.mxu0 0.0
    %1754 = vmatprep.subr.mxu0 0.0
    %1755 = vmatpush1.xpose.msra.mxu0 0.0
    %1756 = vmatprep.subr.mxu0 0.0
    %1757 = vmatpush1.xpose.msra.mxu0 0.0
    %1758 = vmatprep.subr.mxu0 0.0
    %1759 = vmatpush1.xpose.msra.mxu0 0.0
    %1760 = vmatprep.subr.mxu0 0.0
    %1761 = vmatpush1.xpose.msra.mxu0 0.0
    %1762 = vmatprep.subr.mxu0 0.0
    %1763 = vmatpush1.xpose.msra.mxu0 0.0
    %1764 = vmatprep.subr.mxu0 0.0
    %1765 = vmatpush1.xpose.msra.mxu0 0.0
    %1766 = vmatprep.subr.mxu0 0.0
    %1767 = vmatpush1.xpose.msra.mxu0 0.0
    %1768 = vmatprep.subr.mxu0 0.0
    %1769 = vmatpush1.xpose.msra.mxu0 0.0
    %1770 = vmatprep.subr.mxu0 0.0
    %1771 = vmatpush1.xpose.msra.mxu0 0.0
    %1772 = vmatprep.subr.mxu0 0.0
    %1773 = vmatpush1.xpose.msra.mxu0 0.0
    %1774 = vmatprep.subr.mxu0 0.0
    %1775 = vmatpush1.xpose.msra.mxu0 0.0
    %1776 = vmatprep.subr.mxu0 0.0
    %1777 = vmatpush1.xpose.msra.mxu0 0.0
    %1778 = vmatprep.subr.mxu0 0.0
    %1779 = vmatpush1.xpose.msra.mxu0 %v1746
    %1780 = vmatprep.subr.mxu0 0.0
    %1781 = vmatpush2.xpose.msra.mxu0 0.0
    %1782 = vmatprep.subr.mxu0 0.0
    %1783 = vmatpush2.xpose.msra.mxu0 0.0
    %1784 = vmatprep.subr.mxu0 0.0
    %1785 = vmatpush2.xpose.msra.mxu0 0.0
    %1786 = vmatprep.subr.mxu0 0.0
    %1787 = vmatpush2.xpose.msra.mxu0 0.0
    %1788 = vmatprep.subr.mxu0 0.0
    %1789 = vmatpush2.xpose.msra.mxu0 0.0
    %1790 = vmatprep.subr.mxu0 0.0
    %1791 = vmatpush2.xpose.msra.mxu0 0.0
    %1792 = vmatprep.subr.mxu0 0.0
    %1793 = vmatpush2.xpose.msra.mxu0 0.0
    %1794 = vmatprep.subr.mxu0 0.0
    %1795 = vmatpush2.xpose.msra.mxu0 0.0
    %1796 = vmatprep.subr.mxu0 0.0
    %1797 = vmatpush2.xpose.msra.mxu0 0.0
    %1798 = vmatprep.subr.mxu0 0.0
    %1799 = vmatpush2.xpose.msra.mxu0 0.0
    %1800 = vmatprep.subr.mxu0 0.0
    %1801 = vmatpush2.xpose.msra.mxu0 0.0
    %1802 = vmatprep.subr.mxu0 0.0
    %1803 = vmatpush2.xpose.msra.mxu0 0.0
    %1804 = vmatprep.subr.mxu0 0.0
    %1805 = vmatpush2.xpose.msra.mxu0 0.0
    %1806 = vmatprep.subr.mxu0 0.0
    %1807 = vmatpush2.xpose.msra.mxu0 0.0
    %1808 = vmatprep.subr.mxu0 0.0
    %1809 = vmatpush2.xpose.msra.mxu0 0.0
    %1810 = vmatprep.subr.mxu0 0.0
    %1811 = vmatpush2.xpose.msra.mxu0 0.0
    %1812 = vmatprep.mubr.f32.mxu0 0.0
    %1813 = vmatmul.mubr.f32.gmra.mxu0 %v1744
    %v1814 = vpop.f32.mrf.mxu0
    %v1815 = vadd.f32 0.0, %v1814
    %v1816 = vpop.f32.mrf.mxu0
    %1817 = vdwg.mxu0
    %1818 = vrot.lane.b32.xlu0 %v485, 80
    %v1819 = vpop.permute.xlu0 %1818
    %1820 = vrot.lane.b32.xlu0 %v485, 16
    %v1821 = vpop.permute.xlu0 %1820
    %v1822 = vsel %vm500, %v1819, 0
    %v1824 = vsel %vm500, %v1821, 0
    %1826 = vmatprep.subr.mxu0 0.0
    %1827 = vmatpush1.xpose.msra.mxu0 0.0
    %1828 = vmatprep.subr.mxu0 0.0
    %1829 = vmatpush1.xpose.msra.mxu0 0.0
    %1830 = vmatprep.subr.mxu0 0.0
    %1831 = vmatpush1.xpose.msra.mxu0 0.0
    %1832 = vmatprep.subr.mxu0 0.0
    %1833 = vmatpush1.xpose.msra.mxu0 0.0
    %1834 = vmatprep.subr.mxu0 0.0
    %1835 = vmatpush1.xpose.msra.mxu0 0.0
    %1836 = vmatprep.subr.mxu0 0.0
    %1837 = vmatpush1.xpose.msra.mxu0 0.0
    %1838 = vmatprep.subr.mxu0 0.0
    %1839 = vmatpush1.xpose.msra.mxu0 0.0
    %1840 = vmatprep.subr.mxu0 0.0
    %1841 = vmatpush1.xpose.msra.mxu0 0.0
    %1842 = vmatprep.subr.mxu0 0.0
    %1843 = vmatpush1.xpose.msra.mxu0 0.0
    %1844 = vmatprep.subr.mxu0 0.0
    %1845 = vmatpush1.xpose.msra.mxu0 0.0
    %1846 = vmatprep.subr.mxu0 0.0
    %1847 = vmatpush1.xpose.msra.mxu0 0.0
    %1848 = vmatprep.subr.mxu0 0.0
    %1849 = vmatpush1.xpose.msra.mxu0 0.0
    %1850 = vmatprep.subr.mxu0 0.0
    %1851 = vmatpush1.xpose.msra.mxu0 0.0
    %1852 = vmatprep.subr.mxu0 0.0
    %1853 = vmatpush1.xpose.msra.mxu0 0.0
    %1854 = vmatprep.subr.mxu0 0.0
    %1855 = vmatpush1.xpose.msra.mxu0 0.0
    %1856 = vmatprep.subr.mxu0 0.0
    %1857 = vmatpush1.xpose.msra.mxu0 %v1824
    %1858 = vmatprep.subr.mxu0 0.0
    %1859 = vmatpush2.xpose.msra.mxu0 0.0
    %1860 = vmatprep.subr.mxu0 0.0
    %1861 = vmatpush2.xpose.msra.mxu0 0.0
    %1862 = vmatprep.subr.mxu0 0.0
    %1863 = vmatpush2.xpose.msra.mxu0 0.0
    %1864 = vmatprep.subr.mxu0 0.0
    %1865 = vmatpush2.xpose.msra.mxu0 0.0
    %1866 = vmatprep.subr.mxu0 0.0
    %1867 = vmatpush2.xpose.msra.mxu0 0.0
    %1868 = vmatprep.subr.mxu0 0.0
    %1869 = vmatpush2.xpose.msra.mxu0 0.0
    %1870 = vmatprep.subr.mxu0 0.0
    %1871 = vmatpush2.xpose.msra.mxu0 0.0
    %1872 = vmatprep.subr.mxu0 0.0
    %1873 = vmatpush2.xpose.msra.mxu0 0.0
    %1874 = vmatprep.subr.mxu0 0.0
    %1875 = vmatpush2.xpose.msra.mxu0 0.0
    %1876 = vmatprep.subr.mxu0 0.0
    %1877 = vmatpush2.xpose.msra.mxu0 0.0
    %1878 = vmatprep.subr.mxu0 0.0
    %1879 = vmatpush2.xpose.msra.mxu0 0.0
    %1880 = vmatprep.subr.mxu0 0.0
    %1881 = vmatpush2.xpose.msra.mxu0 0.0
    %1882 = vmatprep.subr.mxu0 0.0
    %1883 = vmatpush2.xpose.msra.mxu0 0.0
    %1884 = vmatprep.subr.mxu0 0.0
    %1885 = vmatpush2.xpose.msra.mxu0 0.0
    %1886 = vmatprep.subr.mxu0 0.0
    %1887 = vmatpush2.xpose.msra.mxu0 0.0
    %1888 = vmatprep.subr.mxu0 0.0
    %1889 = vmatpush2.xpose.msra.mxu0 0.0
    %1890 = vmatprep.mubr.f32.mxu0 0.0
    %1891 = vmatmul.mubr.f32.gmra.mxu0 %v1822
    %v1892 = vpop.f32.mrf.mxu0
    %v1893 = vadd.f32 0.0, %v1892
    %v1894 = vpop.f32.mrf.mxu0
    %1895 = vdwg.mxu0
    %v1896 = vmul.f32 %v1815, 0.25
    %v1897 = vmul.f32 %v1893, 0.25
    %v1898 = vadd.f32 %v1896, %v333
    %v1899 = vadd.f32 %v1897, %v333
    %v1900 = vsel %vm656, %v1898, -inf
    %1901 = vmax.xlane.f32.xlu0 %v1900
    %v1902 = vpop.xlane.xlu0 %1901
    %v1903 = vsel %vm656, %v1899, -inf
    %1904 = vmax.xlane.f32.xlu0 %v1903
    %v1905 = vpop.xlane.xlu0 %1904
    %v1906 = vsub.f32 %v1898, %v1902
    %v1907 = vsub.f32 %v1899, %v1905
    %v1908 = vmul.f32 %v1906, 1.442695
    %v1909 = vpow.pop %v1908
    %v1910 = vmul.f32 %v1907, 1.442695
    %v1911 = vpow.pop %v1910
    %v1912 = vsel %vm656, %v1909, 0.0
    %1913 = vadd.xlane.f32.xlu0 %v1912
    %v1914 = vpop.xlane.xlu0 %1913
    %v1915 = vsel %vm656, %v1911, 0.0
    %1916 = vadd.xlane.f32.xlu0 %v1915
    %v1917 = vpop.xlane.xlu0 %1916
    %v1918 = vrcp.pop %v1914
    %v1919 = vrcp.pop %v1917
    %v1920 = vmul.f32 %v1909, %v1918
    %v1921 = vmul.f32 %v1911, %v1919
    %1922 = vrot.lane.b32.xlu0 %v481, 80
    %v1923 = vpop.permute.xlu0 %1922
    %v1926 = vsel %vm656, %v1920, 0
    %1928 = vmatprep.subr.mxu0 0.0
    %1929 = vmatpush1.msra.mxu0 0.0
    %1930 = vmatprep.subr.mxu0 0.0
    %1931 = vmatpush1.msra.mxu0 0.0
    %1932 = vmatprep.subr.mxu0 0.0
    %1933 = vmatpush1.msra.mxu0 0.0
    %1934 = vmatprep.subr.mxu0 0.0
    %1935 = vmatpush1.msra.mxu0 0.0
    %1936 = vmatprep.subr.mxu0 0.0
    %1937 = vmatpush1.msra.mxu0 0.0
    %1938 = vmatprep.subr.mxu0 0.0
    %1939 = vmatpush1.msra.mxu0 0.0
    %1940 = vmatprep.subr.mxu0 0.0
    %1941 = vmatpush1.msra.mxu0 0.0
    %1942 = vmatprep.subr.mxu0 0.0
    %1943 = vmatpush1.msra.mxu0 0.0
    %1944 = vmatprep.subr.mxu0 0.0
    %1945 = vmatpush1.msra.mxu0 0.0
    %1946 = vmatprep.subr.mxu0 0.0
    %1947 = vmatpush1.msra.mxu0 0.0
    %1948 = vmatprep.subr.mxu0 0.0
    %1949 = vmatpush1.msra.mxu0 0.0
    %1950 = vmatprep.subr.mxu0 0.0
    %1951 = vmatpush1.msra.mxu0 0.0
    %1952 = vmatprep.subr.mxu0 0.0
    %1953 = vmatpush1.msra.mxu0 0.0
    %1954 = vmatprep.subr.mxu0 0.0
    %1955 = vmatpush1.msra.mxu0 0.0
    %1956 = vmatprep.subr.mxu0 0.0
    %1957 = vmatpush1.msra.mxu0 0.0
    %1958 = vmatprep.subr.mxu0 0.0
    %1959 = vmatpush1.msra.mxu0 %v1923
    %1960 = vmatprep.subr.mxu0 0.0
    %1961 = vmatpush2.msra.mxu0 0.0
    %1962 = vmatprep.subr.mxu0 0.0
    %1963 = vmatpush2.msra.mxu0 0.0
    %1964 = vmatprep.subr.mxu0 0.0
    %1965 = vmatpush2.msra.mxu0 0.0
    %1966 = vmatprep.subr.mxu0 0.0
    %1967 = vmatpush2.msra.mxu0 0.0
    %1968 = vmatprep.subr.mxu0 0.0
    %1969 = vmatpush2.msra.mxu0 0.0
    %1970 = vmatprep.subr.mxu0 0.0
    %1971 = vmatpush2.msra.mxu0 0.0
    %1972 = vmatprep.subr.mxu0 0.0
    %1973 = vmatpush2.msra.mxu0 0.0
    %1974 = vmatprep.subr.mxu0 0.0
    %1975 = vmatpush2.msra.mxu0 0.0
    %1976 = vmatprep.subr.mxu0 0.0
    %1977 = vmatpush2.msra.mxu0 0.0
    %1978 = vmatprep.subr.mxu0 0.0
    %1979 = vmatpush2.msra.mxu0 0.0
    %1980 = vmatprep.subr.mxu0 0.0
    %1981 = vmatpush2.msra.mxu0 0.0
    %1982 = vmatprep.subr.mxu0 0.0
    %1983 = vmatpush2.msra.mxu0 0.0
    %1984 = vmatprep.subr.mxu0 0.0
    %1985 = vmatpush2.msra.mxu0 0.0
    %1986 = vmatprep.subr.mxu0 0.0
    %1987 = vmatpush2.msra.mxu0 0.0
    %1988 = vmatprep.subr.mxu0 0.0
    %1989 = vmatpush2.msra.mxu0 0.0
    %1990 = vmatprep.subr.mxu0 0.0
    %1991 = vmatpush2.msra.mxu0 0.0
    %1992 = vmatprep.mubr.f32.mxu0 0.0
    %1993 = vmatmul.mubr.f32.gmra.mxu0 %v1926
    %v1994 = vpop.f32.mrf.mxu0
    %v1995 = vadd.f32 0.0, %v1994
    %v1996 = vpop.f32.mrf.mxu0
    %1997 = vdwg.mxu0
    %1998 = vrot.lane.b32.xlu0 %v487, 80
    %v1999 = vpop.permute.xlu0 %1998
    %v2002 = vsel %vm656, %v1921, 0
    %2004 = vmatprep.subr.mxu0 0.0
    %2005 = vmatpush1.msra.mxu0 0.0
    %2006 = vmatprep.subr.mxu0 0.0
    %2007 = vmatpush1.msra.mxu0 0.0
    %2008 = vmatprep.subr.mxu0 0.0
    %2009 = vmatpush1.msra.mxu0 0.0
    %2010 = vmatprep.subr.mxu0 0.0
    %2011 = vmatpush1.msra.mxu0 0.0
    %2012 = vmatprep.subr.mxu0 0.0
    %2013 = vmatpush1.msra.mxu0 0.0
    %2014 = vmatprep.subr.mxu0 0.0
    %2015 = vmatpush1.msra.mxu0 0.0
    %2016 = vmatprep.subr.mxu0 0.0
    %2017 = vmatpush1.msra.mxu0 0.0
    %2018 = vmatprep.subr.mxu0 0.0
    %2019 = vmatpush1.msra.mxu0 0.0
    %2020 = vmatprep.subr.mxu0 0.0
    %2021 = vmatpush1.msra.mxu0 0.0
    %2022 = vmatprep.subr.mxu0 0.0
    %2023 = vmatpush1.msra.mxu0 0.0
    %2024 = vmatprep.subr.mxu0 0.0
    %2025 = vmatpush1.msra.mxu0 0.0
    %2026 = vmatprep.subr.mxu0 0.0
    %2027 = vmatpush1.msra.mxu0 0.0
    %2028 = vmatprep.subr.mxu0 0.0
    %2029 = vmatpush1.msra.mxu0 0.0
    %2030 = vmatprep.subr.mxu0 0.0
    %2031 = vmatpush1.msra.mxu0 0.0
    %2032 = vmatprep.subr.mxu0 0.0
    %2033 = vmatpush1.msra.mxu0 0.0
    %2034 = vmatprep.subr.mxu0 0.0
    %2035 = vmatpush1.msra.mxu0 %v1999
    %2036 = vmatprep.subr.mxu0 0.0
    %2037 = vmatpush2.msra.mxu0 0.0
    %2038 = vmatprep.subr.mxu0 0.0
    %2039 = vmatpush2.msra.mxu0 0.0
    %2040 = vmatprep.subr.mxu0 0.0
    %2041 = vmatpush2.msra.mxu0 0.0
    %2042 = vmatprep.subr.mxu0 0.0
    %2043 = vmatpush2.msra.mxu0 0.0
    %2044 = vmatprep.subr.mxu0 0.0
    %2045 = vmatpush2.msra.mxu0 0.0
    %2046 = vmatprep.subr.mxu0 0.0
    %2047 = vmatpush2.msra.mxu0 0.0
    %2048 = vmatprep.subr.mxu0 0.0
    %2049 = vmatpush2.msra.mxu0 0.0
    %2050 = vmatprep.subr.mxu0 0.0
    %2051 = vmatpush2.msra.mxu0 0.0
    %2052 = vmatprep.subr.mxu0 0.0
    %2053 = vmatpush2.msra.mxu0 0.0
    %2054 = vmatprep.subr.mxu0 0.0
    %2055 = vmatpush2.msra.mxu0 0.0
    %2056 = vmatprep.subr.mxu0 0.0
    %2057 = vmatpush2.msra.mxu0 0.0
    %2058 = vmatprep.subr.mxu0 0.0
    %2059 = vmatpush2.msra.mxu0 0.0
    %2060 = vmatprep.subr.mxu0 0.0
    %2061 = vmatpush2.msra.mxu0 0.0
    %2062 = vmatprep.subr.mxu0 0.0
    %2063 = vmatpush2.msra.mxu0 0.0
    %2064 = vmatprep.subr.mxu0 0.0
    %2065 = vmatpush2.msra.mxu0 0.0
    %2066 = vmatprep.subr.mxu0 0.0
    %2067 = vmatpush2.msra.mxu0 0.0
    %2068 = vmatprep.mubr.f32.mxu0 0.0
    %2069 = vmatmul.mubr.f32.gmra.mxu0 %v2002
    %v2070 = vpop.f32.mrf.mxu0
    %v2071 = vadd.f32 0.0, %v2070
    %v2072 = vpop.f32.mrf.mxu0
    %2073 = vdwg.mxu0
    %v2075 = vsel %vm500, %v1995, 0
    %v2078 = vsel %vm500, %v2071, 0
    %2080 = vmatprep.subr.mxu0 0.0
    %2081 = vmatpush1.msra.mxu0 0.0
    %2082 = vmatprep.subr.mxu0 0.0
    %2083 = vmatpush1.msra.mxu0 0.0
    %2084 = vmatprep.subr.mxu0 0.0
    %2085 = vmatpush1.msra.mxu0 0.0
    %2086 = vmatprep.subr.mxu0 0.0
    %2087 = vmatpush1.msra.mxu0 0.0
    %2088 = vmatprep.subr.mxu0 0.0
    %2089 = vmatpush1.msra.mxu0 0.0
    %2090 = vmatprep.subr.mxu0 0.0
    %2091 = vmatpush1.msra.mxu0 0.0
    %2092 = vmatprep.subr.mxu0 0.0
    %2093 = vmatpush1.msra.mxu0 0.0
    %2094 = vmatprep.subr.mxu0 0.0
    %2095 = vmatpush1.msra.mxu0 0.0
    %2096 = vmatprep.subr.mxu0 0.0
    %2097 = vmatpush1.msra.mxu0 0.0
    %2098 = vmatprep.subr.mxu0 0.0
    %2099 = vmatpush1.msra.mxu0 0.0
    %2100 = vmatprep.subr.mxu0 0.0
    %2101 = vmatpush1.msra.mxu0 0.0
    %2102 = vmatprep.subr.mxu0 0.0
    %2103 = vmatpush1.msra.mxu0 0.0
    %2104 = vmatprep.subr.mxu0 0.0
    %2105 = vmatpush1.msra.mxu0 0.0
    %2106 = vmatprep.subr.mxu0 0.0
    %2107 = vmatpush1.msra.mxu0 0.0
    %2108 = vmatprep.subr.mxu0 0.0
    %2109 = vmatpush1.msra.mxu0 %v496
    %2110 = vmatprep.subr.mxu0 0.0
    %2111 = vmatpush1.msra.mxu0 %v495
    %2112 = vmatprep.subr.mxu0 0.0
    %2113 = vmatpush2.msra.mxu0 0.0
    %2114 = vmatprep.subr.mxu0 0.0
    %2115 = vmatpush2.msra.mxu0 0.0
    %2116 = vmatprep.subr.mxu0 0.0
    %2117 = vmatpush2.msra.mxu0 0.0
    %2118 = vmatprep.subr.mxu0 0.0
    %2119 = vmatpush2.msra.mxu0 0.0
    %2120 = vmatprep.subr.mxu0 0.0
    %2121 = vmatpush2.msra.mxu0 0.0
    %2122 = vmatprep.subr.mxu0 0.0
    %2123 = vmatpush2.msra.mxu0 0.0
    %2124 = vmatprep.subr.mxu0 0.0
    %2125 = vmatpush2.msra.mxu0 0.0
    %2126 = vmatprep.subr.mxu0 0.0
    %2127 = vmatpush2.msra.mxu0 0.0
    %2128 = vmatprep.subr.mxu0 0.0
    %2129 = vmatpush2.msra.mxu0 0.0
    %2130 = vmatprep.subr.mxu0 0.0
    %2131 = vmatpush2.msra.mxu0 0.0
    %2132 = vmatprep.subr.mxu0 0.0
    %2133 = vmatpush2.msra.mxu0 0.0
    %2134 = vmatprep.subr.mxu0 0.0
    %2135 = vmatpush2.msra.mxu0 0.0
    %2136 = vmatprep.subr.mxu0 0.0
    %2137 = vmatpush2.msra.mxu0 0.0
    %2138 = vmatprep.subr.mxu0 0.0
    %2139 = vmatpush2.msra.mxu0 0.0
    %2140 = vmatprep.subr.mxu0 0.0
    %2141 = vmatpush2.msra.mxu0 0.0
    %2142 = vmatprep.subr.mxu0 0.0
    %2143 = vmatpush2.msra.mxu0 0.0
    %2144 = vmatprep.mubr.f32.mxu0 0.0
    %2145 = vmatmul.mubr.f32.gmra.mxu0 %v2075
    %v2146 = vpop.f32.mrf.mxu0
    %v2147 = vadd.f32 0.0, %v2146
    %v2148 = vpop.f32.mrf.mxu0
    %2149 = vmatprep.mubr.f32.mxu0 0.0
    %2150 = vmatmul.mubr.f32.gmra.mxu0 %v2078
    %v2151 = vpop.f32.mrf.mxu0
    %v2152 = vadd.f32 0.0, %v2151
    %v2153 = vpop.f32.mrf.mxu0
    %2154 = vdwg.mxu0
    %v2155 = vadd.f32 %v1738, %v2147
    %v2156 = vadd.f32 %v1739, %v2152
    %v2157 = vadd.f32 %v328, %v2155
    %v2158 = vadd.f32 %v329, %v2156
    %v2159 = vld [vmem:[%s14] sm:$0x1]
    %v2161 = vlaneseq
    %v2162 = vshrl.u32 %v2161, 7
    %v2163 = vsub.s32 0, %v2162
    %v2164 = vrot.slane %v2159, %v2163
    %v2166 = vadd.f32 %v2157, %v2164
    %v2167 = vadd.f32 %v2158, %v2164
    %v2168 = vld [vmem:[%s15] sm:$0x1]
    %v2169 = vld [vmem:[%s16] sm:$0x1]
    %v2170 = vsel %vm87, %v2166, 0.0
    %2171 = vadd.xlane.f32.xlu0 %v2170
    %v2172 = vpop.xlane.xlu0 %2171
    %v2173 = vsel %vm87, %v2167, 0.0
    %2174 = vadd.xlane.f32.xlu0 %v2173
    %v2175 = vpop.xlane.xlu0 %2174
    %v2176 = vmul.f32 %v2172, %v275
    %v2177 = vmul.f32 %v2175, %v275
    %v2178 = vsub.f32 %v2166, %v2176
    %v2179 = vsub.f32 %v2167, %v2177
    %v2180 = vmul.f32 %v2178, %v2178
    %v2181 = vmul.f32 %v2179, %v2179
    %v2182 = vsel %vm87, %v2180, 0.0
    %2183 = vadd.xlane.f32.xlu0 %v2182
    %v2184 = vpop.xlane.xlu0 %2183
    %v2185 = vsel %vm87, %v2181, 0.0
    %2186 = vadd.xlane.f32.xlu0 %v2185
    %v2187 = vpop.xlane.xlu0 %2186
    %v2188 = vmul.f32 %v2184, %v275
    %v2189 = vmul.f32 %v2187, %v275
    %v2190 = vadd.f32 %v2188, 1e-05
    %v2191 = vadd.f32 %v2189, 1e-05
    %v2192 = vrsqrt.pop %v2190
    %v2193 = vrsqrt.pop %v2191
    %v2194 = vmul.f32 %v2178, %v2192
    %v2195 = vmul.f32 %v2179, %v2193
    %v2197 = vlaneseq
    %v2198 = vshrl.u32 %v2197, 7
    %v2199 = vsub.s32 0, %v2198
    %v2200 = vrot.slane %v2168, %v2199
    %v2202 = vmul.f32 %v2194, %v2200
    %v2203 = vmul.f32 %v2195, %v2200
    %v2205 = vlaneseq
    %v2206 = vshrl.u32 %v2205, 7
    %v2207 = vsub.s32 0, %v2206
    %v2208 = vrot.slane %v2169, %v2207
    %v2210 = vadd.f32 %v2202, %v2208
    %v2211 = vadd.f32 %v2203, %v2208
    %v2212 = vld [vmem:[%s17] sm:$0xff]
    %v2213 = vld [vmem:[%s17 + $0x8] sm:$0xff]
    %v2214 = vld [vmem:[%s17 + $0x10] sm:$0xff]
    %v2215 = vld [vmem:[%s17 + $0x18] sm:$0xff]
    %v2216 = vld [vmem:[%s17 + $0x20] sm:$0xff]
    %v2217 = vld [vmem:[%s17 + $0x28] sm:$0xff]
    %v2218 = vld [vmem:[%s17 + $0x30] sm:$0xff]
    %v2219 = vld [vmem:[%s17 + $0x38] sm:$0xff]
    %v2220 = vld [vmem:[%s18] sm:$0x1]
    %v2222 = vlaneseq
    %v2223 = vshrl.u32 %v2222, 7
    %v2224 = vsub.s32 0, %v2223
    %v2225 = vrot.slane %v2220, %v2224
    %v2228 = vsel %vm87, %v2210, 0
    %v2231 = vsel %vm87, %v2211, 0
    %2233 = vmatprep.subr.mxu0 0.0
    %2234 = vmatpush1.msra.mxu0 0.0
    %2235 = vmatprep.subr.mxu0 0.0
    %2236 = vmatpush1.msra.mxu0 0.0
    %2237 = vmatprep.subr.mxu0 0.0
    %2238 = vmatpush1.msra.mxu0 0.0
    %2239 = vmatprep.subr.mxu0 0.0
    %2240 = vmatpush1.msra.mxu0 0.0
    %2241 = vmatprep.subr.mxu0 0.0
    %2242 = vmatpush1.msra.mxu0 0.0
    %2243 = vmatprep.subr.mxu0 0.0
    %2244 = vmatpush1.msra.mxu0 0.0
    %2245 = vmatprep.subr.mxu0 0.0
    %2246 = vmatpush1.msra.mxu0 0.0
    %2247 = vmatprep.subr.mxu0 0.0
    %2248 = vmatpush1.msra.mxu0 0.0
    %2249 = vmatprep.subr.mxu0 0.0
    %2250 = vmatpush1.msra.mxu0 %v2219
    %2251 = vmatprep.subr.mxu0 0.0
    %2252 = vmatpush1.msra.mxu0 %v2218
    %2253 = vmatprep.subr.mxu0 0.0
    %2254 = vmatpush1.msra.mxu0 %v2217
    %2255 = vmatprep.subr.mxu0 0.0
    %2256 = vmatpush1.msra.mxu0 %v2216
    %2257 = vmatprep.subr.mxu0 0.0
    %2258 = vmatpush1.msra.mxu0 %v2215
    %2259 = vmatprep.subr.mxu0 0.0
    %2260 = vmatpush1.msra.mxu0 %v2214
    %2261 = vmatprep.subr.mxu0 0.0
    %2262 = vmatpush1.msra.mxu0 %v2213
    %2263 = vmatprep.subr.mxu0 0.0
    %2264 = vmatpush1.msra.mxu0 %v2212
    %2265 = vmatprep.subr.mxu0 0.0
    %2266 = vmatpush2.msra.mxu0 0.0
    %2267 = vmatprep.subr.mxu0 0.0
    %2268 = vmatpush2.msra.mxu0 0.0
    %2269 = vmatprep.subr.mxu0 0.0
    %2270 = vmatpush2.msra.mxu0 0.0
    %2271 = vmatprep.subr.mxu0 0.0
    %2272 = vmatpush2.msra.mxu0 0.0
    %2273 = vmatprep.subr.mxu0 0.0
    %2274 = vmatpush2.msra.mxu0 0.0
    %2275 = vmatprep.subr.mxu0 0.0
    %2276 = vmatpush2.msra.mxu0 0.0
    %2277 = vmatprep.subr.mxu0 0.0
    %2278 = vmatpush2.msra.mxu0 0.0
    %2279 = vmatprep.subr.mxu0 0.0
    %2280 = vmatpush2.msra.mxu0 0.0
    %2281 = vmatprep.subr.mxu0 0.0
    %2282 = vmatpush2.msra.mxu0 0.0
    %2283 = vmatprep.subr.mxu0 0.0
    %2284 = vmatpush2.msra.mxu0 0.0
    %2285 = vmatprep.subr.mxu0 0.0
    %2286 = vmatpush2.msra.mxu0 0.0
    %2287 = vmatprep.subr.mxu0 0.0
    %2288 = vmatpush2.msra.mxu0 0.0
    %2289 = vmatprep.subr.mxu0 0.0
    %2290 = vmatpush2.msra.mxu0 0.0
    %2291 = vmatprep.subr.mxu0 0.0
    %2292 = vmatpush2.msra.mxu0 0.0
    %2293 = vmatprep.subr.mxu0 0.0
    %2294 = vmatpush2.msra.mxu0 0.0
    %2295 = vmatprep.subr.mxu0 0.0
    %2296 = vmatpush2.msra.mxu0 0.0
    %2297 = vmatprep.mubr.f32.mxu0 0.0
    %2298 = vmatmul.mubr.f32.gmra.mxu0 %v2228
    %v2299 = vpop.f32.mrf.mxu0
    %v2300 = vadd.f32 %v2225, %v2299
    %v2301 = vpop.f32.mrf.mxu0
    %2302 = vmatprep.mubr.f32.mxu0 0.0
    %2303 = vmatmul.mubr.f32.gmra.mxu0 %v2231
    %v2304 = vpop.f32.mrf.mxu0
    %v2305 = vadd.f32 %v2225, %v2304
    %v2306 = vpop.f32.mrf.mxu0
    %2307 = vdwg.mxu0
    %v2308 = vmul.f32 %v2300, 0.5
    %v2309 = vmul.f32 %v2305, 0.5
    %v2310 = vmul.f32 %v2300, 0.044715
    %v2311 = vmul.f32 %v2305, 0.044715
    %v2312 = vmul.f32 %v2310, %v2300
    %v2313 = vmul.f32 %v2311, %v2305
    %v2314 = vmul.f32 %v2312, %v2300
    %v2315 = vmul.f32 %v2313, %v2305
    %v2316 = vadd.f32 %v2300, %v2314
    %v2317 = vadd.f32 %v2305, %v2315
    %v2318 = vmul.f32 %v2316, 0.7978846
    %v2319 = vmul.f32 %v2317, 0.7978846
    %v2320 = vtanh.pop %v2318
    %v2321 = vtanh.pop %v2319
    %v2322 = vadd.f32 %v2320, 1.0
    %v2323 = vadd.f32 %v2321, 1.0
    %v2324 = vmul.f32 %v2308, %v2322
    %v2325 = vmul.f32 %v2309, %v2323
    %v2326 = vld [vmem:[%s19] sm:$0xff]
    %v2327 = vld [vmem:[%s19 + $0x8] sm:$0xff]
    %v2328 = vld [vmem:[%s19 + $0x10] sm:$0xff]
    %v2329 = vld [vmem:[%s19 + $0x18] sm:$0xff]
    %v2330 = vld [vmem:[%s19 + $0x20] sm:$0xff]
    %v2331 = vld [vmem:[%s19 + $0x28] sm:$0xff]
    %v2332 = vld [vmem:[%s19 + $0x30] sm:$0xff]
    %v2333 = vld [vmem:[%s19 + $0x38] sm:$0xff]
    %v2334 = vld [vmem:[%s19 + $0x40] sm:$0xff]
    %v2335 = vld [vmem:[%s19 + $0x48] sm:$0xff]
    %v2336 = vld [vmem:[%s19 + $0x50] sm:$0xff]
    %v2337 = vld [vmem:[%s19 + $0x58] sm:$0xff]
    %v2338 = vld [vmem:[%s19 + $0x60] sm:$0xff]
    %v2339 = vld [vmem:[%s19 + $0x68] sm:$0xff]
    %v2340 = vld [vmem:[%s19 + $0x70] sm:$0xff]
    %v2341 = vld [vmem:[%s19 + $0x78] sm:$0xff]
    %2342 = vmatprep.subr.mxu0 0.0
    %2343 = vmatpush1.msra.mxu0 %v2341
    %2344 = vmatprep.subr.mxu0 0.0
    %2345 = vmatpush1.msra.mxu0 %v2340
    %2346 = vmatprep.subr.mxu0 0.0
    %2347 = vmatpush1.msra.mxu0 %v2339
    %2348 = vmatprep.subr.mxu0 0.0
    %2349 = vmatpush1.msra.mxu0 %v2338
    %2350 = vmatprep.subr.mxu0 0.0
    %2351 = vmatpush1.msra.mxu0 %v2337
    %2352 = vmatprep.subr.mxu0 0.0
    %2353 = vmatpush1.msra.mxu0 %v2336
    %2354 = vmatprep.subr.mxu0 0.0
    %2355 = vmatpush1.msra.mxu0 %v2335
    %2356 = vmatprep.subr.mxu0 0.0
    %2357 = vmatpush1.msra.mxu0 %v2334
    %2358 = vmatprep.subr.mxu0 0.0
    %2359 = vmatpush1.msra.mxu0 %v2333
    %2360 = vmatprep.subr.mxu0 0.0
    %2361 = vmatpush1.msra.mxu0 %v2332
    %2362 = vmatprep.subr.mxu0 0.0
    %2363 = vmatpush1.msra.mxu0 %v2331
    %2364 = vmatprep.subr.mxu0 0.0
    %2365 = vmatpush1.msra.mxu0 %v2330
    %2366 = vmatprep.subr.mxu0 0.0
    %2367 = vmatpush1.msra.mxu0 %v2329
    %2368 = vmatprep.subr.mxu0 0.0
    %2369 = vmatpush1.msra.mxu0 %v2328
    %2370 = vmatprep.subr.mxu0 0.0
    %2371 = vmatpush1.msra.mxu0 %v2327
    %2372 = vmatprep.subr.mxu0 0.0
    %2373 = vmatpush1.msra.mxu0 %v2326
    %2374 = vmatprep.subr.mxu0 0.0
    %2375 = vmatpush2.msra.mxu0 0.0
    %2376 = vmatprep.subr.mxu0 0.0
    %2377 = vmatpush2.msra.mxu0 0.0
    %2378 = vmatprep.subr.mxu0 0.0
    %2379 = vmatpush2.msra.mxu0 0.0
    %2380 = vmatprep.subr.mxu0 0.0
    %2381 = vmatpush2.msra.mxu0 0.0
    %2382 = vmatprep.subr.mxu0 0.0
    %2383 = vmatpush2.msra.mxu0 0.0
    %2384 = vmatprep.subr.mxu0 0.0
    %2385 = vmatpush2.msra.mxu0 0.0
    %2386 = vmatprep.subr.mxu0 0.0
    %2387 = vmatpush2.msra.mxu0 0.0
    %2388 = vmatprep.subr.mxu0 0.0
    %2389 = vmatpush2.msra.mxu0 0.0
    %2390 = vmatprep.subr.mxu0 0.0
    %2391 = vmatpush2.msra.mxu0 0.0
    %2392 = vmatprep.subr.mxu0 0.0
    %2393 = vmatpush2.msra.mxu0 0.0
    %2394 = vmatprep.subr.mxu0 0.0
    %2395 = vmatpush2.msra.mxu0 0.0
    %2396 = vmatprep.subr.mxu0 0.0
    %2397 = vmatpush2.msra.mxu0 0.0
    %2398 = vmatprep.subr.mxu0 0.0
    %2399 = vmatpush2.msra.mxu0 0.0
    %2400 = vmatprep.subr.mxu0 0.0
    %2401 = vmatpush2.msra.mxu0 0.0
    %2402 = vmatprep.subr.mxu0 0.0
    %2403 = vmatpush2.msra.mxu0 0.0
    %2404 = vmatprep.subr.mxu0 0.0
    %2405 = vmatpush2.msra.mxu0 0.0
    %2406 = vmatprep.mubr.f32.mxu0 0.0
    %2407 = vmatmul.mubr.f32.gmra.mxu0 %v2324
    %v2408 = vpop.f32.mrf.mxu0
    %v2409 = vadd.f32 0.0, %v2408
    %v2410 = vpop.f32.mrf.mxu0
    %2411 = vmatprep.mubr.f32.mxu0 0.0
    %2412 = vmatmul.mubr.f32.gmra.mxu0 %v2325
    %v2413 = vpop.f32.mrf.mxu0
    %v2414 = vadd.f32 0.0, %v2413
    %v2415 = vpop.f32.mrf.mxu0
    %2416 = vdwg.mxu0
    %v2417 = vadd.f32 %v2166, %v2409
    %v2418 = vadd.f32 %v2167, %v2414
    %v2419 = vld [vmem:[%s20] sm:$0x1]
    %v2421 = vlaneseq
    %v2422 = vshrl.u32 %v2421, 7
    %v2423 = vsub.s32 0, %v2422
    %v2424 = vrot.slane %v2419, %v2423
    %v2426 = vadd.f32 %v2417, %v2424
    %v2427 = vadd.f32 %v2418, %v2424
    %s2428 = scalar_lea.vmem %s9, 1
    %v2429 = vld [vmem:[%s2428] sm:$0x1]
    %s2430 = scalar_lea.vmem %s10, 1
    %v2431 = vld [vmem:[%s2430] sm:$0x1]
    %v2432 = vsel %vm87, %v2426, 0.0
    %2433 = vadd.xlane.f32.xlu0 %v2432
    %v2434 = vpop.xlane.xlu0 %2433
    %v2435 = vsel %vm87, %v2427, 0.0
    %2436 = vadd.xlane.f32.xlu0 %v2435
    %v2437 = vpop.xlane.xlu0 %2436
    %v2438 = vmul.f32 %v2434, %v275
    %v2439 = vmul.f32 %v2437, %v275
    %v2440 = vsub.f32 %v2426, %v2438
    %v2441 = vsub.f32 %v2427, %v2439
    %v2442 = vmul.f32 %v2440, %v2440
    %v2443 = vmul.f32 %v2441, %v2441
    %v2444 = vsel %vm87, %v2442, 0.0
    %2445 = vadd.xlane.f32.xlu0 %v2444
    %v2446 = vpop.xlane.xlu0 %2445
    %v2447 = vsel %vm87, %v2443, 0.0
    %2448 = vadd.xlane.f32.xlu0 %v2447
    %v2449 = vpop.xlane.xlu0 %2448
    %v2450 = vmul.f32 %v2446, %v275
    %v2451 = vmul.f32 %v2449, %v275
    %v2452 = vadd.f32 %v2450, 1e-05
    %v2453 = vadd.f32 %v2451, 1e-05
    %v2454 = vrsqrt.pop %v2452
    %v2455 = vrsqrt.pop %v2453
    %v2456 = vmul.f32 %v2440, %v2454
    %v2457 = vmul.f32 %v2441, %v2455
    %v2459 = vlaneseq
    %v2460 = vshrl.u32 %v2459, 7
    %v2461 = vsub.s32 0, %v2460
    %v2462 = vrot.slane %v2429, %v2461
    %v2464 = vmul.f32 %v2456, %v2462
    %v2465 = vmul.f32 %v2457, %v2462
    %v2467 = vlaneseq
    %v2468 = vshrl.u32 %v2467, 7
    %v2469 = vsub.s32 0, %v2468
    %v2470 = vrot.slane %v2431, %v2469
    %v2472 = vadd.f32 %v2464, %v2470
    %v2473 = vadd.f32 %v2465, %v2470
    %s2474 = scalar_lea.vmem %s11, 128
    %v2475 = vld [vmem:[%s2474] sm:$0xff]
    %v2476 = vld [vmem:[%s2474 + $0x8] sm:$0xff]
    %v2477 = vld [vmem:[%s2474 + $0x10] sm:$0xff]
    %v2478 = vld [vmem:[%s2474 + $0x18] sm:$0xff]
    %v2479 = vld [vmem:[%s2474 + $0x20] sm:$0xff]
    %v2480 = vld [vmem:[%s2474 + $0x28] sm:$0xff]
    %v2481 = vld [vmem:[%s2474 + $0x30] sm:$0xff]
    %v2482 = vld [vmem:[%s2474 + $0x38] sm:$0xff]
    %v2483 = vld [vmem:[%s2474 + $0x40] sm:$0xff]
    %v2484 = vld [vmem:[%s2474 + $0x48] sm:$0xff]
    %v2485 = vld [vmem:[%s2474 + $0x50] sm:$0xff]
    %v2486 = vld [vmem:[%s2474 + $0x58] sm:$0xff]
    %v2487 = vld [vmem:[%s2474 + $0x60] sm:$0xff]
    %v2488 = vld [vmem:[%s2474 + $0x68] sm:$0xff]
    %v2489 = vld [vmem:[%s2474 + $0x70] sm:$0xff]
    %v2490 = vld [vmem:[%s2474 + $0x78] sm:$0xff]
    %s2491 = scalar_lea.vmem %s12, 2
    %v2492 = vld [vmem:[%s2491] sm:$0x3]
    %v2494 = vlaneseq
    %v2495 = vshrl.u32 %v2494, 7
    %v2496 = vsub.s32 0, %v2495
    %v2497 = vrot.slane %v2492, %v2496
    %v2498 = vlaneseq
    %v2499 = vshrl.u32 %v2498, 7
    %v2500 = vsub.s32 1, %v2499
    %v2501 = vrot.slane %v2492, %v2500
    %v2505 = vsel %vm87, %v2472, 0
    %v2508 = vsel %vm87, %v2473, 0
    %2510 = vmatprep.subr.mxu0 0.0
    %2511 = vmatpush1.msra.mxu0 0.0
    %2512 = vmatprep.subr.mxu0 0.0
    %2513 = vmatpush1.msra.mxu0 0.0
    %2514 = vmatprep.subr.mxu0 0.0
    %2515 = vmatpush1.msra.mxu0 0.0
    %2516 = vmatprep.subr.mxu0 0.0
    %2517 = vmatpush1.msra.mxu0 0.0
    %2518 = vmatprep.subr.mxu0 0.0
    %2519 = vmatpush1.msra.mxu0 0.0
    %2520 = vmatprep.subr.mxu0 0.0
    %2521 = vmatpush1.msra.mxu0 0.0
    %2522 = vmatprep.subr.mxu0 0.0
    %2523 = vmatpush1.msra.mxu0 0.0
    %2524 = vmatprep.subr.mxu0 0.0
    %2525 = vmatpush1.msra.mxu0 0.0
    %2526 = vmatprep.subr.mxu0 %v2490
    %2527 = vmatpush1.msra.mxu0 %v2489
    %2528 = vmatprep.subr.mxu0 %v2488
    %2529 = vmatpush1.msra.mxu0 %v2487
    %2530 = vmatprep.subr.mxu0 %v2486
    %2531 = vmatpush1.msra.mxu0 %v2485
    %2532 = vmatprep.subr.mxu0 %v2484
    %2533 = vmatpush1.msra.mxu0 %v2483
    %2534 = vmatprep.subr.mxu0 %v2482
    %2535 = vmatpush1.msra.mxu0 %v2481
    %2536 = vmatprep.subr.mxu0 %v2480
    %2537 = vmatpush1.msra.mxu0 %v2479
    %2538 = vmatprep.subr.mxu0 %v2478
    %2539 = vmatpush1.msra.mxu0 %v2477
    %2540 = vmatprep.subr.mxu0 %v2476
    %2541 = vmatpush1.msra.mxu0 %v2475
    %2542 = vmatprep.subr.mxu0 0.0
    %2543 = vmatpush2.msra.mxu0 0.0
    %2544 = vmatprep.subr.mxu0 0.0
    %2545 = vmatpush2.msra.mxu0 0.0
    %2546 = vmatprep.subr.mxu0 0.0
    %2547 = vmatpush2.msra.mxu0 0.0
    %2548 = vmatprep.subr.mxu0 0.0
    %2549 = vmatpush2.msra.mxu0 0.0
    %2550 = vmatprep.subr.mxu0 0.0
    %2551 = vmatpush2.msra.mxu0 0.0
    %2552 = vmatprep.subr.mxu0 0.0
    %2553 = vmatpush2.msra.mxu0 0.0
    %2554 = vmatprep.subr.mxu0 0.0
    %2555 = vmatpush2.msra.mxu0 0.0
    %2556 = vmatprep.subr.mxu0 0.0
    %2557 = vmatpush2.msra.mxu0 0.0
    %2558 = vmatprep.subr.mxu0 0.0
    %2559 = vmatpush2.msra.mxu0 0.0
    %2560 = vmatprep.subr.mxu0 0.0
    %2561 = vmatpush2.msra.mxu0 0.0
    %2562 = vmatprep.subr.mxu0 0.0
    %2563 = vmatpush2.msra.mxu0 0.0
    %2564 = vmatprep.subr.mxu0 0.0
    %2565 = vmatpush2.msra.mxu0 0.0
    %2566 = vmatprep.subr.mxu0 0.0
    %2567 = vmatpush2.msra.mxu0 0.0
    %2568 = vmatprep.subr.mxu0 0.0
    %2569 = vmatpush2.msra.mxu0 0.0
    %2570 = vmatprep.subr.mxu0 0.0
    %2571 = vmatpush2.msra.mxu0 0.0
    %2572 = vmatprep.subr.mxu0 0.0
    %2573 = vmatpush2.msra.mxu0 0.0
    %2574 = vmatprep.mubr.f32.mxu0 0.0
    %2575 = vmatmul.mubr.f32.gmra.mxu0 %v2505
    %v2576 = vpop.f32.mrf.mxu0
    %v2577 = vadd.f32 %v2497, %v2576
    %v2578 = vpop.f32.mrf.mxu0
    %v2579 = vadd.f32 %v2501, %v2578
    %2580 = vmatprep.mubr.f32.mxu0 0.0
    %2581 = vmatmul.mubr.f32.gmra.mxu0 %v2508
    %v2582 = vpop.f32.mrf.mxu0
    %v2583 = vadd.f32 %v2497, %v2582
    %v2584 = vpop.f32.mrf.mxu0
    %v2585 = vadd.f32 %v2501, %v2584
    %2586 = vdwg.mxu0
    %s2587 = scalar_lea.vmem %s13, 64
    %v2588 = vld [vmem:[%s2587] sm:$0xff]
    %v2589 = vld [vmem:[%s2587 + $0x8] sm:$0xff]
    %v2590 = vld [vmem:[%s2587 + $0x10] sm:$0xff]
    %v2591 = vld [vmem:[%s2587 + $0x18] sm:$0xff]
    %v2592 = vld [vmem:[%s2587 + $0x20] sm:$0xff]
    %v2593 = vld [vmem:[%s2587 + $0x28] sm:$0xff]
    %v2594 = vld [vmem:[%s2587 + $0x30] sm:$0xff]
    %v2595 = vld [vmem:[%s2587 + $0x38] sm:$0xff]
    %2597 = vrot.lane.b32.xlu0 %v2577, 64
    %v2598 = vpop.permute.xlu0 %2597
    %v2599 = vsel %vm500, %v2577, 0
    %v2601 = vsel %vm500, %v2598, 0
    %2603 = vmatprep.subr.mxu0 0.0
    %2604 = vmatpush1.xpose.msra.mxu0 0.0
    %2605 = vmatprep.subr.mxu0 0.0
    %2606 = vmatpush1.xpose.msra.mxu0 0.0
    %2607 = vmatprep.subr.mxu0 0.0
    %2608 = vmatpush1.xpose.msra.mxu0 0.0
    %2609 = vmatprep.subr.mxu0 0.0
    %2610 = vmatpush1.xpose.msra.mxu0 0.0
    %2611 = vmatprep.subr.mxu0 0.0
    %2612 = vmatpush1.xpose.msra.mxu0 0.0
    %2613 = vmatprep.subr.mxu0 0.0
    %2614 = vmatpush1.xpose.msra.mxu0 0.0
    %2615 = vmatprep.subr.mxu0 0.0
    %2616 = vmatpush1.xpose.msra.mxu0 0.0
    %2617 = vmatprep.subr.mxu0 0.0
    %2618 = vmatpush1.xpose.msra.mxu0 0.0
    %2619 = vmatprep.subr.mxu0 0.0
    %2620 = vmatpush1.xpose.msra.mxu0 0.0
    %2621 = vmatprep.subr.mxu0 0.0
    %2622 = vmatpush1.xpose.msra.mxu0 0.0
    %2623 = vmatprep.subr.mxu0 0.0
    %2624 = vmatpush1.xpose.msra.mxu0 0.0
    %2625 = vmatprep.subr.mxu0 0.0
    %2626 = vmatpush1.xpose.msra.mxu0 0.0
    %2627 = vmatprep.subr.mxu0 0.0
    %2628 = vmatpush1.xpose.msra.mxu0 0.0
    %2629 = vmatprep.subr.mxu0 0.0
    %2630 = vmatpush1.xpose.msra.mxu0 0.0
    %2631 = vmatprep.subr.mxu0 0.0
    %2632 = vmatpush1.xpose.msra.mxu0 0.0
    %2633 = vmatprep.subr.mxu0 0.0
    %2634 = vmatpush1.xpose.msra.mxu0 %v2601
    %2635 = vmatprep.subr.mxu0 0.0
    %2636 = vmatpush2.xpose.msra.mxu0 0.0
    %2637 = vmatprep.subr.mxu0 0.0
    %2638 = vmatpush2.xpose.msra.mxu0 0.0
    %2639 = vmatprep.subr.mxu0 0.0
    %2640 = vmatpush2.xpose.msra.mxu0 0.0
    %2641 = vmatprep.subr.mxu0 0.0
    %2642 = vmatpush2.xpose.msra.mxu0 0.0
    %2643 = vmatprep.subr.mxu0 0.0
    %2644 = vmatpush2.xpose.msra.mxu0 0.0
    %2645 = vmatprep.subr.mxu0 0.0
    %2646 = vmatpush2.xpose.msra.mxu0 0.0
    %2647 = vmatprep.subr.mxu0 0.0
    %2648 = vmatpush2.xpose.msra.mxu0 0.0
    %2649 = vmatprep.subr.mxu0 0.0
    %2650 = vmatpush2.xpose.msra.mxu0 0.0
    %2651 = vmatprep.subr.mxu0 0.0
    %2652 = vmatpush2.xpose.msra.mxu0 0.0
    %2653 = vmatprep.subr.mxu0 0.0
    %2654 = vmatpush2.xpose.msra.mxu0 0.0
    %2655 = vmatprep.subr.mxu0 0.0
    %2656 = vmatpush2.xpose.msra.mxu0 0.0
    %2657 = vmatprep.subr.mxu0 0.0
    %2658 = vmatpush2.xpose.msra.mxu0 0.0
    %2659 = vmatprep.subr.mxu0 0.0
    %2660 = vmatpush2.xpose.msra.mxu0 0.0
    %2661 = vmatprep.subr.mxu0 0.0
    %2662 = vmatpush2.xpose.msra.mxu0 0.0
    %2663 = vmatprep.subr.mxu0 0.0
    %2664 = vmatpush2.xpose.msra.mxu0 0.0
    %2665 = vmatprep.subr.mxu0 0.0
    %2666 = vmatpush2.xpose.msra.mxu0 0.0
    %2667 = vmatprep.mubr.f32.mxu0 0.0
    %2668 = vmatmul.mubr.f32.gmra.mxu0 %v2599
    %v2669 = vpop.f32.mrf.mxu0
    %v2670 = vadd.f32 0.0, %v2669
    %v2671 = vpop.f32.mrf.mxu0
    %2672 = vdwg.mxu0
    %2674 = vrot.lane.b32.xlu0 %v2583, 64
    %v2675 = vpop.permute.xlu0 %2674
    %v2676 = vsel %vm500, %v2583, 0
    %v2678 = vsel %vm500, %v2675, 0
    %2680 = vmatprep.subr.mxu0 0.0
    %2681 = vmatpush1.xpose.msra.mxu0 0.0
    %2682 = vmatprep.subr.mxu0 0.0
    %2683 = vmatpush1.xpose.msra.mxu0 0.0
    %2684 = vmatprep.subr.mxu0 0.0
    %2685 = vmatpush1.xpose.msra.mxu0 0.0
    %2686 = vmatprep.subr.mxu0 0.0
    %2687 = vmatpush1.xpose.msra.mxu0 0.0
    %2688 = vmatprep.subr.mxu0 0.0
    %2689 = vmatpush1.xpose.msra.mxu0 0.0
    %2690 = vmatprep.subr.mxu0 0.0
    %2691 = vmatpush1.xpose.msra.mxu0 0.0
    %2692 = vmatprep.subr.mxu0 0.0
    %2693 = vmatpush1.xpose.msra.mxu0 0.0
    %2694 = vmatprep.subr.mxu0 0.0
    %2695 = vmatpush1.xpose.msra.mxu0 0.0
    %2696 = vmatprep.subr.mxu0 0.0
    %2697 = vmatpush1.xpose.msra.mxu0 0.0
    %2698 = vmatprep.subr.mxu0 0.0
    %2699 = vmatpush1.xpose.msra.mxu0 0.0
    %2700 = vmatprep.subr.mxu0 0.0
    %2701 = vmatpush1.xpose.msra.mxu0 0.0
    %2702 = vmatprep.subr.mxu0 0.0
    %2703 = vmatpush1.xpose.msra.mxu0 0.0
    %2704 = vmatprep.subr.mxu0 0.0
    %2705 = vmatpush1.xpose.msra.mxu0 0.0
    %2706 = vmatprep.subr.mxu0 0.0
    %2707 = vmatpush1.xpose.msra.mxu0 0.0
    %2708 = vmatprep.subr.mxu0 0.0
    %2709 = vmatpush1.xpose.msra.mxu0 0.0
    %2710 = vmatprep.subr.mxu0 0.0
    %2711 = vmatpush1.xpose.msra.mxu0 %v2678
    %2712 = vmatprep.subr.mxu0 0.0
    %2713 = vmatpush2.xpose.msra.mxu0 0.0
    %2714 = vmatprep.subr.mxu0 0.0
    %2715 = vmatpush2.xpose.msra.mxu0 0.0
    %2716 = vmatprep.subr.mxu0 0.0
    %2717 = vmatpush2.xpose.msra.mxu0 0.0
    %2718 = vmatprep.subr.mxu0 0.0
    %2719 = vmatpush2.xpose.msra.mxu0 0.0
    %2720 = vmatprep.subr.mxu0 0.0
    %2721 = vmatpush2.xpose.msra.mxu0 0.0
    %2722 = vmatprep.subr.mxu0 0.0
    %2723 = vmatpush2.xpose.msra.mxu0 0.0
    %2724 = vmatprep.subr.mxu0 0.0
    %2725 = vmatpush2.xpose.msra.mxu0 0.0
    %2726 = vmatprep.subr.mxu0 0.0
    %2727 = vmatpush2.xpose.msra.mxu0 0.0
    %2728 = vmatprep.subr.mxu0 0.0
    %2729 = vmatpush2.xpose.msra.mxu0 0.0
    %2730 = vmatprep.subr.mxu0 0.0
    %2731 = vmatpush2.xpose.msra.mxu0 0.0
    %2732 = vmatprep.subr.mxu0 0.0
    %2733 = vmatpush2.xpose.msra.mxu0 0.0
    %2734 = vmatprep.subr.mxu0 0.0
    %2735 = vmatpush2.xpose.msra.mxu0 0.0
    %2736 = vmatprep.subr.mxu0 0.0
    %2737 = vmatpush2.xpose.msra.mxu0 0.0
    %2738 = vmatprep.subr.mxu0 0.0
    %2739 = vmatpush2.xpose.msra.mxu0 0.0
    %2740 = vmatprep.subr.mxu0 0.0
    %2741 = vmatpush2.xpose.msra.mxu0 0.0
    %2742 = vmatprep.subr.mxu0 0.0
    %2743 = vmatpush2.xpose.msra.mxu0 0.0
    %2744 = vmatprep.mubr.f32.mxu0 0.0
    %2745 = vmatmul.mubr.f32.gmra.mxu0 %v2676
    %v2746 = vpop.f32.mrf.mxu0
    %v2747 = vadd.f32 0.0, %v2746
    %v2748 = vpop.f32.mrf.mxu0
    %2749 = vdwg.mxu0
    %v2750 = vmul.f32 %v2670, 0.25
    %v2751 = vmul.f32 %v2747, 0.25
    %v2752 = vadd.f32 %v2750, %v333
    %v2753 = vadd.f32 %v2751, %v333
    %v2754 = vsel %vm656, %v2752, -inf
    %2755 = vmax.xlane.f32.xlu0 %v2754
    %v2756 = vpop.xlane.xlu0 %2755
    %v2757 = vsel %vm656, %v2753, -inf
    %2758 = vmax.xlane.f32.xlu0 %v2757
    %v2759 = vpop.xlane.xlu0 %2758
    %v2760 = vsub.f32 %v2752, %v2756
    %v2761 = vsub.f32 %v2753, %v2759
    %v2762 = vmul.f32 %v2760, 1.442695
    %v2763 = vpow.pop %v2762
    %v2764 = vmul.f32 %v2761, 1.442695
    %v2765 = vpow.pop %v2764
    %v2766 = vsel %vm656, %v2763, 0.0
    %2767 = vadd.xlane.f32.xlu0 %v2766
    %v2768 = vpop.xlane.xlu0 %2767
    %v2769 = vsel %vm656, %v2765, 0.0
    %2770 = vadd.xlane.f32.xlu0 %v2769
    %v2771 = vpop.xlane.xlu0 %2770
    %v2772 = vrcp.pop %v2768
    %v2773 = vrcp.pop %v2771
    %v2774 = vmul.f32 %v2763, %v2772
    %v2775 = vmul.f32 %v2765, %v2773
    %v2777 = vsel %vm656, %v2774, 0
    %2779 = vmatprep.subr.mxu0 0.0
    %2780 = vmatpush1.msra.mxu0 0.0
    %2781 = vmatprep.subr.mxu0 0.0
    %2782 = vmatpush1.msra.mxu0 0.0
    %2783 = vmatprep.subr.mxu0 0.0
    %2784 = vmatpush1.msra.mxu0 0.0
    %2785 = vmatprep.subr.mxu0 0.0
    %2786 = vmatpush1.msra.mxu0 0.0
    %2787 = vmatprep.subr.mxu0 0.0
    %2788 = vmatpush1.msra.mxu0 0.0
    %2789 = vmatprep.subr.mxu0 0.0
    %2790 = vmatpush1.msra.mxu0 0.0
    %2791 = vmatprep.subr.mxu0 0.0
    %2792 = vmatpush1.msra.mxu0 0.0
    %2793 = vmatprep.subr.mxu0 0.0
    %2794 = vmatpush1.msra.mxu0 0.0
    %2795 = vmatprep.subr.mxu0 0.0
    %2796 = vmatpush1.msra.mxu0 0.0
    %2797 = vmatprep.subr.mxu0 0.0
    %2798 = vmatpush1.msra.mxu0 0.0
    %2799 = vmatprep.subr.mxu0 0.0
    %2800 = vmatpush1.msra.mxu0 0.0
    %2801 = vmatprep.subr.mxu0 0.0
    %2802 = vmatpush1.msra.mxu0 0.0
    %2803 = vmatprep.subr.mxu0 0.0
    %2804 = vmatpush1.msra.mxu0 0.0
    %2805 = vmatprep.subr.mxu0 0.0
    %2806 = vmatpush1.msra.mxu0 0.0
    %2807 = vmatprep.subr.mxu0 0.0
    %2808 = vmatpush1.msra.mxu0 0.0
    %2809 = vmatprep.subr.mxu0 0.0
    %2810 = vmatpush1.msra.mxu0 %v2579
    %2811 = vmatprep.subr.mxu0 0.0
    %2812 = vmatpush2.msra.mxu0 0.0
    %2813 = vmatprep.subr.mxu0 0.0
    %2814 = vmatpush2.msra.mxu0 0.0
    %2815 = vmatprep.subr.mxu0 0.0
    %2816 = vmatpush2.msra.mxu0 0.0
    %2817 = vmatprep.subr.mxu0 0.0
    %2818 = vmatpush2.msra.mxu0 0.0
    %2819 = vmatprep.subr.mxu0 0.0
    %2820 = vmatpush2.msra.mxu0 0.0
    %2821 = vmatprep.subr.mxu0 0.0
    %2822 = vmatpush2.msra.mxu0 0.0
    %2823 = vmatprep.subr.mxu0 0.0
    %2824 = vmatpush2.msra.mxu0 0.0
    %2825 = vmatprep.subr.mxu0 0.0
    %2826 = vmatpush2.msra.mxu0 0.0
    %2827 = vmatprep.subr.mxu0 0.0
    %2828 = vmatpush2.msra.mxu0 0.0
    %2829 = vmatprep.subr.mxu0 0.0
    %2830 = vmatpush2.msra.mxu0 0.0
    %2831 = vmatprep.subr.mxu0 0.0
    %2832 = vmatpush2.msra.mxu0 0.0
    %2833 = vmatprep.subr.mxu0 0.0
    %2834 = vmatpush2.msra.mxu0 0.0
    %2835 = vmatprep.subr.mxu0 0.0
    %2836 = vmatpush2.msra.mxu0 0.0
    %2837 = vmatprep.subr.mxu0 0.0
    %2838 = vmatpush2.msra.mxu0 0.0
    %2839 = vmatprep.subr.mxu0 0.0
    %2840 = vmatpush2.msra.mxu0 0.0
    %2841 = vmatprep.subr.mxu0 0.0
    %2842 = vmatpush2.msra.mxu0 0.0
    %2843 = vmatprep.mubr.f32.mxu0 0.0
    %2844 = vmatmul.mubr.f32.gmra.mxu0 %v2777
    %v2845 = vpop.f32.mrf.mxu0
    %v2846 = vadd.f32 0.0, %v2845
    %v2847 = vpop.f32.mrf.mxu0
    %2848 = vdwg.mxu0
    %v2850 = vsel %vm656, %v2775, 0
    %2852 = vmatprep.subr.mxu0 0.0
    %2853 = vmatpush1.msra.mxu0 0.0
    %2854 = vmatprep.subr.mxu0 0.0
    %2855 = vmatpush1.msra.mxu0 0.0
    %2856 = vmatprep.subr.mxu0 0.0
    %2857 = vmatpush1.msra.mxu0 0.0
    %2858 = vmatprep.subr.mxu0 0.0
    %2859 = vmatpush1.msra.mxu0 0.0
    %2860 = vmatprep.subr.mxu0 0.0
    %2861 = vmatpush1.msra.mxu0 0.0
    %2862 = vmatprep.subr.mxu0 0.0
    %2863 = vmatpush1.msra.mxu0 0.0
    %2864 = vmatprep.subr.mxu0 0.0
    %2865 = vmatpush1.msra.mxu0 0.0
    %2866 = vmatprep.subr.mxu0 0.0
    %2867 = vmatpush1.msra.mxu0 0.0
    %2868 = vmatprep.subr.mxu0 0.0
    %2869 = vmatpush1.msra.mxu0 0.0
    %2870 = vmatprep.subr.mxu0 0.0
    %2871 = vmatpush1.msra.mxu0 0.0
    %2872 = vmatprep.subr.mxu0 0.0
    %2873 = vmatpush1.msra.mxu0 0.0
    %2874 = vmatprep.subr.mxu0 0.0
    %2875 = vmatpush1.msra.mxu0 0.0
    %2876 = vmatprep.subr.mxu0 0.0
    %2877 = vmatpush1.msra.mxu0 0.0
    %2878 = vmatprep.subr.mxu0 0.0
    %2879 = vmatpush1.msra.mxu0 0.0
    %2880 = vmatprep.subr.mxu0 0.0
    %2881 = vmatpush1.msra.mxu0 0.0
    %2882 = vmatprep.subr.mxu0 0.0
    %2883 = vmatpush1.msra.mxu0 %v2585
    %2884 = vmatprep.subr.mxu0 0.0
    %2885 = vmatpush2.msra.mxu0 0.0
    %2886 = vmatprep.subr.mxu0 0.0
    %2887 = vmatpush2.msra.mxu0 0.0
    %2888 = vmatprep.subr.mxu0 0.0
    %2889 = vmatpush2.msra.mxu0 0.0
    %2890 = vmatprep.subr.mxu0 0.0
    %2891 = vmatpush2.msra.mxu0 0.0
    %2892 = vmatprep.subr.mxu0 0.0
    %2893 = vmatpush2.msra.mxu0 0.0
    %2894 = vmatprep.subr.mxu0 0.0
    %2895 = vmatpush2.msra.mxu0 0.0
    %2896 = vmatprep.subr.mxu0 0.0
    %2897 = vmatpush2.msra.mxu0 0.0
    %2898 = vmatprep.subr.mxu0 0.0
    %2899 = vmatpush2.msra.mxu0 0.0
    %2900 = vmatprep.subr.mxu0 0.0
    %2901 = vmatpush2.msra.mxu0 0.0
    %2902 = vmatprep.subr.mxu0 0.0
    %2903 = vmatpush2.msra.mxu0 0.0
    %2904 = vmatprep.subr.mxu0 0.0
    %2905 = vmatpush2.msra.mxu0 0.0
    %2906 = vmatprep.subr.mxu0 0.0
    %2907 = vmatpush2.msra.mxu0 0.0
    %2908 = vmatprep.subr.mxu0 0.0
    %2909 = vmatpush2.msra.mxu0 0.0
    %2910 = vmatprep.subr.mxu0 0.0
    %2911 = vmatpush2.msra.mxu0 0.0
    %2912 = vmatprep.subr.mxu0 0.0
    %2913 = vmatpush2.msra.mxu0 0.0
    %2914 = vmatprep.subr.mxu0 0.0
    %2915 = vmatpush2.msra.mxu0 0.0
    %2916 = vmatprep.mubr.f32.mxu0 0.0
    %2917 = vmatmul.mubr.f32.gmra.mxu0 %v2850
    %v2918 = vpop.f32.mrf.mxu0
    %v2919 = vadd.f32 0.0, %v2918
    %v2920 = vpop.f32.mrf.mxu0
    %2921 = vdwg.mxu0
    %2922 = vrot.lane.b32.xlu0 %v2577, 112
    %v2923 = vpop.permute.xlu0 %2922
    %2924 = vrot.lane.b32.xlu0 %v2577, 48
    %v2925 = vpop.permute.xlu0 %2924
    %v2926 = vsel %vm500, %v2923, 0
    %v2928 = vsel %vm500, %v2925, 0
    %2930 = vmatprep.subr.mxu0 0.0
    %2931 = vmatpush1.xpose.msra.mxu0 0.0
    %2932 = vmatprep.subr.mxu0 0.0
    %2933 = vmatpush1.xpose.msra.mxu0 0.0
    %2934 = vmatprep.subr.mxu0 0.0
    %2935 = vmatpush1.xpose.msra.mxu0 0.0
    %2936 = vmatprep.subr.mxu0 0.0
    %2937 = vmatpush1.xpose.msra.mxu0 0.0
    %2938 = vmatprep.subr.mxu0 0.0
    %2939 = vmatpush1.xpose.msra.mxu0 0.0
    %2940 = vmatprep.subr.mxu0 0.0
    %2941 = vmatpush1.xpose.msra.mxu0 0.0
    %2942 = vmatprep.subr.mxu0 0.0
    %2943 = vmatpush1.xpose.msra.mxu0 0.0
    %2944 = vmatprep.subr.mxu0 0.0
    %2945 = vmatpush1.xpose.msra.mxu0 0.0
    %2946 = vmatprep.subr.mxu0 0.0
    %2947 = vmatpush1.xpose.msra.mxu0 0.0
    %2948 = vmatprep.subr.mxu0 0.0
    %2949 = vmatpush1.xpose.msra.mxu0 0.0
    %2950 = vmatprep.subr.mxu0 0.0
    %2951 = vmatpush1.xpose.msra.mxu0 0.0
    %2952 = vmatprep.subr.mxu0 0.0
    %2953 = vmatpush1.xpose.msra.mxu0 0.0
    %2954 = vmatprep.subr.mxu0 0.0
    %2955 = vmatpush1.xpose.msra.mxu0 0.0
    %2956 = vmatprep.subr.mxu0 0.0
    %2957 = vmatpush1.xpose.msra.mxu0 0.0
    %2958 = vmatprep.subr.mxu0 0.0
    %2959 = vmatpush1.xpose.msra.mxu0 0.0
    %2960 = vmatprep.subr.mxu0 0.0
    %2961 = vmatpush1.xpose.msra.mxu0 %v2928
    %2962 = vmatprep.subr.mxu0 0.0
    %2963 = vmatpush2.xpose.msra.mxu0 0.0
    %2964 = vmatprep.subr.mxu0 0.0
    %2965 = vmatpush2.xpose.msra.mxu0 0.0
    %2966 = vmatprep.subr.mxu0 0.0
    %2967 = vmatpush2.xpose.msra.mxu0 0.0
    %2968 = vmatprep.subr.mxu0 0.0
    %2969 = vmatpush2.xpose.msra.mxu0 0.0
    %2970 = vmatprep.subr.mxu0 0.0
    %2971 = vmatpush2.xpose.msra.mxu0 0.0
    %2972 = vmatprep.subr.mxu0 0.0
    %2973 = vmatpush2.xpose.msra.mxu0 0.0
    %2974 = vmatprep.subr.mxu0 0.0
    %2975 = vmatpush2.xpose.msra.mxu0 0.0
    %2976 = vmatprep.subr.mxu0 0.0
    %2977 = vmatpush2.xpose.msra.mxu0 0.0
    %2978 = vmatprep.subr.mxu0 0.0
    %2979 = vmatpush2.xpose.msra.mxu0 0.0
    %2980 = vmatprep.subr.mxu0 0.0
    %2981 = vmatpush2.xpose.msra.mxu0 0.0
    %2982 = vmatprep.subr.mxu0 0.0
    %2983 = vmatpush2.xpose.msra.mxu0 0.0
    %2984 = vmatprep.subr.mxu0 0.0
    %2985 = vmatpush2.xpose.msra.mxu0 0.0
    %2986 = vmatprep.subr.mxu0 0.0
    %2987 = vmatpush2.xpose.msra.mxu0 0.0
    %2988 = vmatprep.subr.mxu0 0.0
    %2989 = vmatpush2.xpose.msra.mxu0 0.0
    %2990 = vmatprep.subr.mxu0 0.0
    %2991 = vmatpush2.xpose.msra.mxu0 0.0
    %2992 = vmatprep.subr.mxu0 0.0
    %2993 = vmatpush2.xpose.msra.mxu0 0.0
    %2994 = vmatprep.mubr.f32.mxu0 0.0
    %2995 = vmatmul.mubr.f32.gmra.mxu0 %v2926
    %v2996 = vpop.f32.mrf.mxu0
    %v2997 = vadd.f32 0.0, %v2996
    %v2998 = vpop.f32.mrf.mxu0
    %2999 = vdwg.mxu0
    %3000 = vrot.lane.b32.xlu0 %v2583, 112
    %v3001 = vpop.permute.xlu0 %3000
    %3002 = vrot.lane.b32.xlu0 %v2583, 48
    %v3003 = vpop.permute.xlu0 %3002
    %v3004 = vsel %vm500, %v3001, 0
    %v3006 = vsel %vm500, %v3003, 0
    %3008 = vmatprep.subr.mxu0 0.0
    %3009 = vmatpush1.xpose.msra.mxu0 0.0
    %3010 = vmatprep.subr.mxu0 0.0
    %3011 = vmatpush1.xpose.msra.mxu0 0.0
    %3012 = vmatprep.subr.mxu0 0.0
    %3013 = vmatpush1.xpose.msra.mxu0 0.0
    %3014 = vmatprep.subr.mxu0 0.0
    %3015 = vmatpush1.xpose.msra.mxu0 0.0
    %3016 = vmatprep.subr.mxu0 0.0
    %3017 = vmatpush1.xpose.msra.mxu0 0.0
    %3018 = vmatprep.subr.mxu0 0.0
    %3019 = vmatpush1.xpose.msra.mxu0 0.0
    %3020 = vmatprep.subr.mxu0 0.0
    %3021 = vmatpush1.xpose.msra.mxu0 0.0
    %3022 = vmatprep.subr.mxu0 0.0
    %3023 = vmatpush1.xpose.msra.mxu0 0.0
    %3024 = vmatprep.subr.mxu0 0.0
    %3025 = vmatpush1.xpose.msra.mxu0 0.0
    %3026 = vmatprep.subr.mxu0 0.0
    %3027 = vmatpush1.xpose.msra.mxu0 0.0
    %3028 = vmatprep.subr.mxu0 0.0
    %3029 = vmatpush1.xpose.msra.mxu0 0.0
    %3030 = vmatprep.subr.mxu0 0.0
    %3031 = vmatpush1.xpose.msra.mxu0 0.0
    %3032 = vmatprep.subr.mxu0 0.0
    %3033 = vmatpush1.xpose.msra.mxu0 0.0
    %3034 = vmatprep.subr.mxu0 0.0
    %3035 = vmatpush1.xpose.msra.mxu0 0.0
    %3036 = vmatprep.subr.mxu0 0.0
    %3037 = vmatpush1.xpose.msra.mxu0 0.0
    %3038 = vmatprep.subr.mxu0 0.0
    %3039 = vmatpush1.xpose.msra.mxu0 %v3006
    %3040 = vmatprep.subr.mxu0 0.0
    %3041 = vmatpush2.xpose.msra.mxu0 0.0
    %3042 = vmatprep.subr.mxu0 0.0
    %3043 = vmatpush2.xpose.msra.mxu0 0.0
    %3044 = vmatprep.subr.mxu0 0.0
    %3045 = vmatpush2.xpose.msra.mxu0 0.0
    %3046 = vmatprep.subr.mxu0 0.0
    %3047 = vmatpush2.xpose.msra.mxu0 0.0
    %3048 = vmatprep.subr.mxu0 0.0
    %3049 = vmatpush2.xpose.msra.mxu0 0.0
    %3050 = vmatprep.subr.mxu0 0.0
    %3051 = vmatpush2.xpose.msra.mxu0 0.0
    %3052 = vmatprep.subr.mxu0 0.0
    %3053 = vmatpush2.xpose.msra.mxu0 0.0
    %3054 = vmatprep.subr.mxu0 0.0
    %3055 = vmatpush2.xpose.msra.mxu0 0.0
    %3056 = vmatprep.subr.mxu0 0.0
    %3057 = vmatpush2.xpose.msra.mxu0 0.0
    %3058 = vmatprep.subr.mxu0 0.0
    %3059 = vmatpush2.xpose.msra.mxu0 0.0
    %3060 = vmatprep.subr.mxu0 0.0
    %3061 = vmatpush2.xpose.msra.mxu0 0.0
    %3062 = vmatprep.subr.mxu0 0.0
    %3063 = vmatpush2.xpose.msra.mxu0 0.0
    %3064 = vmatprep.subr.mxu0 0.0
    %3065 = vmatpush2.xpose.msra.mxu0 0.0
    %3066 = vmatprep.subr.mxu0 0.0
    %3067 = vmatpush2.xpose.msra.mxu0 0.0
    %3068 = vmatprep.subr.mxu0 0.0
    %3069 = vmatpush2.xpose.msra.mxu0 0.0
    %3070 = vmatprep.subr.mxu0 0.0
    %3071 = vmatpush2.xpose.msra.mxu0 0.0
    %3072 = vmatprep.mubr.f32.mxu0 0.0
    %3073 = vmatmul.mubr.f32.gmra.mxu0 %v3004
    %v3074 = vpop.f32.mrf.mxu0
    %v3075 = vadd.f32 0.0, %v3074
    %v3076 = vpop.f32.mrf.mxu0
    %3077 = vdwg.mxu0
    %v3078 = vmul.f32 %v2997, 0.25
    %v3079 = vmul.f32 %v3075, 0.25
    %v3080 = vadd.f32 %v3078, %v333
    %v3081 = vadd.f32 %v3079, %v333
    %v3082 = vsel %vm656, %v3080, -inf
    %3083 = vmax.xlane.f32.xlu0 %v3082
    %v3084 = vpop.xlane.xlu0 %3083
    %v3085 = vsel %vm656, %v3081, -inf
    %3086 = vmax.xlane.f32.xlu0 %v3085
    %v3087 = vpop.xlane.xlu0 %3086
    %v3088 = vsub.f32 %v3080, %v3084
    %v3089 = vsub.f32 %v3081, %v3087
    %v3090 = vmul.f32 %v3088, 1.442695
    %v3091 = vpow.pop %v3090
    %v3092 = vmul.f32 %v3089, 1.442695
    %v3093 = vpow.pop %v3092
    %v3094 = vsel %vm656, %v3091, 0.0
    %3095 = vadd.xlane.f32.xlu0 %v3094
    %v3096 = vpop.xlane.xlu0 %3095
    %v3097 = vsel %vm656, %v3093, 0.0
    %3098 = vadd.xlane.f32.xlu0 %v3097
    %v3099 = vpop.xlane.xlu0 %3098
    %v3100 = vrcp.pop %v3096
    %v3101 = vrcp.pop %v3099
    %v3102 = vmul.f32 %v3091, %v3100
    %v3103 = vmul.f32 %v3093, %v3101
    %3105 = vrot.lane.b32.xlu0 %v2579, 112
    %v3106 = vpop.permute.xlu0 %3105
    %v3109 = vsel %vm656, %v3102, 0
    %3111 = vmatprep.subr.mxu0 0.0
    %3112 = vmatpush1.msra.mxu0 0.0
    %3113 = vmatprep.subr.mxu0 0.0
    %3114 = vmatpush1.msra.mxu0 0.0
    %3115 = vmatprep.subr.mxu0 0.0
    %3116 = vmatpush1.msra.mxu0 0.0
    %3117 = vmatprep.subr.mxu0 0.0
    %3118 = vmatpush1.msra.mxu0 0.0
    %3119 = vmatprep.subr.mxu0 0.0
    %3120 = vmatpush1.msra.mxu0 0.0
    %3121 = vmatprep.subr.mxu0 0.0
    %3122 = vmatpush1.msra.mxu0 0.0
    %3123 = vmatprep.subr.mxu0 0.0
    %3124 = vmatpush1.msra.mxu0 0.0
    %3125 = vmatprep.subr.mxu0 0.0
    %3126 = vmatpush1.msra.mxu0 0.0
    %3127 = vmatprep.subr.mxu0 0.0
    %3128 = vmatpush1.msra.mxu0 0.0
    %3129 = vmatprep.subr.mxu0 0.0
    %3130 = vmatpush1.msra.mxu0 0.0
    %3131 = vmatprep.subr.mxu0 0.0
    %3132 = vmatpush1.msra.mxu0 0.0
    %3133 = vmatprep.subr.mxu0 0.0
    %3134 = vmatpush1.msra.mxu0 0.0
    %3135 = vmatprep.subr.mxu0 0.0
    %3136 = vmatpush1.msra.mxu0 0.0
    %3137 = vmatprep.subr.mxu0 0.0
    %3138 = vmatpush1.msra.mxu0 0.0
    %3139 = vmatprep.subr.mxu0 0.0
    %3140 = vmatpush1.msra.mxu0 0.0
    %3141 = vmatprep.subr.mxu0 0.0
    %3142 = vmatpush1.msra.mxu0 %v3106
    %3143 = vmatprep.subr.mxu0 0.0
    %3144 = vmatpush2.msra.mxu0 0.0
    %3145 = vmatprep.subr.mxu0 0.0
    %3146 = vmatpush2.msra.mxu0 0.0
    %3147 = vmatprep.subr.mxu0 0.0
    %3148 = vmatpush2.msra.mxu0 0.0
    %3149 = vmatprep.subr.mxu0 0.0
    %3150 = vmatpush2.msra.mxu0 0.0
    %3151 = vmatprep.subr.mxu0 0.0
    %3152 = vmatpush2.msra.mxu0 0.0
    %3153 = vmatprep.subr.mxu0 0.0
    %3154 = vmatpush2.msra.mxu0 0.0
    %3155 = vmatprep.subr.mxu0 0.0
    %3156 = vmatpush2.msra.mxu0 0.0
    %3157 = vmatprep.subr.mxu0 0.0
    %3158 = vmatpush2.msra.mxu0 0.0
    %3159 = vmatprep.subr.mxu0 0.0
    %3160 = vmatpush2.msra.mxu0 0.0
    %3161 = vmatprep.subr.mxu0 0.0
    %3162 = vmatpush2.msra.mxu0 0.0
    %3163 = vmatprep.subr.mxu0 0.0
    %3164 = vmatpush2.msra.mxu0 0.0
    %3165 = vmatprep.subr.mxu0 0.0
    %3166 = vmatpush2.msra.mxu0 0.0
    %3167 = vmatprep.subr.mxu0 0.0
    %3168 = vmatpush2.msra.mxu0 0.0
    %3169 = vmatprep.subr.mxu0 0.0
    %3170 = vmatpush2.msra.mxu0 0.0
    %3171 = vmatprep.subr.mxu0 0.0
    %3172 = vmatpush2.msra.mxu0 0.0
    %3173 = vmatprep.subr.mxu0 0.0
    %3174 = vmatpush2.msra.mxu0 0.0
    %3175 = vmatprep.mubr.f32.mxu0 0.0
    %3176 = vmatmul.mubr.f32.gmra.mxu0 %v3109
    %v3177 = vpop.f32.mrf.mxu0
    %v3178 = vadd.f32 0.0, %v3177
    %v3179 = vpop.f32.mrf.mxu0
    %3180 = vdwg.mxu0
    %3182 = vrot.lane.b32.xlu0 %v2585, 112
    %v3183 = vpop.permute.xlu0 %3182
    %v3186 = vsel %vm656, %v3103, 0
    %3188 = vmatprep.subr.mxu0 0.0
    %3189 = vmatpush1.msra.mxu0 0.0
    %3190 = vmatprep.subr.mxu0 0.0
    %3191 = vmatpush1.msra.mxu0 0.0
    %3192 = vmatprep.subr.mxu0 0.0
    %3193 = vmatpush1.msra.mxu0 0.0
    %3194 = vmatprep.subr.mxu0 0.0
    %3195 = vmatpush1.msra.mxu0 0.0
    %3196 = vmatprep.subr.mxu0 0.0
    %3197 = vmatpush1.msra.mxu0 0.0
    %3198 = vmatprep.subr.mxu0 0.0
    %3199 = vmatpush1.msra.mxu0 0.0
    %3200 = vmatprep.subr.mxu0 0.0
    %3201 = vmatpush1.msra.mxu0 0.0
    %3202 = vmatprep.subr.mxu0 0.0
    %3203 = vmatpush1.msra.mxu0 0.0
    %3204 = vmatprep.subr.mxu0 0.0
    %3205 = vmatpush1.msra.mxu0 0.0
    %3206 = vmatprep.subr.mxu0 0.0
    %3207 = vmatpush1.msra.mxu0 0.0
    %3208 = vmatprep.subr.mxu0 0.0
    %3209 = vmatpush1.msra.mxu0 0.0
    %3210 = vmatprep.subr.mxu0 0.0
    %3211 = vmatpush1.msra.mxu0 0.0
    %3212 = vmatprep.subr.mxu0 0.0
    %3213 = vmatpush1.msra.mxu0 0.0
    %3214 = vmatprep.subr.mxu0 0.0
    %3215 = vmatpush1.msra.mxu0 0.0
    %3216 = vmatprep.subr.mxu0 0.0
    %3217 = vmatpush1.msra.mxu0 0.0
    %3218 = vmatprep.subr.mxu0 0.0
    %3219 = vmatpush1.msra.mxu0 %v3183
    %3220 = vmatprep.subr.mxu0 0.0
    %3221 = vmatpush2.msra.mxu0 0.0
    %3222 = vmatprep.subr.mxu0 0.0
    %3223 = vmatpush2.msra.mxu0 0.0
    %3224 = vmatprep.subr.mxu0 0.0
    %3225 = vmatpush2.msra.mxu0 0.0
    %3226 = vmatprep.subr.mxu0 0.0
    %3227 = vmatpush2.msra.mxu0 0.0
    %3228 = vmatprep.subr.mxu0 0.0
    %3229 = vmatpush2.msra.mxu0 0.0
    %3230 = vmatprep.subr.mxu0 0.0
    %3231 = vmatpush2.msra.mxu0 0.0
    %3232 = vmatprep.subr.mxu0 0.0
    %3233 = vmatpush2.msra.mxu0 0.0
    %3234 = vmatprep.subr.mxu0 0.0
    %3235 = vmatpush2.msra.mxu0 0.0
    %3236 = vmatprep.subr.mxu0 0.0
    %3237 = vmatpush2.msra.mxu0 0.0
    %3238 = vmatprep.subr.mxu0 0.0
    %3239 = vmatpush2.msra.mxu0 0.0
    %3240 = vmatprep.subr.mxu0 0.0
    %3241 = vmatpush2.msra.mxu0 0.0
    %3242 = vmatprep.subr.mxu0 0.0
    %3243 = vmatpush2.msra.mxu0 0.0
    %3244 = vmatprep.subr.mxu0 0.0
    %3245 = vmatpush2.msra.mxu0 0.0
    %3246 = vmatprep.subr.mxu0 0.0
    %3247 = vmatpush2.msra.mxu0 0.0
    %3248 = vmatprep.subr.mxu0 0.0
    %3249 = vmatpush2.msra.mxu0 0.0
    %3250 = vmatprep.subr.mxu0 0.0
    %3251 = vmatpush2.msra.mxu0 0.0
    %3252 = vmatprep.mubr.f32.mxu0 0.0
    %3253 = vmatmul.mubr.f32.gmra.mxu0 %v3186
    %v3254 = vpop.f32.mrf.mxu0
    %v3255 = vadd.f32 0.0, %v3254
    %v3256 = vpop.f32.mrf.mxu0
    %3257 = vdwg.mxu0
    %v3259 = vsel %vm500, %v3178, 0
    %v3262 = vsel %vm500, %v3255, 0
    %3264 = vmatprep.subr.mxu0 0.0
    %3265 = vmatpush1.msra.mxu0 0.0
    %3266 = vmatprep.subr.mxu0 0.0
    %3267 = vmatpush1.msra.mxu0 0.0
    %3268 = vmatprep.subr.mxu0 0.0
    %3269 = vmatpush1.msra.mxu0 0.0
    %3270 = vmatprep.subr.mxu0 0.0
    %3271 = vmatpush1.msra.mxu0 0.0
    %3272 = vmatprep.subr.mxu0 0.0
    %3273 = vmatpush1.msra.mxu0 0.0
    %3274 = vmatprep.subr.mxu0 0.0
    %3275 = vmatpush1.msra.mxu0 0.0
    %3276 = vmatprep.subr.mxu0 0.0
    %3277 = vmatpush1.msra.mxu0 0.0
    %3278 = vmatprep.subr.mxu0 0.0
    %3279 = vmatpush1.msra.mxu0 0.0
    %3280 = vmatprep.subr.mxu0 0.0
    %3281 = vmatpush1.msra.mxu0 0.0
    %3282 = vmatprep.subr.mxu0 0.0
    %3283 = vmatpush1.msra.mxu0 0.0
    %3284 = vmatprep.subr.mxu0 0.0
    %3285 = vmatpush1.msra.mxu0 0.0
    %3286 = vmatprep.subr.mxu0 0.0
    %3287 = vmatpush1.msra.mxu0 0.0
    %3288 = vmatprep.subr.mxu0 0.0
    %3289 = vmatpush1.msra.mxu0 0.0
    %3290 = vmatprep.subr.mxu0 0.0
    %3291 = vmatpush1.msra.mxu0 0.0
    %3292 = vmatprep.subr.mxu0 0.0
    %3293 = vmatpush1.msra.mxu0 %v2591
    %3294 = vmatprep.subr.mxu0 0.0
    %3295 = vmatpush1.msra.mxu0 %v2590
    %3296 = vmatprep.subr.mxu0 0.0
    %3297 = vmatpush2.msra.mxu0 0.0
    %3298 = vmatprep.subr.mxu0 0.0
    %3299 = vmatpush2.msra.mxu0 0.0
    %3300 = vmatprep.subr.mxu0 0.0
    %3301 = vmatpush2.msra.mxu0 0.0
    %3302 = vmatprep.subr.mxu0 0.0
    %3303 = vmatpush2.msra.mxu0 0.0
    %3304 = vmatprep.subr.mxu0 0.0
    %3305 = vmatpush2.msra.mxu0 0.0
    %3306 = vmatprep.subr.mxu0 0.0
    %3307 = vmatpush2.msra.mxu0 0.0
    %3308 = vmatprep.subr.mxu0 0.0
    %3309 = vmatpush2.msra.mxu0 0.0
    %3310 = vmatprep.subr.mxu0 0.0
    %3311 = vmatpush2.msra.mxu0 0.0
    %3312 = vmatprep.subr.mxu0 0.0
    %3313 = vmatpush2.msra.mxu0 0.0
    %3314 = vmatprep.subr.mxu0 0.0
    %3315 = vmatpush2.msra.mxu0 0.0
    %3316 = vmatprep.subr.mxu0 0.0
    %3317 = vmatpush2.msra.mxu0 0.0
    %3318 = vmatprep.subr.mxu0 0.0
    %3319 = vmatpush2.msra.mxu0 0.0
    %3320 = vmatprep.subr.mxu0 0.0
    %3321 = vmatpush2.msra.mxu0 0.0
    %3322 = vmatprep.subr.mxu0 0.0
    %3323 = vmatpush2.msra.mxu0 0.0
    %3324 = vmatprep.subr.mxu0 0.0
    %3325 = vmatpush2.msra.mxu0 0.0
    %3326 = vmatprep.subr.mxu0 0.0
    %3327 = vmatpush2.msra.mxu0 0.0
    %3328 = vmatprep.mubr.f32.mxu0 0.0
    %3329 = vmatmul.mubr.f32.gmra.mxu0 %v3259
    %v3330 = vpop.f32.mrf.mxu0
    %v3331 = vadd.f32 0.0, %v3330
    %v3332 = vpop.f32.mrf.mxu0
    %3333 = vmatprep.mubr.f32.mxu0 0.0
    %3334 = vmatmul.mubr.f32.gmra.mxu0 %v3262
    %v3335 = vpop.f32.mrf.mxu0
    %v3336 = vadd.f32 0.0, %v3335
    %v3337 = vpop.f32.mrf.mxu0
    %3338 = vdwg.mxu0
    %v3340 = vsel %vm500, %v2846, 0
    %v3343 = vsel %vm500, %v2919, 0
    %3345 = vmatprep.subr.mxu0 0.0
    %3346 = vmatpush1.msra.mxu0 0.0
    %3347 = vmatprep.subr.mxu0 0.0
    %3348 = vmatpush1.msra.mxu0 0.0
    %3349 = vmatprep.subr.mxu0 0.0
    %3350 = vmatpush1.msra.mxu0 0.0
    %3351 = vmatprep.subr.mxu0 0.0
    %3352 = vmatpush1.msra.mxu0 0.0
    %3353 = vmatprep.subr.mxu0 0.0
    %3354 = vmatpush1.msra.mxu0 0.0
    %3355 = vmatprep.subr.mxu0 0.0
    %3356 = vmatpush1.msra.mxu0 0.0
    %3357 = vmatprep.subr.mxu0 0.0
    %3358 = vmatpush1.msra.mxu0 0.0
    %3359 = vmatprep.subr.mxu0 0.0
    %3360 = vmatpush1.msra.mxu0 0.0
    %3361 = vmatprep.subr.mxu0 0.0
    %3362 = vmatpush1.msra.mxu0 0.0
    %3363 = vmatprep.subr.mxu0 0.0
    %3364 = vmatpush1.msra.mxu0 0.0
    %3365 = vmatprep.subr.mxu0 0.0
    %3366 = vmatpush1.msra.mxu0 0.0
    %3367 = vmatprep.subr.mxu0 0.0
    %3368 = vmatpush1.msra.mxu0 0.0
    %3369 = vmatprep.subr.mxu0 0.0
    %3370 = vmatpush1.msra.mxu0 0.0
    %3371 = vmatprep.subr.mxu0 0.0
    %3372 = vmatpush1.msra.mxu0 0.0
    %3373 = vmatprep.subr.mxu0 0.0
    %3374 = vmatpush1.msra.mxu0 %v2589
    %3375 = vmatprep.subr.mxu0 0.0
    %3376 = vmatpush1.msra.mxu0 %v2588
    %3377 = vmatprep.subr.mxu0 0.0
    %3378 = vmatpush2.msra.mxu0 0.0
    %3379 = vmatprep.subr.mxu0 0.0
    %3380 = vmatpush2.msra.mxu0 0.0
    %3381 = vmatprep.subr.mxu0 0.0
    %3382 = vmatpush2.msra.mxu0 0.0
    %3383 = vmatprep.subr.mxu0 0.0
    %3384 = vmatpush2.msra.mxu0 0.0
    %3385 = vmatprep.subr.mxu0 0.0
    %3386 = vmatpush2.msra.mxu0 0.0
    %3387 = vmatprep.subr.mxu0 0.0
    %3388 = vmatpush2.msra.mxu0 0.0
    %3389 = vmatprep.subr.mxu0 0.0
    %3390 = vmatpush2.msra.mxu0 0.0
    %3391 = vmatprep.subr.mxu0 0.0
    %3392 = vmatpush2.msra.mxu0 0.0
    %3393 = vmatprep.subr.mxu0 0.0
    %3394 = vmatpush2.msra.mxu0 0.0
    %3395 = vmatprep.subr.mxu0 0.0
    %3396 = vmatpush2.msra.mxu0 0.0
    %3397 = vmatprep.subr.mxu0 0.0
    %3398 = vmatpush2.msra.mxu0 0.0
    %3399 = vmatprep.subr.mxu0 0.0
    %3400 = vmatpush2.msra.mxu0 0.0
    %3401 = vmatprep.subr.mxu0 0.0
    %3402 = vmatpush2.msra.mxu0 0.0
    %3403 = vmatprep.subr.mxu0 0.0
    %3404 = vmatpush2.msra.mxu0 0.0
    %3405 = vmatprep.subr.mxu0 0.0
    %3406 = vmatpush2.msra.mxu0 0.0
    %3407 = vmatprep.subr.mxu0 0.0
    %3408 = vmatpush2.msra.mxu0 0.0
    %3409 = vmatprep.mubr.f32.mxu0 0.0
    %3410 = vmatmul.mubr.f32.gmra.mxu0 %v3340
    %v3411 = vpop.f32.mrf.mxu0
    %v3412 = vadd.f32 %v3331, %v3411
    %v3413 = vpop.f32.mrf.mxu0
    %3414 = vmatprep.mubr.f32.mxu0 0.0
    %3415 = vmatmul.mubr.f32.gmra.mxu0 %v3343
    %v3416 = vpop.f32.mrf.mxu0
    %v3417 = vadd.f32 %v3336, %v3416
    %v3418 = vpop.f32.mrf.mxu0
    %3419 = vdwg.mxu0
    %3420 = vrot.lane.b32.xlu0 %v2577, 96
    %v3421 = vpop.permute.xlu0 %3420
    %3422 = vrot.lane.b32.xlu0 %v2577, 32
    %v3423 = vpop.permute.xlu0 %3422
    %v3424 = vsel %vm500, %v3421, 0
    %v3426 = vsel %vm500, %v3423, 0
    %3428 = vmatprep.subr.mxu0 0.0
    %3429 = vmatpush1.xpose.msra.mxu0 0.0
    %3430 = vmatprep.subr.mxu0 0.0
    %3431 = vmatpush1.xpose.msra.mxu0 0.0
    %3432 = vmatprep.subr.mxu0 0.0
    %3433 = vmatpush1.xpose.msra.mxu0 0.0
    %3434 = vmatprep.subr.mxu0 0.0
    %3435 = vmatpush1.xpose.msra.mxu0 0.0
    %3436 = vmatprep.subr.mxu0 0.0
    %3437 = vmatpush1.xpose.msra.mxu0 0.0
    %3438 = vmatprep.subr.mxu0 0.0
    %3439 = vmatpush1.xpose.msra.mxu0 0.0
    %3440 = vmatprep.subr.mxu0 0.0
    %3441 = vmatpush1.xpose.msra.mxu0 0.0
    %3442 = vmatprep.subr.mxu0 0.0
    %3443 = vmatpush1.xpose.msra.mxu0 0.0
    %3444 = vmatprep.subr.mxu0 0.0
    %3445 = vmatpush1.xpose.msra.mxu0 0.0
    %3446 = vmatprep.subr.mxu0 0.0
    %3447 = vmatpush1.xpose.msra.mxu0 0.0
    %3448 = vmatprep.subr.mxu0 0.0
    %3449 = vmatpush1.xpose.msra.mxu0 0.0
    %3450 = vmatprep.subr.mxu0 0.0
    %3451 = vmatpush1.xpose.msra.mxu0 0.0
    %3452 = vmatprep.subr.mxu0 0.0
    %3453 = vmatpush1.xpose.msra.mxu0 0.0
    %3454 = vmatprep.subr.mxu0 0.0
    %3455 = vmatpush1.xpose.msra.mxu0 0.0
    %3456 = vmatprep.subr.mxu0 0.0
    %3457 = vmatpush1.xpose.msra.mxu0 0.0
    %3458 = vmatprep.subr.mxu0 0.0
    %3459 = vmatpush1.xpose.msra.mxu0 %v3426
    %3460 = vmatprep.subr.mxu0 0.0
    %3461 = vmatpush2.xpose.msra.mxu0 0.0
    %3462 = vmatprep.subr.mxu0 0.0
    %3463 = vmatpush2.xpose.msra.mxu0 0.0
    %3464 = vmatprep.subr.mxu0 0.0
    %3465 = vmatpush2.xpose.msra.mxu0 0.0
    %3466 = vmatprep.subr.mxu0 0.0
    %3467 = vmatpush2.xpose.msra.mxu0 0.0
    %3468 = vmatprep.subr.mxu0 0.0
    %3469 = vmatpush2.xpose.msra.mxu0 0.0
    %3470 = vmatprep.subr.mxu0 0.0
    %3471 = vmatpush2.xpose.msra.mxu0 0.0
    %3472 = vmatprep.subr.mxu0 0.0
    %3473 = vmatpush2.xpose.msra.mxu0 0.0
    %3474 = vmatprep.subr.mxu0 0.0
    %3475 = vmatpush2.xpose.msra.mxu0 0.0
    %3476 = vmatprep.subr.mxu0 0.0
    %3477 = vmatpush2.xpose.msra.mxu0 0.0
    %3478 = vmatprep.subr.mxu0 0.0
    %3479 = vmatpush2.xpose.msra.mxu0 0.0
    %3480 = vmatprep.subr.mxu0 0.0
    %3481 = vmatpush2.xpose.msra.mxu0 0.0
    %3482 = vmatprep.subr.mxu0 0.0
    %3483 = vmatpush2.xpose.msra.mxu0 0.0
    %3484 = vmatprep.subr.mxu0 0.0
    %3485 = vmatpush2.xpose.msra.mxu0 0.0
    %3486 = vmatprep.subr.mxu0 0.0
    %3487 = vmatpush2.xpose.msra.mxu0 0.0
    %3488 = vmatprep.subr.mxu0 0.0
    %3489 = vmatpush2.xpose.msra.mxu0 0.0
    %3490 = vmatprep.subr.mxu0 0.0
    %3491 = vmatpush2.xpose.msra.mxu0 0.0
    %3492 = vmatprep.mubr.f32.mxu0 0.0
    %3493 = vmatmul.mubr.f32.gmra.mxu0 %v3424
    %v3494 = vpop.f32.mrf.mxu0
    %v3495 = vadd.f32 0.0, %v3494
    %v3496 = vpop.f32.mrf.mxu0
    %3497 = vdwg.mxu0
    %3498 = vrot.lane.b32.xlu0 %v2583, 96
    %v3499 = vpop.permute.xlu0 %3498
    %3500 = vrot.lane.b32.xlu0 %v2583, 32
    %v3501 = vpop.permute.xlu0 %3500
    %v3502 = vsel %vm500, %v3499, 0
    %v3504 = vsel %vm500, %v3501, 0
    %3506 = vmatprep.subr.mxu0 0.0
    %3507 = vmatpush1.xpose.msra.mxu0 0.0
    %3508 = vmatprep.subr.mxu0 0.0
    %3509 = vmatpush1.xpose.msra.mxu0 0.0
    %3510 = vmatprep.subr.mxu0 0.0
    %3511 = vmatpush1.xpose.msra.mxu0 0.0
    %3512 = vmatprep.subr.mxu0 0.0
    %3513 = vmatpush1.xpose.msra.mxu0 0.0
    %3514 = vmatprep.subr.mxu0 0.0
    %3515 = vmatpush1.xpose.msra.mxu0 0.0
    %3516 = vmatprep.subr.mxu0 0.0
    %3517 = vmatpush1.xpose.msra.mxu0 0.0
    %3518 = vmatprep.subr.mxu0 0.0
    %3519 = vmatpush1.xpose.msra.mxu0 0.0
    %3520 = vmatprep.subr.mxu0 0.0
    %3521 = vmatpush1.xpose.msra.mxu0 0.0
    %3522 = vmatprep.subr.mxu0 0.0
    %3523 = vmatpush1.xpose.msra.mxu0 0.0
    %3524 = vmatprep.subr.mxu0 0.0
    %3525 = vmatpush1.xpose.msra.mxu0 0.0
    %3526 = vmatprep.subr.mxu0 0.0
    %3527 = vmatpush1.xpose.msra.mxu0 0.0
    %3528 = vmatprep.subr.mxu0 0.0
    %3529 = vmatpush1.xpose.msra.mxu0 0.0
    %3530 = vmatprep.subr.mxu0 0.0
    %3531 = vmatpush1.xpose.msra.mxu0 0.0
    %3532 = vmatprep.subr.mxu0 0.0
    %3533 = vmatpush1.xpose.msra.mxu0 0.0
    %3534 = vmatprep.subr.mxu0 0.0
    %3535 = vmatpush1.xpose.msra.mxu0 0.0
    %3536 = vmatprep.subr.mxu0 0.0
    %3537 = vmatpush1.xpose.msra.mxu0 %v3504
    %3538 = vmatprep.subr.mxu0 0.0
    %3539 = vmatpush2.xpose.msra.mxu0 0.0
    %3540 = vmatprep.subr.mxu0 0.0
    %3541 = vmatpush2.xpose.msra.mxu0 0.0
    %3542 = vmatprep.subr.mxu0 0.0
    %3543 = vmatpush2.xpose.msra.mxu0 0.0
    %3544 = vmatprep.subr.mxu0 0.0
    %3545 = vmatpush2.xpose.msra.mxu0 0.0
    %3546 = vmatprep.subr.mxu0 0.0
    %3547 = vmatpush2.xpose.msra.mxu0 0.0
    %3548 = vmatprep.subr.mxu0 0.0
    %3549 = vmatpush2.xpose.msra.mxu0 0.0
    %3550 = vmatprep.subr.mxu0 0.0
    %3551 = vmatpush2.xpose.msra.mxu0 0.0
    %3552 = vmatprep.subr.mxu0 0.0
    %3553 = vmatpush2.xpose.msra.mxu0 0.0
    %3554 = vmatprep.subr.mxu0 0.0
    %3555 = vmatpush2.xpose.msra.mxu0 0.0
    %3556 = vmatprep.subr.mxu0 0.0
    %3557 = vmatpush2.xpose.msra.mxu0 0.0
    %3558 = vmatprep.subr.mxu0 0.0
    %3559 = vmatpush2.xpose.msra.mxu0 0.0
    %3560 = vmatprep.subr.mxu0 0.0
    %3561 = vmatpush2.xpose.msra.mxu0 0.0
    %3562 = vmatprep.subr.mxu0 0.0
    %3563 = vmatpush2.xpose.msra.mxu0 0.0
    %3564 = vmatprep.subr.mxu0 0.0
    %3565 = vmatpush2.xpose.msra.mxu0 0.0
    %3566 = vmatprep.subr.mxu0 0.0
    %3567 = vmatpush2.xpose.msra.mxu0 0.0
    %3568 = vmatprep.subr.mxu0 0.0
    %3569 = vmatpush2.xpose.msra.mxu0 0.0
    %3570 = vmatprep.mubr.f32.mxu0 0.0
    %3571 = vmatmul.mubr.f32.gmra.mxu0 %v3502
    %v3572 = vpop.f32.mrf.mxu0
    %v3573 = vadd.f32 0.0, %v3572
    %v3574 = vpop.f32.mrf.mxu0
    %3575 = vdwg.mxu0
    %v3576 = vmul.f32 %v3495, 0.25
    %v3577 = vmul.f32 %v3573, 0.25
    %v3578 = vadd.f32 %v3576, %v333
    %v3579 = vadd.f32 %v3577, %v333
    %v3580 = vsel %vm656, %v3578, -inf
    %3581 = vmax.xlane.f32.xlu0 %v3580
    %v3582 = vpop.xlane.xlu0 %3581
    %v3583 = vsel %vm656, %v3579, -inf
    %3584 = vmax.xlane.f32.xlu0 %v3583
    %v3585 = vpop.xlane.xlu0 %3584
    %v3586 = vsub.f32 %v3578, %v3582
    %v3587 = vsub.f32 %v3579, %v3585
    %v3588 = vmul.f32 %v3586, 1.442695
    %v3589 = vpow.pop %v3588
    %v3590 = vmul.f32 %v3587, 1.442695
    %v3591 = vpow.pop %v3590
    %v3592 = vsel %vm656, %v3589, 0.0
    %3593 = vadd.xlane.f32.xlu0 %v3592
    %v3594 = vpop.xlane.xlu0 %3593
    %v3595 = vsel %vm656, %v3591, 0.0
    %3596 = vadd.xlane.f32.xlu0 %v3595
    %v3597 = vpop.xlane.xlu0 %3596
    %v3598 = vrcp.pop %v3594
    %v3599 = vrcp.pop %v3597
    %v3600 = vmul.f32 %v3589, %v3598
    %v3601 = vmul.f32 %v3591, %v3599
    %3602 = vrot.lane.b32.xlu0 %v2579, 96
    %v3603 = vpop.permute.xlu0 %3602
    %v3606 = vsel %vm656, %v3600, 0
    %3608 = vmatprep.subr.mxu0 0.0
    %3609 = vmatpush1.msra.mxu0 0.0
    %3610 = vmatprep.subr.mxu0 0.0
    %3611 = vmatpush1.msra.mxu0 0.0
    %3612 = vmatprep.subr.mxu0 0.0
    %3613 = vmatpush1.msra.mxu0 0.0
    %3614 = vmatprep.subr.mxu0 0.0
    %3615 = vmatpush1.msra.mxu0 0.0
    %3616 = vmatprep.subr.mxu0 0.0
    %3617 = vmatpush1.msra.mxu0 0.0
    %3618 = vmatprep.subr.mxu0 0.0
    %3619 = vmatpush1.msra.mxu0 0.0
    %3620 = vmatprep.subr.mxu0 0.0
    %3621 = vmatpush1.msra.mxu0 0.0
    %3622 = vmatprep.subr.mxu0 0.0
    %3623 = vmatpush1.msra.mxu0 0.0
    %3624 = vmatprep.subr.mxu0 0.0
    %3625 = vmatpush1.msra.mxu0 0.0
    %3626 = vmatprep.subr.mxu0 0.0
    %3627 = vmatpush1.msra.mxu0 0.0
    %3628 = vmatprep.subr.mxu0 0.0
    %3629 = vmatpush1.msra.mxu0 0.0
    %3630 = vmatprep.subr.mxu0 0.0
    %3631 = vmatpush1.msra.mxu0 0.0
    %3632 = vmatprep.subr.mxu0 0.0
    %3633 = vmatpush1.msra.mxu0 0.0
    %3634 = vmatprep.subr.mxu0 0.0
    %3635 = vmatpush1.msra.mxu0 0.0
    %3636 = vmatprep.subr.mxu0 0.0
    %3637 = vmatpush1.msra.mxu0 0.0
    %3638 = vmatprep.subr.mxu0 0.0
    %3639 = vmatpush1.msra.mxu0 %v3603
    %3640 = vmatprep.subr.mxu0 0.0
    %3641 = vmatpush2.msra.mxu0 0.0
    %3642 = vmatprep.subr.mxu0 0.0
    %3643 = vmatpush2.msra.mxu0 0.0
    %3644 = vmatprep.subr.mxu0 0.0
    %3645 = vmatpush2.msra.mxu0 0.0
    %3646 = vmatprep.subr.mxu0 0.0
    %3647 = vmatpush2.msra.mxu0 0.0
    %3648 = vmatprep.subr.mxu0 0.0
    %3649 = vmatpush2.msra.mxu0 0.0
    %3650 = vmatprep.subr.mxu0 0.0
    %3651 = vmatpush2.msra.mxu0 0.0
    %3652 = vmatprep.subr.mxu0 0.0
    %3653 = vmatpush2.msra.mxu0 0.0
    %3654 = vmatprep.subr.mxu0 0.0
    %3655 = vmatpush2.msra.mxu0 0.0
    %3656 = vmatprep.subr.mxu0 0.0
    %3657 = vmatpush2.msra.mxu0 0.0
    %3658 = vmatprep.subr.mxu0 0.0
    %3659 = vmatpush2.msra.mxu0 0.0
    %3660 = vmatprep.subr.mxu0 0.0
    %3661 = vmatpush2.msra.mxu0 0.0
    %3662 = vmatprep.subr.mxu0 0.0
    %3663 = vmatpush2.msra.mxu0 0.0
    %3664 = vmatprep.subr.mxu0 0.0
    %3665 = vmatpush2.msra.mxu0 0.0
    %3666 = vmatprep.subr.mxu0 0.0
    %3667 = vmatpush2.msra.mxu0 0.0
    %3668 = vmatprep.subr.mxu0 0.0
    %3669 = vmatpush2.msra.mxu0 0.0
    %3670 = vmatprep.subr.mxu0 0.0
    %3671 = vmatpush2.msra.mxu0 0.0
    %3672 = vmatprep.mubr.f32.mxu0 0.0
    %3673 = vmatmul.mubr.f32.gmra.mxu0 %v3606
    %v3674 = vpop.f32.mrf.mxu0
    %v3675 = vadd.f32 0.0, %v3674
    %v3676 = vpop.f32.mrf.mxu0
    %3677 = vdwg.mxu0
    %3678 = vrot.lane.b32.xlu0 %v2585, 96
    %v3679 = vpop.permute.xlu0 %3678
    %v3682 = vsel %vm656, %v3601, 0
    %3684 = vmatprep.subr.mxu0 0.0
    %3685 = vmatpush1.msra.mxu0 0.0
    %3686 = vmatprep.subr.mxu0 0.0
    %3687 = vmatpush1.msra.mxu0 0.0
    %3688 = vmatprep.subr.mxu0 0.0
    %3689 = vmatpush1.msra.mxu0 0.0
    %3690 = vmatprep.subr.mxu0 0.0
    %3691 = vmatpush1.msra.mxu0 0.0
    %3692 = vmatprep.subr.mxu0 0.0
    %3693 = vmatpush1.msra.mxu0 0.0
    %3694 = vmatprep.subr.mxu0 0.0
    %3695 = vmatpush1.msra.mxu0 0.0
    %3696 = vmatprep.subr.mxu0 0.0
    %3697 = vmatpush1.msra.mxu0 0.0
    %3698 = vmatprep.subr.mxu0 0.0
    %3699 = vmatpush1.msra.mxu0 0.0
    %3700 = vmatprep.subr.mxu0 0.0
    %3701 = vmatpush1.msra.mxu0 0.0
    %3702 = vmatprep.subr.mxu0 0.0
    %3703 = vmatpush1.msra.mxu0 0.0
    %3704 = vmatprep.subr.mxu0 0.0
    %3705 = vmatpush1.msra.mxu0 0.0
    %3706 = vmatprep.subr.mxu0 0.0
    %3707 = vmatpush1.msra.mxu0 0.0
    %3708 = vmatprep.subr.mxu0 0.0
    %3709 = vmatpush1.msra.mxu0 0.0
    %3710 = vmatprep.subr.mxu0 0.0
    %3711 = vmatpush1.msra.mxu0 0.0
    %3712 = vmatprep.subr.mxu0 0.0
    %3713 = vmatpush1.msra.mxu0 0.0
    %3714 = vmatprep.subr.mxu0 0.0
    %3715 = vmatpush1.msra.mxu0 %v3679
    %3716 = vmatprep.subr.mxu0 0.0
    %3717 = vmatpush2.msra.mxu0 0.0
    %3718 = vmatprep.subr.mxu0 0.0
    %3719 = vmatpush2.msra.mxu0 0.0
    %3720 = vmatprep.subr.mxu0 0.0
    %3721 = vmatpush2.msra.mxu0 0.0
    %3722 = vmatprep.subr.mxu0 0.0
    %3723 = vmatpush2.msra.mxu0 0.0
    %3724 = vmatprep.subr.mxu0 0.0
    %3725 = vmatpush2.msra.mxu0 0.0
    %3726 = vmatprep.subr.mxu0 0.0
    %3727 = vmatpush2.msra.mxu0 0.0
    %3728 = vmatprep.subr.mxu0 0.0
    %3729 = vmatpush2.msra.mxu0 0.0
    %3730 = vmatprep.subr.mxu0 0.0
    %3731 = vmatpush2.msra.mxu0 0.0
    %3732 = vmatprep.subr.mxu0 0.0
    %3733 = vmatpush2.msra.mxu0 0.0
    %3734 = vmatprep.subr.mxu0 0.0
    %3735 = vmatpush2.msra.mxu0 0.0
    %3736 = vmatprep.subr.mxu0 0.0
    %3737 = vmatpush2.msra.mxu0 0.0
    %3738 = vmatprep.subr.mxu0 0.0
    %3739 = vmatpush2.msra.mxu0 0.0
    %3740 = vmatprep.subr.mxu0 0.0
    %3741 = vmatpush2.msra.mxu0 0.0
    %3742 = vmatprep.subr.mxu0 0.0
    %3743 = vmatpush2.msra.mxu0 0.0
    %3744 = vmatprep.subr.mxu0 0.0
    %3745 = vmatpush2.msra.mxu0 0.0
    %3746 = vmatprep.subr.mxu0 0.0
    %3747 = vmatpush2.msra.mxu0 0.0
    %3748 = vmatprep.mubr.f32.mxu0 0.0
    %3749 = vmatmul.mubr.f32.gmra.mxu0 %v3682
    %v3750 = vpop.f32.mrf.mxu0
    %v3751 = vadd.f32 0.0, %v3750
    %v3752 = vpop.f32.mrf.mxu0
    %3753 = vdwg.mxu0
    %v3755 = vsel %vm500, %v3675, 0
    %v3758 = vsel %vm500, %v3751, 0
    %3760 = vmatprep.subr.mxu0 0.0
    %3761 = vmatpush1.msra.mxu0 0.0
    %3762 = vmatprep.subr.mxu0 0.0
    %3763 = vmatpush1.msra.mxu0 0.0
    %3764 = vmatprep.subr.mxu0 0.0
    %3765 = vmatpush1.msra.mxu0 0.0
    %3766 = vmatprep.subr.mxu0 0.0
    %3767 = vmatpush1.msra.mxu0 0.0
    %3768 = vmatprep.subr.mxu0 0.0
    %3769 = vmatpush1.msra.mxu0 0.0
    %3770 = vmatprep.subr.mxu0 0.0
    %3771 = vmatpush1.msra.mxu0 0.0
    %3772 = vmatprep.subr.mxu0 0.0
    %3773 = vmatpush1.msra.mxu0 0.0
    %3774 = vmatprep.subr.mxu0 0.0
    %3775 = vmatpush1.msra.mxu0 0.0
    %3776 = vmatprep.subr.mxu0 0.0
    %3777 = vmatpush1.msra.mxu0 0.0
    %3778 = vmatprep.subr.mxu0 0.0
    %3779 = vmatpush1.msra.mxu0 0.0
    %3780 = vmatprep.subr.mxu0 0.0
    %3781 = vmatpush1.msra.mxu0 0.0
    %3782 = vmatprep.subr.mxu0 0.0
    %3783 = vmatpush1.msra.mxu0 0.0
    %3784 = vmatprep.subr.mxu0 0.0
    %3785 = vmatpush1.msra.mxu0 0.0
    %3786 = vmatprep.subr.mxu0 0.0
    %3787 = vmatpush1.msra.mxu0 0.0
    %3788 = vmatprep.subr.mxu0 0.0
    %3789 = vmatpush1.msra.mxu0 %v2593
    %3790 = vmatprep.subr.mxu0 0.0
    %3791 = vmatpush1.msra.mxu0 %v2592
    %3792 = vmatprep.subr.mxu0 0.0
    %3793 = vmatpush2.msra.mxu0 0.0
    %3794 = vmatprep.subr.mxu0 0.0
    %3795 = vmatpush2.msra.mxu0 0.0
    %3796 = vmatprep.subr.mxu0 0.0
    %3797 = vmatpush2.msra.mxu0 0.0
    %3798 = vmatprep.subr.mxu0 0.0
    %3799 = vmatpush2.msra.mxu0 0.0
    %3800 = vmatprep.subr.mxu0 0.0
    %3801 = vmatpush2.msra.mxu0 0.0
    %3802 = vmatprep.subr.mxu0 0.0
    %3803 = vmatpush2.msra.mxu0 0.0
    %3804 = vmatprep.subr.mxu0 0.0
    %3805 = vmatpush2.msra.mxu0 0.0
    %3806 = vmatprep.subr.mxu0 0.0
    %3807 = vmatpush2.msra.mxu0 0.0
    %3808 = vmatprep.subr.mxu0 0.0
    %3809 = vmatpush2.msra.mxu0 0.0
    %3810 = vmatprep.subr.mxu0 0.0
    %3811 = vmatpush2.msra.mxu0 0.0
    %3812 = vmatprep.subr.mxu0 0.0
    %3813 = vmatpush2.msra.mxu0 0.0
    %3814 = vmatprep.subr.mxu0 0.0
    %3815 = vmatpush2.msra.mxu0 0.0
    %3816 = vmatprep.subr.mxu0 0.0
    %3817 = vmatpush2.msra.mxu0 0.0
    %3818 = vmatprep.subr.mxu0 0.0
    %3819 = vmatpush2.msra.mxu0 0.0
    %3820 = vmatprep.subr.mxu0 0.0
    %3821 = vmatpush2.msra.mxu0 0.0
    %3822 = vmatprep.subr.mxu0 0.0
    %3823 = vmatpush2.msra.mxu0 0.0
    %3824 = vmatprep.mubr.f32.mxu0 0.0
    %3825 = vmatmul.mubr.f32.gmra.mxu0 %v3755
    %v3826 = vpop.f32.mrf.mxu0
    %v3827 = vadd.f32 0.0, %v3826
    %v3828 = vpop.f32.mrf.mxu0
    %3829 = vmatprep.mubr.f32.mxu0 0.0
    %3830 = vmatmul.mubr.f32.gmra.mxu0 %v3758
    %v3831 = vpop.f32.mrf.mxu0
    %v3832 = vadd.f32 0.0, %v3831
    %v3833 = vpop.f32.mrf.mxu0
    %3834 = vdwg.mxu0
    %v3835 = vadd.f32 %v3412, %v3827
    %v3836 = vadd.f32 %v3417, %v3832
    %3837 = vrot.lane.b32.xlu0 %v2577, 80
    %v3838 = vpop.permute.xlu0 %3837
    %3839 = vrot.lane.b32.xlu0 %v2577, 16
    %v3840 = vpop.permute.xlu0 %3839
    %v3841 = vsel %vm500, %v3838, 0
    %v3843 = vsel %vm500, %v3840, 0
    %3845 = vmatprep.subr.mxu0 0.0
    %3846 = vmatpush1.xpose.msra.mxu0 0.0
    %3847 = vmatprep.subr.mxu0 0.0
    %3848 = vmatpush1.xpose.msra.mxu0 0.0
    %3849 = vmatprep.subr.mxu0 0.0
    %3850 = vmatpush1.xpose.msra.mxu0 0.0
    %3851 = vmatprep.subr.mxu0 0.0
    %3852 = vmatpush1.xpose.msra.mxu0 0.0
    %3853 = vmatprep.subr.mxu0 0.0
    %3854 = vmatpush1.xpose.msra.mxu0 0.0
    %3855 = vmatprep.subr.mxu0 0.0
    %3856 = vmatpush1.xpose.msra.mxu0 0.0
    %3857 = vmatprep.subr.mxu0 0.0
    %3858 = vmatpush1.xpose.msra.mxu0 0.0
    %3859 = vmatprep.subr.mxu0 0.0
    %3860 = vmatpush1.xpose.msra.mxu0 0.0
    %3861 = vmatprep.subr.mxu0 0.0
    %3862 = vmatpush1.xpose.msra.mxu0 0.0
    %3863 = vmatprep.subr.mxu0 0.0
    %3864 = vmatpush1.xpose.msra.mxu0 0.0
    %3865 = vmatprep.subr.mxu0 0.0
    %3866 = vmatpush1.xpose.msra.mxu0 0.0
    %3867 = vmatprep.subr.mxu0 0.0
    %3868 = vmatpush1.xpose.msra.mxu0 0.0
    %3869 = vmatprep.subr.mxu0 0.0
    %3870 = vmatpush1.xpose.msra.mxu0 0.0
    %3871 = vmatprep.subr.mxu0 0.0
    %3872 = vmatpush1.xpose.msra.mxu0 0.0
    %3873 = vmatprep.subr.mxu0 0.0
    %3874 = vmatpush1.xpose.msra.mxu0 0.0
    %3875 = vmatprep.subr.mxu0 0.0
    %3876 = vmatpush1.xpose.msra.mxu0 %v3843
    %3877 = vmatprep.subr.mxu0 0.0
    %3878 = vmatpush2.xpose.msra.mxu0 0.0
    %3879 = vmatprep.subr.mxu0 0.0
    %3880 = vmatpush2.xpose.msra.mxu0 0.0
    %3881 = vmatprep.subr.mxu0 0.0
    %3882 = vmatpush2.xpose.msra.mxu0 0.0
    %3883 = vmatprep.subr.mxu0 0.0
    %3884 = vmatpush2.xpose.msra.mxu0 0.0
    %3885 = vmatprep.subr.mxu0 0.0
    %3886 = vmatpush2.xpose.msra.mxu0 0.0
    %3887 = vmatprep.subr.mxu0 0.0
    %3888 = vmatpush2.xpose.msra.mxu0 0.0
    %3889 = vmatprep.subr.mxu0 0.0
    %3890 = vmatpush2.xpose.msra.mxu0 0.0
    %3891 = vmatprep.subr.mxu0 0.0
    %3892 = vmatpush2.xpose.msra.mxu0 0.0
    %3893 = vmatprep.subr.mxu0 0.0
    %3894 = vmatpush2.xpose.msra.mxu0 0.0
    %3895 = vmatprep.subr.mxu0 0.0
    %3896 = vmatpush2.xpose.msra.mxu0 0.0
    %3897 = vmatprep.subr.mxu0 0.0
    %3898 = vmatpush2.xpose.msra.mxu0 0.0
    %3899 = vmatprep.subr.mxu0 0.0
    %3900 = vmatpush2.xpose.msra.mxu0 0.0
    %3901 = vmatprep.subr.mxu0 0.0
    %3902 = vmatpush2.xpose.msra.mxu0 0.0
    %3903 = vmatprep.subr.mxu0 0.0
    %3904 = vmatpush2.xpose.msra.mxu0 0.0
    %3905 = vmatprep.subr.mxu0 0.0
    %3906 = vmatpush2.xpose.msra.mxu0 0.0
    %3907 = vmatprep.subr.mxu0 0.0
    %3908 = vmatpush2.xpose.msra.mxu0 0.0
    %3909 = vmatprep.mubr.f32.mxu0 0.0
    %3910 = vmatmul.mubr.f32.gmra.mxu0 %v3841
    %v3911 = vpop.f32.mrf.mxu0
    %v3912 = vadd.f32 0.0, %v3911
    %v3913 = vpop.f32.mrf.mxu0
    %3914 = vdwg.mxu0
    %3915 = vrot.lane.b32.xlu0 %v2583, 80
    %v3916 = vpop.permute.xlu0 %3915
    %3917 = vrot.lane.b32.xlu0 %v2583, 16
    %v3918 = vpop.permute.xlu0 %3917
    %v3919 = vsel %vm500, %v3916, 0
    %v3921 = vsel %vm500, %v3918, 0
    %3923 = vmatprep.subr.mxu0 0.0
    %3924 = vmatpush1.xpose.msra.mxu0 0.0
    %3925 = vmatprep.subr.mxu0 0.0
    %3926 = vmatpush1.xpose.msra.mxu0 0.0
    %3927 = vmatprep.subr.mxu0 0.0
    %3928 = vmatpush1.xpose.msra.mxu0 0.0
    %3929 = vmatprep.subr.mxu0 0.0
    %3930 = vmatpush1.xpose.msra.mxu0 0.0
    %3931 = vmatprep.subr.mxu0 0.0
    %3932 = vmatpush1.xpose.msra.mxu0 0.0
    %3933 = vmatprep.subr.mxu0 0.0
    %3934 = vmatpush1.xpose.msra.mxu0 0.0
    %3935 = vmatprep.subr.mxu0 0.0
    %3936 = vmatpush1.xpose.msra.mxu0 0.0
    %3937 = vmatprep.subr.mxu0 0.0
    %3938 = vmatpush1.xpose.msra.mxu0 0.0
    %3939 = vmatprep.subr.mxu0 0.0
    %3940 = vmatpush1.xpose.msra.mxu0 0.0
    %3941 = vmatprep.subr.mxu0 0.0
    %3942 = vmatpush1.xpose.msra.mxu0 0.0
    %3943 = vmatprep.subr.mxu0 0.0
    %3944 = vmatpush1.xpose.msra.mxu0 0.0
    %3945 = vmatprep.subr.mxu0 0.0
    %3946 = vmatpush1.xpose.msra.mxu0 0.0
    %3947 = vmatprep.subr.mxu0 0.0
    %3948 = vmatpush1.xpose.msra.mxu0 0.0
    %3949 = vmatprep.subr.mxu0 0.0
    %3950 = vmatpush1.xpose.msra.mxu0 0.0
    %3951 = vmatprep.subr.mxu0 0.0
    %3952 = vmatpush1.xpose.msra.mxu0 0.0
    %3953 = vmatprep.subr.mxu0 0.0
    %3954 = vmatpush1.xpose.msra.mxu0 %v3921
    %3955 = vmatprep.subr.mxu0 0.0
    %3956 = vmatpush2.xpose.msra.mxu0 0.0
    %3957 = vmatprep.subr.mxu0 0.0
    %3958 = vmatpush2.xpose.msra.mxu0 0.0
    %3959 = vmatprep.subr.mxu0 0.0
    %3960 = vmatpush2.xpose.msra.mxu0 0.0
    %3961 = vmatprep.subr.mxu0 0.0
    %3962 = vmatpush2.xpose.msra.mxu0 0.0
    %3963 = vmatprep.subr.mxu0 0.0
    %3964 = vmatpush2.xpose.msra.mxu0 0.0
    %3965 = vmatprep.subr.mxu0 0.0
    %3966 = vmatpush2.xpose.msra.mxu0 0.0
    %3967 = vmatprep.subr.mxu0 0.0
    %3968 = vmatpush2.xpose.msra.mxu0 0.0
    %3969 = vmatprep.subr.mxu0 0.0
    %3970 = vmatpush2.xpose.msra.mxu0 0.0
    %3971 = vmatprep.subr.mxu0 0.0
    %3972 = vmatpush2.xpose.msra.mxu0 0.0
    %3973 = vmatprep.subr.mxu0 0.0
    %3974 = vmatpush2.xpose.msra.mxu0 0.0
    %3975 = vmatprep.subr.mxu0 0.0
    %3976 = vmatpush2.xpose.msra.mxu0 0.0
    %3977 = vmatprep.subr.mxu0 0.0
    %3978 = vmatpush2.xpose.msra.mxu0 0.0
    %3979 = vmatprep.subr.mxu0 0.0
    %3980 = vmatpush2.xpose.msra.mxu0 0.0
    %3981 = vmatprep.subr.mxu0 0.0
    %3982 = vmatpush2.xpose.msra.mxu0 0.0
    %3983 = vmatprep.subr.mxu0 0.0
    %3984 = vmatpush2.xpose.msra.mxu0 0.0
    %3985 = vmatprep.subr.mxu0 0.0
    %3986 = vmatpush2.xpose.msra.mxu0 0.0
    %3987 = vmatprep.mubr.f32.mxu0 0.0
    %3988 = vmatmul.mubr.f32.gmra.mxu0 %v3919
    %v3989 = vpop.f32.mrf.mxu0
    %v3990 = vadd.f32 0.0, %v3989
    %v3991 = vpop.f32.mrf.mxu0
    %3992 = vdwg.mxu0
    %v3993 = vmul.f32 %v3912, 0.25
    %v3994 = vmul.f32 %v3990, 0.25
    %v3995 = vadd.f32 %v3993, %v333
    %v3996 = vadd.f32 %v3994, %v333
    %v3997 = vsel %vm656, %v3995, -inf
    %3998 = vmax.xlane.f32.xlu0 %v3997
    %v3999 = vpop.xlane.xlu0 %3998
    %v4000 = vsel %vm656, %v3996, -inf
    %4001 = vmax.xlane.f32.xlu0 %v4000
    %v4002 = vpop.xlane.xlu0 %4001
    %v4003 = vsub.f32 %v3995, %v3999
    %v4004 = vsub.f32 %v3996, %v4002
    %v4005 = vmul.f32 %v4003, 1.442695
    %v4006 = vpow.pop %v4005
    %v4007 = vmul.f32 %v4004, 1.442695
    %v4008 = vpow.pop %v4007
    %v4009 = vsel %vm656, %v4006, 0.0
    %4010 = vadd.xlane.f32.xlu0 %v4009
    %v4011 = vpop.xlane.xlu0 %4010
    %v4012 = vsel %vm656, %v4008, 0.0
    %4013 = vadd.xlane.f32.xlu0 %v4012
    %v4014 = vpop.xlane.xlu0 %4013
    %v4015 = vrcp.pop %v4011
    %v4016 = vrcp.pop %v4014
    %v4017 = vmul.f32 %v4006, %v4015
    %v4018 = vmul.f32 %v4008, %v4016
    %4019 = vrot.lane.b32.xlu0 %v2579, 80
    %v4020 = vpop.permute.xlu0 %4019
    %v4023 = vsel %vm656, %v4017, 0
    %4025 = vmatprep.subr.mxu0 0.0
    %4026 = vmatpush1.msra.mxu0 0.0
    %4027 = vmatprep.subr.mxu0 0.0
    %4028 = vmatpush1.msra.mxu0 0.0
    %4029 = vmatprep.subr.mxu0 0.0
    %4030 = vmatpush1.msra.mxu0 0.0
    %4031 = vmatprep.subr.mxu0 0.0
    %4032 = vmatpush1.msra.mxu0 0.0
    %4033 = vmatprep.subr.mxu0 0.0
    %4034 = vmatpush1.msra.mxu0 0.0
    %4035 = vmatprep.subr.mxu0 0.0
    %4036 = vmatpush1.msra.mxu0 0.0
    %4037 = vmatprep.subr.mxu0 0.0
    %4038 = vmatpush1.msra.mxu0 0.0
    %4039 = vmatprep.subr.mxu0 0.0
    %4040 = vmatpush1.msra.mxu0 0.0
    %4041 = vmatprep.subr.mxu0 0.0
    %4042 = vmatpush1.msra.mxu0 0.0
    %4043 = vmatprep.subr.mxu0 0.0
    %4044 = vmatpush1.msra.mxu0 0.0
    %4045 = vmatprep.subr.mxu0 0.0
    %4046 = vmatpush1.msra.mxu0 0.0
    %4047 = vmatprep.subr.mxu0 0.0
    %4048 = vmatpush1.msra.mxu0 0.0
    %4049 = vmatprep.subr.mxu0 0.0
    %4050 = vmatpush1.msra.mxu0 0.0
    %4051 = vmatprep.subr.mxu0 0.0
    %4052 = vmatpush1.msra.mxu0 0.0
    %4053 = vmatprep.subr.mxu0 0.0
    %4054 = vmatpush1.msra.mxu0 0.0
    %4055 = vmatprep.subr.mxu0 0.0
    %4056 = vmatpush1.msra.mxu0 %v4020
    %4057 = vmatprep.subr.mxu0 0.0
    %4058 = vmatpush2.msra.mxu0 0.0
    %4059 = vmatprep.subr.mxu0 0.0
    %4060 = vmatpush2.msra.mxu0 0.0
    %4061 = vmatprep.subr.mxu0 0.0
    %4062 = vmatpush2.msra.mxu0 0.0
    %4063 = vmatprep.subr.mxu0 0.0
    %4064 = vmatpush2.msra.mxu0 0.0
    %4065 = vmatprep.subr.mxu0 0.0
    %4066 = vmatpush2.msra.mxu0 0.0
    %4067 = vmatprep.subr.mxu0 0.0
    %4068 = vmatpush2.msra.mxu0 0.0
    %4069 = vmatprep.subr.mxu0 0.0
    %4070 = vmatpush2.msra.mxu0 0.0
    %4071 = vmatprep.subr.mxu0 0.0
    %4072 = vmatpush2.msra.mxu0 0.0
    %4073 = vmatprep.subr.mxu0 0.0
    %4074 = vmatpush2.msra.mxu0 0.0
    %4075 = vmatprep.subr.mxu0 0.0
    %4076 = vmatpush2.msra.mxu0 0.0
    %4077 = vmatprep.subr.mxu0 0.0
    %4078 = vmatpush2.msra.mxu0 0.0
    %4079 = vmatprep.subr.mxu0 0.0
    %4080 = vmatpush2.msra.mxu0 0.0
    %4081 = vmatprep.subr.mxu0 0.0
    %4082 = vmatpush2.msra.mxu0 0.0
    %4083 = vmatprep.subr.mxu0 0.0
    %4084 = vmatpush2.msra.mxu0 0.0
    %4085 = vmatprep.subr.mxu0 0.0
    %4086 = vmatpush2.msra.mxu0 0.0
    %4087 = vmatprep.subr.mxu0 0.0
    %4088 = vmatpush2.msra.mxu0 0.0
    %4089 = vmatprep.mubr.f32.mxu0 0.0
    %4090 = vmatmul.mubr.f32.gmra.mxu0 %v4023
    %v4091 = vpop.f32.mrf.mxu0
    %v4092 = vadd.f32 0.0, %v4091
    %v4093 = vpop.f32.mrf.mxu0
    %4094 = vdwg.mxu0
    %4095 = vrot.lane.b32.xlu0 %v2585, 80
    %v4096 = vpop.permute.xlu0 %4095
    %v4099 = vsel %vm656, %v4018, 0
    %4101 = vmatprep.subr.mxu0 0.0
    %4102 = vmatpush1.msra.mxu0 0.0
    %4103 = vmatprep.subr.mxu0 0.0
    %4104 = vmatpush1.msra.mxu0 0.0
    %4105 = vmatprep.subr.mxu0 0.0
    %4106 = vmatpush1.msra.mxu0 0.0
    %4107 = vmatprep.subr.mxu0 0.0
    %4108 = vmatpush1.msra.mxu0 0.0
    %4109 = vmatprep.subr.mxu0 0.0
    %4110 = vmatpush1.msra.mxu0 0.0
    %4111 = vmatprep.subr.mxu0 0.0
    %4112 = vmatpush1.msra.mxu0 0.0
    %4113 = vmatprep.subr.mxu0 0.0
    %4114 = vmatpush1.msra.mxu0 0.0
    %4115 = vmatprep.subr.mxu0 0.0
    %4116 = vmatpush1.msra.mxu0 0.0
    %4117 = vmatprep.subr.mxu0 0.0
    %4118 = vmatpush1.msra.mxu0 0.0
    %4119 = vmatprep.subr.mxu0 0.0
    %4120 = vmatpush1.msra.mxu0 0.0
    %4121 = vmatprep.subr.mxu0 0.0
    %4122 = vmatpush1.msra.mxu0 0.0
    %4123 = vmatprep.subr.mxu0 0.0
    %4124 = vmatpush1.msra.mxu0 0.0
    %4125 = vmatprep.subr.mxu0 0.0
    %4126 = vmatpush1.msra.mxu0 0.0
    %4127 = vmatprep.subr.mxu0 0.0
    %4128 = vmatpush1.msra.mxu0 0.0
    %4129 = vmatprep.subr.mxu0 0.0
    %4130 = vmatpush1.msra.mxu0 0.0
    %4131 = vmatprep.subr.mxu0 0.0
    %4132 = vmatpush1.msra.mxu0 %v4096
    %4133 = vmatprep.subr.mxu0 0.0
    %4134 = vmatpush2.msra.mxu0 0.0
    %4135 = vmatprep.subr.mxu0 0.0
    %4136 = vmatpush2.msra.mxu0 0.0
    %4137 = vmatprep.subr.mxu0 0.0
    %4138 = vmatpush2.msra.mxu0 0.0
    %4139 = vmatprep.subr.mxu0 0.0
    %4140 = vmatpush2.msra.mxu0 0.0
    %4141 = vmatprep.subr.mxu0 0.0
    %4142 = vmatpush2.msra.mxu0 0.0
    %4143 = vmatprep.subr.mxu0 0.0
    %4144 = vmatpush2.msra.mxu0 0.0
    %4145 = vmatprep.subr.mxu0 0.0
    %4146 = vmatpush2.msra.mxu0 0.0
    %4147 = vmatprep.subr.mxu0 0.0
    %4148 = vmatpush2.msra.mxu0 0.0
    %4149 = vmatprep.subr.mxu0 0.0
    %4150 = vmatpush2.msra.mxu0 0.0
    %4151 = vmatprep.subr.mxu0 0.0
    %4152 = vmatpush2.msra.mxu0 0.0
    %4153 = vmatprep.subr.mxu0 0.0
    %4154 = vmatpush2.msra.mxu0 0.0
    %4155 = vmatprep.subr.mxu0 0.0
    %4156 = vmatpush2.msra.mxu0 0.0
    %4157 = vmatprep.subr.mxu0 0.0
    %4158 = vmatpush2.msra.mxu0 0.0
    %4159 = vmatprep.subr.mxu0 0.0
    %4160 = vmatpush2.msra.mxu0 0.0
    %4161 = vmatprep.subr.mxu0 0.0
    %4162 = vmatpush2.msra.mxu0 0.0
    %4163 = vmatprep.subr.mxu0 0.0
    %4164 = vmatpush2.msra.mxu0 0.0
    %4165 = vmatprep.mubr.f32.mxu0 0.0
    %4166 = vmatmul.mubr.f32.gmra.mxu0 %v4099
    %v4167 = vpop.f32.mrf.mxu0
    %v4168 = vadd.f32 0.0, %v4167
    %v4169 = vpop.f32.mrf.mxu0
    %4170 = vdwg.mxu0
    %v4172 = vsel %vm500, %v4092, 0
    %v4175 = vsel %vm500, %v4168, 0
    %4177 = vmatprep.subr.mxu0 0.0
    %4178 = vmatpush1.msra.mxu0 0.0
    %4179 = vmatprep.subr.mxu0 0.0
    %4180 = vmatpush1.msra.mxu0 0.0
    %4181 = vmatprep.subr.mxu0 0.0
    %4182 = vmatpush1.msra.mxu0 0.0
    %4183 = vmatprep.subr.mxu0 0.0
    %4184 = vmatpush1.msra.mxu0 0.0
    %4185 = vmatprep.subr.mxu0 0.0
    %4186 = vmatpush1.msra.mxu0 0.0
    %4187 = vmatprep.subr.mxu0 0.0
    %4188 = vmatpush1.msra.mxu0 0.0
    %4189 = vmatprep.subr.mxu0 0.0
    %4190 = vmatpush1.msra.mxu0 0.0
    %4191 = vmatprep.subr.mxu0 0.0
    %4192 = vmatpush1.msra.mxu0 0.0
    %4193 = vmatprep.subr.mxu0 0.0
    %4194 = vmatpush1.msra.mxu0 0.0
    %4195 = vmatprep.subr.mxu0 0.0
    %4196 = vmatpush1.msra.mxu0 0.0
    %4197 = vmatprep.subr.mxu0 0.0
    %4198 = vmatpush1.msra.mxu0 0.0
    %4199 = vmatprep.subr.mxu0 0.0
    %4200 = vmatpush1.msra.mxu0 0.0
    %4201 = vmatprep.subr.mxu0 0.0
    %4202 = vmatpush1.msra.mxu0 0.0
    %4203 = vmatprep.subr.mxu0 0.0
    %4204 = vmatpush1.msra.mxu0 0.0
    %4205 = vmatprep.subr.mxu0 0.0
    %4206 = vmatpush1.msra.mxu0 %v2595
    %4207 = vmatprep.subr.mxu0 0.0
    %4208 = vmatpush1.msra.mxu0 %v2594
    %4209 = vmatprep.subr.mxu0 0.0
    %4210 = vmatpush2.msra.mxu0 0.0
    %4211 = vmatprep.subr.mxu0 0.0
    %4212 = vmatpush2.msra.mxu0 0.0
    %4213 = vmatprep.subr.mxu0 0.0
    %4214 = vmatpush2.msra.mxu0 0.0
    %4215 = vmatprep.subr.mxu0 0.0
    %4216 = vmatpush2.msra.mxu0 0.0
    %4217 = vmatprep.subr.mxu0 0.0
    %4218 = vmatpush2.msra.mxu0 0.0
    %4219 = vmatprep.subr.mxu0 0.0
    %4220 = vmatpush2.msra.mxu0 0.0
    %4221 = vmatprep.subr.mxu0 0.0
    %4222 = vmatpush2.msra.mxu0 0.0
    %4223 = vmatprep.subr.mxu0 0.0
    %4224 = vmatpush2.msra.mxu0 0.0
    %4225 = vmatprep.subr.mxu0 0.0
    %4226 = vmatpush2.msra.mxu0 0.0
    %4227 = vmatprep.subr.mxu0 0.0
    %4228 = vmatpush2.msra.mxu0 0.0
    %4229 = vmatprep.subr.mxu0 0.0
    %4230 = vmatpush2.msra.mxu0 0.0
    %4231 = vmatprep.subr.mxu0 0.0
    %4232 = vmatpush2.msra.mxu0 0.0
    %4233 = vmatprep.subr.mxu0 0.0
    %4234 = vmatpush2.msra.mxu0 0.0
    %4235 = vmatprep.subr.mxu0 0.0
    %4236 = vmatpush2.msra.mxu0 0.0
    %4237 = vmatprep.subr.mxu0 0.0
    %4238 = vmatpush2.msra.mxu0 0.0
    %4239 = vmatprep.subr.mxu0 0.0
    %4240 = vmatpush2.msra.mxu0 0.0
    %4241 = vmatprep.mubr.f32.mxu0 0.0
    %4242 = vmatmul.mubr.f32.gmra.mxu0 %v4172
    %v4243 = vpop.f32.mrf.mxu0
    %v4244 = vadd.f32 0.0, %v4243
    %v4245 = vpop.f32.mrf.mxu0
    %4246 = vmatprep.mubr.f32.mxu0 0.0
    %4247 = vmatmul.mubr.f32.gmra.mxu0 %v4175
    %v4248 = vpop.f32.mrf.mxu0
    %v4249 = vadd.f32 0.0, %v4248
    %v4250 = vpop.f32.mrf.mxu0
    %4251 = vdwg.mxu0
    %v4252 = vadd.f32 %v3835, %v4244
    %v4253 = vadd.f32 %v3836, %v4249
    %v4254 = vadd.f32 %v2426, %v4252
    %v4255 = vadd.f32 %v2427, %v4253
    %s4256 = scalar_lea.vmem %s14, 1
    %v4257 = vld [vmem:[%s4256] sm:$0x1]
    %v4259 = vlaneseq
    %v4260 = vshrl.u32 %v4259, 7
    %v4261 = vsub.s32 0, %v4260
    %v4262 = vrot.slane %v4257, %v4261
    %v4264 = vadd.f32 %v4254, %v4262
    %v4265 = vadd.f32 %v4255, %v4262
    %s4266 = scalar_lea.vmem %s15, 1
    %v4267 = vld [vmem:[%s4266] sm:$0x1]
    %s4268 = scalar_lea.vmem %s16, 1
    %v4269 = vld [vmem:[%s4268] sm:$0x1]
    %v4270 = vsel %vm87, %v4264, 0.0
    %4271 = vadd.xlane.f32.xlu0 %v4270
    %v4272 = vpop.xlane.xlu0 %4271
    %v4273 = vsel %vm87, %v4265, 0.0
    %4274 = vadd.xlane.f32.xlu0 %v4273
    %v4275 = vpop.xlane.xlu0 %4274
    %v4276 = vmul.f32 %v4272, %v275
    %v4277 = vmul.f32 %v4275, %v275
    %v4278 = vsub.f32 %v4264, %v4276
    %v4279 = vsub.f32 %v4265, %v4277
    %v4280 = vmul.f32 %v4278, %v4278
    %v4281 = vmul.f32 %v4279, %v4279
    %v4282 = vsel %vm87, %v4280, 0.0
    %4283 = vadd.xlane.f32.xlu0 %v4282
    %v4284 = vpop.xlane.xlu0 %4283
    %v4285 = vsel %vm87, %v4281, 0.0
    %4286 = vadd.xlane.f32.xlu0 %v4285
    %v4287 = vpop.xlane.xlu0 %4286
    %v4288 = vmul.f32 %v4284, %v275
    %v4289 = vmul.f32 %v4287, %v275
    %v4290 = vadd.f32 %v4288, 1e-05
    %v4291 = vadd.f32 %v4289, 1e-05
    %v4292 = vrsqrt.pop %v4290
    %v4293 = vrsqrt.pop %v4291
    %v4294 = vmul.f32 %v4278, %v4292
    %v4295 = vmul.f32 %v4279, %v4293
    %v4297 = vlaneseq
    %v4298 = vshrl.u32 %v4297, 7
    %v4299 = vsub.s32 0, %v4298
    %v4300 = vrot.slane %v4267, %v4299
    %v4302 = vmul.f32 %v4294, %v4300
    %v4303 = vmul.f32 %v4295, %v4300
    %v4305 = vlaneseq
    %v4306 = vshrl.u32 %v4305, 7
    %v4307 = vsub.s32 0, %v4306
    %v4308 = vrot.slane %v4269, %v4307
    %v4310 = vadd.f32 %v4302, %v4308
    %v4311 = vadd.f32 %v4303, %v4308
    %s4312 = scalar_lea.vmem %s17, 64
    %v4313 = vld [vmem:[%s4312] sm:$0xff]
    %v4314 = vld [vmem:[%s4312 + $0x8] sm:$0xff]
    %v4315 = vld [vmem:[%s4312 + $0x10] sm:$0xff]
    %v4316 = vld [vmem:[%s4312 + $0x18] sm:$0xff]
    %v4317 = vld [vmem:[%s4312 + $0x20] sm:$0xff]
    %v4318 = vld [vmem:[%s4312 + $0x28] sm:$0xff]
    %v4319 = vld [vmem:[%s4312 + $0x30] sm:$0xff]
    %v4320 = vld [vmem:[%s4312 + $0x38] sm:$0xff]
    %s4321 = scalar_lea.vmem %s18, 1
    %v4322 = vld [vmem:[%s4321] sm:$0x1]
    %v4324 = vlaneseq
    %v4325 = vshrl.u32 %v4324, 7
    %v4326 = vsub.s32 0, %v4325
    %v4327 = vrot.slane %v4322, %v4326
    %v4330 = vsel %vm87, %v4310, 0
    %v4333 = vsel %vm87, %v4311, 0
    %4335 = vmatprep.subr.mxu0 0.0
    %4336 = vmatpush1.msra.mxu0 0.0
    %4337 = vmatprep.subr.mxu0 0.0
    %4338 = vmatpush1.msra.mxu0 0.0
    %4339 = vmatprep.subr.mxu0 0.0
    %4340 = vmatpush1.msra.mxu0 0.0
    %4341 = vmatprep.subr.mxu0 0.0
    %4342 = vmatpush1.msra.mxu0 0.0
    %4343 = vmatprep.subr.mxu0 0.0
    %4344 = vmatpush1.msra.mxu0 0.0
    %4345 = vmatprep.subr.mxu0 0.0
    %4346 = vmatpush1.msra.mxu0 0.0
    %4347 = vmatprep.subr.mxu0 0.0
    %4348 = vmatpush1.msra.mxu0 0.0
    %4349 = vmatprep.subr.mxu0 0.0
    %4350 = vmatpush1.msra.mxu0 0.0
    %4351 = vmatprep.subr.mxu0 0.0
    %4352 = vmatpush1.msra.mxu0 %v4320
    %4353 = vmatprep.subr.mxu0 0.0
    %4354 = vmatpush1.msra.mxu0 %v4319
    %4355 = vmatprep.subr.mxu0 0.0
    %4356 = vmatpush1.msra.mxu0 %v4318
    %4357 = vmatprep.subr.mxu0 0.0
    %4358 = vmatpush1.msra.mxu0 %v4317
    %4359 = vmatprep.subr.mxu0 0.0
    %4360 = vmatpush1.msra.mxu0 %v4316
    %4361 = vmatprep.subr.mxu0 0.0
    %4362 = vmatpush1.msra.mxu0 %v4315
    %4363 = vmatprep.subr.mxu0 0.0
    %4364 = vmatpush1.msra.mxu0 %v4314
    %4365 = vmatprep.subr.mxu0 0.0
    %4366 = vmatpush1.msra.mxu0 %v4313
    %4367 = vmatprep.subr.mxu0 0.0
    %4368 = vmatpush2.msra.mxu0 0.0
    %4369 = vmatprep.subr.mxu0 0.0
    %4370 = vmatpush2.msra.mxu0 0.0
    %4371 = vmatprep.subr.mxu0 0.0
    %4372 = vmatpush2.msra.mxu0 0.0
    %4373 = vmatprep.subr.mxu0 0.0
    %4374 = vmatpush2.msra.mxu0 0.0
    %4375 = vmatprep.subr.mxu0 0.0
    %4376 = vmatpush2.msra.mxu0 0.0
    %4377 = vmatprep.subr.mxu0 0.0
    %4378 = vmatpush2.msra.mxu0 0.0
    %4379 = vmatprep.subr.mxu0 0.0
    %4380 = vmatpush2.msra.mxu0 0.0
    %4381 = vmatprep.subr.mxu0 0.0
    %4382 = vmatpush2.msra.mxu0 0.0
    %4383 = vmatprep.subr.mxu0 0.0
    %4384 = vmatpush2.msra.mxu0 0.0
    %4385 = vmatprep.subr.mxu0 0.0
    %4386 = vmatpush2.msra.mxu0 0.0
    %4387 = vmatprep.subr.mxu0 0.0
    %4388 = vmatpush2.msra.mxu0 0.0
    %4389 = vmatprep.subr.mxu0 0.0
    %4390 = vmatpush2.msra.mxu0 0.0
    %4391 = vmatprep.subr.mxu0 0.0
    %4392 = vmatpush2.msra.mxu0 0.0
    %4393 = vmatprep.subr.mxu0 0.0
    %4394 = vmatpush2.msra.mxu0 0.0
    %4395 = vmatprep.subr.mxu0 0.0
    %4396 = vmatpush2.msra.mxu0 0.0
    %4397 = vmatprep.subr.mxu0 0.0
    %4398 = vmatpush2.msra.mxu0 0.0
    %4399 = vmatprep.mubr.f32.mxu0 0.0
    %4400 = vmatmul.mubr.f32.gmra.mxu0 %v4330
    %v4401 = vpop.f32.mrf.mxu0
    %v4402 = vadd.f32 %v4327, %v4401
    %v4403 = vpop.f32.mrf.mxu0
    %4404 = vmatprep.mubr.f32.mxu0 0.0
    %4405 = vmatmul.mubr.f32.gmra.mxu0 %v4333
    %v4406 = vpop.f32.mrf.mxu0
    %v4407 = vadd.f32 %v4327, %v4406
    %v4408 = vpop.f32.mrf.mxu0
    %4409 = vdwg.mxu0
    %v4410 = vmul.f32 %v4402, 0.5
    %v4411 = vmul.f32 %v4407, 0.5
    %v4412 = vmul.f32 %v4402, 0.044715
    %v4413 = vmul.f32 %v4407, 0.044715
    %v4414 = vmul.f32 %v4412, %v4402
    %v4415 = vmul.f32 %v4413, %v4407
    %v4416 = vmul.f32 %v4414, %v4402
    %v4417 = vmul.f32 %v4415, %v4407
    %v4418 = vadd.f32 %v4402, %v4416
    %v4419 = vadd.f32 %v4407, %v4417
    %v4420 = vmul.f32 %v4418, 0.7978846
    %v4421 = vmul.f32 %v4419, 0.7978846
    %v4422 = vtanh.pop %v4420
    %v4423 = vtanh.pop %v4421
    %v4424 = vadd.f32 %v4422, 1.0
    %v4425 = vadd.f32 %v4423, 1.0
    %v4426 = vmul.f32 %v4410, %v4424
    %v4427 = vmul.f32 %v4411, %v4425
    %s4428 = scalar_lea.vmem %s19, 128
    %v4429 = vld [vmem:[%s4428] sm:$0xff]
    %v4430 = vld [vmem:[%s4428 + $0x8] sm:$0xff]
    %v4431 = vld [vmem:[%s4428 + $0x10] sm:$0xff]
    %v4432 = vld [vmem:[%s4428 + $0x18] sm:$0xff]
    %v4433 = vld [vmem:[%s4428 + $0x20] sm:$0xff]
    %v4434 = vld [vmem:[%s4428 + $0x28] sm:$0xff]
    %v4435 = vld [vmem:[%s4428 + $0x30] sm:$0xff]
    %v4436 = vld [vmem:[%s4428 + $0x38] sm:$0xff]
    %v4437 = vld [vmem:[%s4428 + $0x40] sm:$0xff]
    %v4438 = vld [vmem:[%s4428 + $0x48] sm:$0xff]
    %v4439 = vld [vmem:[%s4428 + $0x50] sm:$0xff]
    %v4440 = vld [vmem:[%s4428 + $0x58] sm:$0xff]
    %v4441 = vld [vmem:[%s4428 + $0x60] sm:$0xff]
    %v4442 = vld [vmem:[%s4428 + $0x68] sm:$0xff]
    %v4443 = vld [vmem:[%s4428 + $0x70] sm:$0xff]
    %v4444 = vld [vmem:[%s4428 + $0x78] sm:$0xff]
    %4445 = vmatprep.subr.mxu0 0.0
    %4446 = vmatpush1.msra.mxu0 %v4444
    %4447 = vmatprep.subr.mxu0 0.0
    %4448 = vmatpush1.msra.mxu0 %v4443
    %4449 = vmatprep.subr.mxu0 0.0
    %4450 = vmatpush1.msra.mxu0 %v4442
    %4451 = vmatprep.subr.mxu0 0.0
    %4452 = vmatpush1.msra.mxu0 %v4441
    %4453 = vmatprep.subr.mxu0 0.0
    %4454 = vmatpush1.msra.mxu0 %v4440
    %4455 = vmatprep.subr.mxu0 0.0
    %4456 = vmatpush1.msra.mxu0 %v4439
    %4457 = vmatprep.subr.mxu0 0.0
    %4458 = vmatpush1.msra.mxu0 %v4438
    %4459 = vmatprep.subr.mxu0 0.0
    %4460 = vmatpush1.msra.mxu0 %v4437
    %4461 = vmatprep.subr.mxu0 0.0
    %4462 = vmatpush1.msra.mxu0 %v4436
    %4463 = vmatprep.subr.mxu0 0.0
    %4464 = vmatpush1.msra.mxu0 %v4435
    %4465 = vmatprep.subr.mxu0 0.0
    %4466 = vmatpush1.msra.mxu0 %v4434
    %4467 = vmatprep.subr.mxu0 0.0
    %4468 = vmatpush1.msra.mxu0 %v4433
    %4469 = vmatprep.subr.mxu0 0.0
    %4470 = vmatpush1.msra.mxu0 %v4432
    %4471 = vmatprep.subr.mxu0 0.0
    %4472 = vmatpush1.msra.mxu0 %v4431
    %4473 = vmatprep.subr.mxu0 0.0
    %4474 = vmatpush1.msra.mxu0 %v4430
    %4475 = vmatprep.subr.mxu0 0.0
    %4476 = vmatpush1.msra.mxu0 %v4429
    %4477 = vmatprep.subr.mxu0 0.0
    %4478 = vmatpush2.msra.mxu0 0.0
    %4479 = vmatprep.subr.mxu0 0.0
    %4480 = vmatpush2.msra.mxu0 0.0
    %4481 = vmatprep.subr.mxu0 0.0
    %4482 = vmatpush2.msra.mxu0 0.0
    %4483 = vmatprep.subr.mxu0 0.0
    %4484 = vmatpush2.msra.mxu0 0.0
    %4485 = vmatprep.subr.mxu0 0.0
    %4486 = vmatpush2.msra.mxu0 0.0
    %4487 = vmatprep.subr.mxu0 0.0
    %4488 = vmatpush2.msra.mxu0 0.0
    %4489 = vmatprep.subr.mxu0 0.0
    %4490 = vmatpush2.msra.mxu0 0.0
    %4491 = vmatprep.subr.mxu0 0.0
    %4492 = vmatpush2.msra.mxu0 0.0
    %4493 = vmatprep.subr.mxu0 0.0
    %4494 = vmatpush2.msra.mxu0 0.0
    %4495 = vmatprep.subr.mxu0 0.0
    %4496 = vmatpush2.msra.mxu0 0.0
    %4497 = vmatprep.subr.mxu0 0.0
    %4498 = vmatpush2.msra.mxu0 0.0
    %4499 = vmatprep.subr.mxu0 0.0
    %4500 = vmatpush2.msra.mxu0 0.0
    %4501 = vmatprep.subr.mxu0 0.0
    %4502 = vmatpush2.msra.mxu0 0.0
    %4503 = vmatprep.subr.mxu0 0.0
    %4504 = vmatpush2.msra.mxu0 0.0
    %4505 = vmatprep.subr.mxu0 0.0
    %4506 = vmatpush2.msra.mxu0 0.0
    %4507 = vmatprep.subr.mxu0 0.0
    %4508 = vmatpush2.msra.mxu0 0.0
    %4509 = vmatprep.mubr.f32.mxu0 0.0
    %4510 = vmatmul.mubr.f32.gmra.mxu0 %v4426
    %v4511 = vpop.f32.mrf.mxu0
    %v4512 = vadd.f32 0.0, %v4511
    %v4513 = vpop.f32.mrf.mxu0
    %4514 = vmatprep.mubr.f32.mxu0 0.0
    %4515 = vmatmul.mubr.f32.gmra.mxu0 %v4427
    %v4516 = vpop.f32.mrf.mxu0
    %v4517 = vadd.f32 0.0, %v4516
    %v4518 = vpop.f32.mrf.mxu0
    %4519 = vdwg.mxu0
    %v4520 = vadd.f32 %v4264, %v4512
    %v4521 = vadd.f32 %v4265, %v4517
    %s4522 = scalar_lea.vmem %s20, 1
    %v4523 = vld [vmem:[%s4522] sm:$0x1]
    %v4525 = vlaneseq
    %v4526 = vshrl.u32 %v4525, 7
    %v4527 = vsub.s32 0, %v4526
    %v4528 = vrot.slane %v4523, %v4527
    %v4530 = vadd.f32 %v4520, %v4528
    %v4531 = vadd.f32 %v4521, %v4528
    %v4533 = vrot.slane %v4531, 7
    %vm4535 = vcmask 1040384
    %v4536 = vsel %vm4535, %v4530, %v4533
    %v4537 = vld [vmem:[%s21] sm:$0x1]
    %v4538 = vld [vmem:[%s22] sm:$0x1]
    %vm4539 = vcmask 517120
    %v4540 = vsel %vm4539, %v4536, 0.0
    %4541 = vadd.xlane.f32.xlu0 %v4540
    %v4542 = vpop.xlane.xlu0 %4541
    %v4543 = vmul.f32 %v4542, %v275
    %v4544 = vsub.f32 %v4536, %v4543
    %v4545 = vmul.f32 %v4544, %v4544
    %v4546 = vsel %vm4539, %v4545, 0.0
    %4547 = vadd.xlane.f32.xlu0 %v4546
    %v4548 = vpop.xlane.xlu0 %4547
    %v4549 = vmul.f32 %v4548, %v275
    %v4550 = vadd.f32 %v4549, 1e-05
    %v4551 = vrsqrt.pop %v4550
    %v4552 = vmul.f32 %v4544, %v4551
    %v4554 = vlaneseq
    %v4555 = vshrl.u32 %v4554, 7
    %v4556 = vsub.s32 0, %v4555
    %v4557 = vrot.slane %v4537, %v4556
    %v4559 = vmul.f32 %v4552, %v4557
    %v4561 = vlaneseq
    %v4562 = vshrl.u32 %v4561, 7
    %v4563 = vsub.s32 0, %v4562
    %v4564 = vrot.slane %v4538, %v4563
    %v4566 = vadd.f32 %v4559, %v4564
    %v4567 = vld [vmem:[%s23] sm:$0xff]
    %v4568 = vld [vmem:[%s23 + $0x8] sm:$0xff]
    %v4569 = vld [vmem:[%s23 + $0x10] sm:$0xff]
    %v4570 = vld [vmem:[%s23 + $0x18] sm:$0xff]
    %v4571 = vld [vmem:[%s23 + $0x20] sm:$0xff]
    %v4572 = vld [vmem:[%s23 + $0x28] sm:$0xff]
    %v4573 = vld [vmem:[%s23 + $0x30] sm:$0xff]
    %v4574 = vld [vmem:[%s23 + $0x38] sm:$0xff]
    %v4575 = vld [vmem:[%s24] sm:$0x1]
    %v4577 = vlaneseq
    %v4578 = vshrl.u32 %v4577, 7
    %v4579 = vsub.s32 0, %v4578
    %v4580 = vrot.slane %v4575, %v4579
    %v4583 = vsel %vm87, %v4566, 0
    %4585 = vmatprep.subr.mxu0 0.0
    %4586 = vmatpush1.msra.mxu0 0.0
    %4587 = vmatprep.subr.mxu0 0.0
    %4588 = vmatpush1.msra.mxu0 0.0
    %4589 = vmatprep.subr.mxu0 0.0
    %4590 = vmatpush1.msra.mxu0 0.0
    %4591 = vmatprep.subr.mxu0 0.0
    %4592 = vmatpush1.msra.mxu0 0.0
    %4593 = vmatprep.subr.mxu0 0.0
    %4594 = vmatpush1.msra.mxu0 0.0
    %4595 = vmatprep.subr.mxu0 0.0
    %4596 = vmatpush1.msra.mxu0 0.0
    %4597 = vmatprep.subr.mxu0 0.0
    %4598 = vmatpush1.msra.mxu0 0.0
    %4599 = vmatprep.subr.mxu0 0.0
    %4600 = vmatpush1.msra.mxu0 0.0
    %4601 = vmatprep.subr.mxu0 0.0
    %4602 = vmatpush1.msra.mxu0 %v4574
    %4603 = vmatprep.subr.mxu0 0.0
    %4604 = vmatpush1.msra.mxu0 %v4573
    %4605 = vmatprep.subr.mxu0 0.0
    %4606 = vmatpush1.msra.mxu0 %v4572
    %4607 = vmatprep.subr.mxu0 0.0
    %4608 = vmatpush1.msra.mxu0 %v4571
    %4609 = vmatprep.subr.mxu0 0.0
    %4610 = vmatpush1.msra.mxu0 %v4570
    %4611 = vmatprep.subr.mxu0 0.0
    %4612 = vmatpush1.msra.mxu0 %v4569
    %4613 = vmatprep.subr.mxu0 0.0
    %4614 = vmatpush1.msra.mxu0 %v4568
    %4615 = vmatprep.subr.mxu0 0.0
    %4616 = vmatpush1.msra.mxu0 %v4567
    %4617 = vmatprep.subr.mxu0 0.0
    %4618 = vmatpush2.msra.mxu0 0.0
    %4619 = vmatprep.subr.mxu0 0.0
    %4620 = vmatpush2.msra.mxu0 0.0
    %4621 = vmatprep.subr.mxu0 0.0
    %4622 = vmatpush2.msra.mxu0 0.0
    %4623 = vmatprep.subr.mxu0 0.0
    %4624 = vmatpush2.msra.mxu0 0.0
    %4625 = vmatprep.subr.mxu0 0.0
    %4626 = vmatpush2.msra.mxu0 0.0
    %4627 = vmatprep.subr.mxu0 0.0
    %4628 = vmatpush2.msra.mxu0 0.0
    %4629 = vmatprep.subr.mxu0 0.0
    %4630 = vmatpush2.msra.mxu0 0.0
    %4631 = vmatprep.subr.mxu0 0.0
    %4632 = vmatpush2.msra.mxu0 0.0
    %4633 = vmatprep.subr.mxu0 0.0
    %4634 = vmatpush2.msra.mxu0 0.0
    %4635 = vmatprep.subr.mxu0 0.0
    %4636 = vmatpush2.msra.mxu0 0.0
    %4637 = vmatprep.subr.mxu0 0.0
    %4638 = vmatpush2.msra.mxu0 0.0
    %4639 = vmatprep.subr.mxu0 0.0
    %4640 = vmatpush2.msra.mxu0 0.0
    %4641 = vmatprep.subr.mxu0 0.0
    %4642 = vmatpush2.msra.mxu0 0.0
    %4643 = vmatprep.subr.mxu0 0.0
    %4644 = vmatpush2.msra.mxu0 0.0
    %4645 = vmatprep.subr.mxu0 0.0
    %4646 = vmatpush2.msra.mxu0 0.0
    %4647 = vmatprep.subr.mxu0 0.0
    %4648 = vmatpush2.msra.mxu0 0.0
    %4649 = vmatprep.mubr.f32.mxu0 0.0
    %4650 = vmatmul.mubr.f32.gmra.mxu0 %v4583
    %v4651 = vpop.f32.mrf.mxu0
    %v4652 = vadd.f32 %v4580, %v4651
    %v4653 = vpop.f32.mrf.mxu0
    %4654 = vdwg.mxu0
    %4655 = vst [vmem:[#allocation2] sm:$0x3] %v4652
    // Predicated region
    $region102: #{vit_forward.1} parent=1 // pred_check
      _
    $region103: #{vit_forward.1} parent=1 // pred_check_branch
      %4657 = sbr.rel (0) target = $region105
    $region104: #{vit_forward.1} parent=1 // pred_region
      %s4659 = ssub.s32 32, 32
      %4660 = vsyncadd [#allocation3], %s4659
      %s4662 = sshll.u32 [#allocation2], 4
      %s4663 = int_to_ptr.vmem [resolvable:$true] %s4662
      %4665 = dma.vmem_to_hbm [thread:$0]  %s4663, 32, %s25, [#allocation3]
    $region105: #{vit_forward.1} parent=1 // pred_fallthru
      _
    // Predicated region
    $region106: #{vit_forward.1} parent=1 // pred_check
      _
    $region107: #{vit_forward.1} parent=1 // pred_check_branch
      %4667 = sbr.rel (0) target = $region109
    $region108: #{vit_forward.1} parent=1 // pred_region
      %4668 = dma.done [#allocation3], 32
    $region109: #{vit_forward.1} parent=1 // pred_fallthru
      _
    %4669 = vsyncpa [#allocation3], 1

</llo_original>
